<compile_context>
chip_gen: v5e
topology: v5e:2x2
jax: 0.10.0
libtpu: 0.0.40
codegen_flags: <defaults>
</compile_context>

<pallas_src>
import numpy as np
import jax
import jax.numpy as jnp
from jax.experimental import pallas as pl
from jax.experimental.pallas import tpu as pltpu


# ------------------------- static selection constants -----------------------

def _build_tables():
    # conv1 folded weights: W1[q*64 + g*16 + co, v] = w1[co, ky, kx]
    #   q = pool quadrant, g = output parity plane of pooled1,
    #   v = mod-4 decimated window index of the padded 32x32 input.
    idx1 = np.zeros((256, 64), np.int32)
    msk1 = np.zeros((256, 64), np.float32)
    co16 = np.arange(16, dtype=np.int32)
    for qy in range(2):
        for qx in range(2):
            q = qy * 2 + qx
            for rp in range(2):
                for cp in range(2):
                    g = rp * 2 + cp
                    r0 = q * 64 + g * 16
                    for ky in range(5):
                        for kx in range(5):
                            orow = 2 * rp + qy + ky
                            ocol = 2 * cp + qx + kx
                            v = (((orow % 4) * 4 + (ocol % 4)) * 4
                                 + (orow // 4) * 2 + (ocol // 4))
                            idx1[r0:r0 + 16, v] = co16 * 25 + ky * 5 + kx
                            msk1[r0:r0 + 16, v] = 1.0

    # conv2 folded weights: W2[q2*32 + co2, (rd*3+cd)*64 + g*16 + ci]
    #   (rd, cd) = lane-shift index of the padded 9x9 parity plane.
    idx2 = np.zeros((128, 576), np.int32)
    msk2 = np.zeros((128, 576), np.float32)
    co32 = np.arange(32, dtype=np.int32)
    for qy in range(2):
        for qx in range(2):
            q2 = qy * 2 + qx
            for rd in range(3):
                for cd in range(3):
                    for rp in range(2):
                        for cp in range(2):
                            g = rp * 2 + cp
                            ky = 2 * rd + rp - qy
                            kx = 2 * cd + cp - qx
                            if 0 <= ky <= 4 and 0 <= kx <= 4:
                                for ci in range(16):
                                    col = (rd * 3 + cd) * 64 + g * 16 + ci
                                    idx2[q2 * 32:(q2 + 1) * 32, col] = (
                                        co32 * 400 + ci * 25 + ky * 5 + kx)
                                    msk2[q2 * 32:(q2 + 1) * 32, col] = 1.0

    # FC: kernel feature index co2*128 + 9*i + j <-> torch index co2*49 + 7*i + j
    fsrc = np.zeros((4096,), np.int32)
    fmsk = np.zeros((4096, 1), np.float32)
    for c in range(32):
        for i in range(7):
            for j in range(7):
                fsrc[c * 128 + i * 9 + j] = c * 49 + i * 7 + j
                fmsk[c * 128 + i * 9 + j, 0] = 1.0

    # valid-lane mask: interior (7x7) of the per-sample zero-padded 9x9 plane.
    valid = np.zeros((128,), np.float32)
    for i in range(7):
        for j in range(7):
            valid[10 + 9 * i + j] = 1.0
    return idx1, msk1, idx2, msk2, fsrc, fmsk, valid


_IDX1, _MSK1, _IDX2, _MSK2, _FSRC, _FMSK, _VALID = _build_tables()


# ------------------------------- Pallas kernel ------------------------------

def _convnet_fused_kernel(base1_ref, w1_ref, b1_ref, w2_ref, b2_ref,
                          wf_ref, bf_ref, valid_ref, o_ref):
    # base1_ref: (1, 64, BT*128) bf16 -- decimated input windows, one 128-lane
    #            block per sample (padded 9x9 spatial layout on lanes)
    # w1_ref:    (256, 64)  bf16   folded conv1 weights (4 quadrants x 4 parity)
    # b1_ref:    (64, 1)    f32    conv1 bias tiled over parity planes
    # w2_ref:    (128, 576) bf16   folded conv2 weights (4 quadrants, 9 shifts)
    # b2_ref:    (32, 1)    f32
    # wf_ref:    (4096, 128) bf16  FC weights, classes padded to 128 lanes
    # bf_ref:    (1, 128)   f32
    # valid_ref: (1, BT*128) f32   interior-lane mask (zero ring / tail lanes)
    # o_ref:     (BT, 128)  f32    logits (lane-dense; wrapper slices classes)
    N = base1_ref.shape[2]
    BT = N // 128
    base1 = base1_ref[0]                                              # (64, N)

    # ---- layer 1: conv(1->16) + maxpool2 + bias + ReLU, one batched matmul --
    y1 = jnp.dot(w1_ref[...], base1, preferred_element_type=jnp.float32)
    m1 = jnp.maximum(jnp.maximum(y1[0:64], y1[64:128]),
                     jnp.maximum(y1[128:192], y1[192:256]))           # (64, N)
    # bias+ReLU after pooling is exact (channel-constant bias, monotone ReLU);
    # multiply by the interior mask so the 9x9 padding ring stays exactly zero.
    pp = (jnp.maximum(m1 + b1_ref[...], 0.0) * valid_ref[...]).astype(jnp.bfloat16)

    # ---- layer 2 im2col: 9 whole-array lane shifts of the parity planes -----
    shifts = []
    for rd in range(3):
        for cd in range(3):
            k = rd * 9 + cd
            if k == 0:
                shifts.append(pp)
            else:  # left-shift by k lanes (wrap lands only in unused lanes)
                shifts.append(jnp.concatenate([pp[:, k:], pp[:, :k]], axis=1))
    base2 = jnp.concatenate(shifts, axis=0)                           # (576, N)

    # ---- layer 2: conv(16->32) + maxpool2 + bias + ReLU, one batched matmul -
    y2 = jnp.dot(w2_ref[...], base2, preferred_element_type=jnp.float32)
    m2 = jnp.maximum(jnp.maximum(y2[0:32], y2[32:64]),
                     jnp.maximum(y2[64:96], y2[96:128]))              # (32, N)
    p2 = jnp.maximum(m2 + b2_ref[...], 0.0)                           # (32, N) f32

    # ---- FC epilogue: (channels, sample-lane-blocks) -> (samples, features) -
    # TODO(synk): remaining per-sample code; 32*BT aligned (1,128) moves.
    rows = []
    for s in range(BT):
        blk = p2[:, s * 128:(s + 1) * 128]                            # (32, 128)
        rows.append(jnp.concatenate([blk[c:c + 1, :] for c in range(32)],
                                    axis=1))                          # (1, 4096)
    feat = jnp.concatenate(rows, axis=0).astype(jnp.bfloat16)         # (BT, 4096)
    o_ref[...] = (jnp.dot(feat, wf_ref[...],
                          preferred_element_type=jnp.float32)
                  + bf_ref[...])                                      # (BT, 128)


# --------------------------------- wrapper ----------------------------------

def convnet_forward(x, params):
    """x: (B, 1, 28, 28) float32 NCHW -> logits (B, num_classes)."""
    w1, b1, w2, b2, wf, bf = params
    B = x.shape[0]
    ncls = wf.shape[0]
    assert ncls <= 128

    # Input relayout: mod-4 decimated 7x7 windows of the zero-padded 32x32
    # image, placed at the interior of a per-sample zero-padded 9x9 lane block.
    xpad = jnp.pad(x[:, 0].astype(jnp.float32), ((0, 0), (2, 2), (2, 2)))
    xq = xpad.reshape(B, 8, 4, 8, 4).transpose(0, 2, 4, 1, 3)         # (B,4,4,8,8)
    wins = [xq[:, :, :, od:od + 7, ocd:ocd + 7]
            for od in range(2) for ocd in range(2)]
    base49 = jnp.stack(wins, axis=3).reshape(B, 64, 7, 7)
    base81 = jnp.pad(base49, ((0, 0), (0, 0), (1, 1), (1, 1))).reshape(B, 64, 81)
    base128 = jnp.pad(base81, ((0, 0), (0, 0), (0, 47)))              # (B,64,128)

    # Batch tiling: BT samples per grid step, batched along lanes.
    BT = min(8, B)
    Bp = ((B + BT - 1) // BT) * BT
    G = Bp // BT
    if Bp != B:
        base128 = jnp.pad(base128, ((0, Bp - B), (0, 0), (0, 0)))
    base1g = (base128.reshape(G, BT, 64, 128).transpose(0, 2, 1, 3)
              .reshape(G, 64, BT * 128).astype(jnp.bfloat16))
    N = BT * 128

    # Fold conv tap selection into weight matrices; cast matmul operands bf16.
    w1big = (w1.reshape(-1)[jnp.asarray(_IDX1)]
             * jnp.asarray(_MSK1)).astype(jnp.bfloat16)               # (256, 64)
    w2all = (w2.reshape(-1)[jnp.asarray(_IDX2)]
             * jnp.asarray(_MSK2)).astype(jnp.bfloat16)               # (128, 576)
    wf_rows = wf.T[jnp.asarray(_FSRC)] * jnp.asarray(_FMSK)           # (4096, ncls)
    wfk = (jnp.zeros((4096, 128), jnp.float32).at[:, :ncls].set(wf_rows)
           .astype(jnp.bfloat16))
    b1row = jnp.tile(b1.astype(jnp.float32), 4).reshape(64, 1)
    b2row = b2.astype(jnp.float32).reshape(32, 1)
    bfrow = jnp.zeros((1, 128), jnp.float32).at[0, :ncls].set(
        bf.astype(jnp.float32))
    valid = jnp.asarray(np.tile(_VALID, BT)).reshape(1, N)

    out = pl.pallas_call(
        _convnet_fused_kernel,
        out_shape=jax.ShapeDtypeStruct((Bp, 128), jnp.float32),
        grid=(G,),
        in_specs=[
            pl.BlockSpec((1, 64, N), lambda b: (b, 0, 0)),
            pl.BlockSpec((256, 64), lambda b: (0, 0)),
            pl.BlockSpec((64, 1), lambda b: (0, 0)),
            pl.BlockSpec((128, 576), lambda b: (0, 0)),
            pl.BlockSpec((32, 1), lambda b: (0, 0)),
            pl.BlockSpec((4096, 128), lambda b: (0, 0)),
            pl.BlockSpec((1, 128), lambda b: (0, 0)),
            pl.BlockSpec((1, N), lambda b: (0, 0)),
        ],
        out_specs=pl.BlockSpec((BT, 128), lambda b: (b, 0)),
        compiler_params=pltpu.CompilerParams(
            dimension_semantics=("parallel",)),
    )(base1g, w1big, b1row, w2all, b2row, wfk, bfrow, valid)
    return out[:B, :ncls]


# ------------------------------ params & reference --------------------------

def init_params(key, num_classes=10):
    ks = jax.random.split(key, 6)

    def u(k, shape, fan_in):
        bound = 1.0 / jnp.sqrt(jnp.float32(fan_in))
        return jax.random.uniform(k, shape, jnp.float32, -bound, bound)

    w1 = u(ks[0], (16, 1, 5, 5), 1 * 25)
    b1 = u(ks[1], (16,), 1 * 25)
    w2 = u(ks[2], (32, 16, 5, 5), 16 * 25)
    b2 = u(ks[3], (32,), 16 * 25)
    wf = u(ks[4], (num_classes, 7 * 7 * 32), 7 * 7 * 32)
    bf = u(ks[5], (num_classes,), 7 * 7 * 32)
    return (w1, b1, w2, b2, wf, bf)


def _reference_forward(x, params):
    w1, b1, w2, b2, wf, bf = params
    dn = ('NCHW', 'OIHW', 'NCHW')

    def conv(inp, w, b):
        y = jax.lax.conv_general_dilated(
            inp, w, (1, 1), ((2, 2), (2, 2)), dimension_numbers=dn,
            precision=jax.lax.Precision.HIGHEST)
        return y + b[None, :, None, None]

    def pool(y):
        return jax.lax.reduce_window(y, -jnp.inf, jax.lax.max,
                                     (1, 1, 2, 2), (1, 1, 2, 2), 'VALID')

    o = pool(jax.nn.relu(conv(x, w1, b1)))
    o = pool(jax.nn.relu(conv(o, w2, b2)))
    feat = o.reshape(o.shape[0], -1)
    return jnp.dot(feat, wf.T, precision=jax.lax.Precision.HIGHEST) + bf[None, :]


if __name__ == "__main__":
    key = jax.random.PRNGKey(0)
    x = jax.random.normal(key, (2, 1, 28, 28), dtype=jnp.float32)
    params = init_params(jax.random.PRNGKey(42), num_classes=10)

    fwd = jax.jit(convnet_forward)
    logits = fwd(x, params)
    jax.block_until_ready(logits)
    assert logits.shape == (2, 10) and logits.dtype == jnp.float32
    ref = _reference_forward(x, params)
    np.testing.assert_allclose(np.asarray(logits), np.asarray(ref),
                               rtol=2e-2, atol=2e-2)

    # Exercise the multi-grid-step (BT=8, grid=2) and batch-padding paths too.
    x2 = jax.random.normal(jax.random.PRNGKey(1), (13, 1, 28, 28),
                           dtype=jnp.float32)
    logits2 = jax.jit(convnet_forward)(x2, params)
    jax.block_until_ready(logits2)
    ref2 = _reference_forward(x2, params)
    np.testing.assert_allclose(np.asarray(logits2), np.asarray(ref2),
                               rtol=2e-2, atol=2e-2)

    print("KERNEL_OK")
</pallas_src>

<mosaic_0001>
module attributes {stable_mosaic.version = 11 : i64} {
  func.func @_convnet_fused_kernel(%arg0: i32, %arg1: memref<1x64x256xbf16, #tpu.memory_space<vmem>>, %arg2: memref<256x64xbf16, #tpu.memory_space<vmem>>, %arg3: memref<64x1xf32, #tpu.memory_space<vmem>>, %arg4: memref<128x576xbf16, #tpu.memory_space<vmem>>, %arg5: memref<32x1xf32, #tpu.memory_space<vmem>>, %arg6: memref<4096x128xbf16, #tpu.memory_space<vmem>>, %arg7: memref<1x128xf32, #tpu.memory_space<vmem>>, %arg8: memref<1x256xf32, #tpu.memory_space<vmem>>, %arg9: memref<2x128xf32, #tpu.memory_space<vmem>>) attributes {dimension_semantics = [#tpu.dimension_semantics<parallel>], iteration_bounds = array<i64: 1>, scalar_prefetch = 0 : i64, scratch_operands = 0 : i64, tpu.core_type = #tpu.core_type<tc>, window_params = [{transform_indices = @transform_0, window_bounds = array<i64: 1, 64, 256>}, {pipeline_mode = #tpu.pipeline_mode<synchronous>, transform_indices = @transform_1, window_bounds = array<i64: 256, 64>}, {pipeline_mode = #tpu.pipeline_mode<synchronous>, transform_indices = @transform_2, window_bounds = array<i64: 64, 1>}, {pipeline_mode = #tpu.pipeline_mode<synchronous>, transform_indices = @transform_3, window_bounds = array<i64: 128, 576>}, {pipeline_mode = #tpu.pipeline_mode<synchronous>, transform_indices = @transform_4, window_bounds = array<i64: 32, 1>}, {pipeline_mode = #tpu.pipeline_mode<synchronous>, transform_indices = @transform_5, window_bounds = array<i64: 4096, 128>}, {pipeline_mode = #tpu.pipeline_mode<synchronous>, transform_indices = @transform_6, window_bounds = array<i64: 1, 128>}, {pipeline_mode = #tpu.pipeline_mode<synchronous>, transform_indices = @transform_7, window_bounds = array<i64: 1, 256>}, {transform_indices = @transform_8, window_bounds = array<i64: 2, 128>}]} {
    %c0 = arith.constant 0 : index
    %c0_0 = arith.constant 0 : index
    %c0_1 = arith.constant 0 : index
    %0 = vector.load %arg1[%c0, %c0_0, %c0_1] : memref<1x64x256xbf16, #tpu.memory_space<vmem>>, vector<1x64x256xbf16>
    %1 = vector.shape_cast %0 : vector<1x64x256xbf16> to vector<64x256xbf16>
    %c0_2 = arith.constant 0 : index
    %c0_3 = arith.constant 0 : index
    %2 = vector.load %arg2[%c0_2, %c0_3] : memref<256x64xbf16, #tpu.memory_space<vmem>>, vector<256x64xbf16>
    %cst = arith.constant dense<0.000000e+00> : vector<256x256xf32>
    %3 = tpu.matmul %2, %1, %cst {dimension_numbers = #tpu.dot_dimension_numbers<[1], [0], [0], [1], [0, 0, 1, 1], [], []>} : vector<256x64xbf16>, vector<64x256xbf16>, vector<256x256xf32> -> vector<256x256xf32>
    %4 = vector.extract_strided_slice %3 {offsets = [0, 0], sizes = [64, 256], strides = [1, 1]} : vector<256x256xf32> to vector<64x256xf32>
    %5 = vector.extract_strided_slice %3 {offsets = [64, 0], sizes = [64, 256], strides = [1, 1]} : vector<256x256xf32> to vector<64x256xf32>
    %6 = arith.maximumf %4, %5 : vector<64x256xf32>
    %7 = vector.extract_strided_slice %3 {offsets = [128, 0], sizes = [64, 256], strides = [1, 1]} : vector<256x256xf32> to vector<64x256xf32>
    %8 = vector.extract_strided_slice %3 {offsets = [192, 0], sizes = [64, 256], strides = [1, 1]} : vector<256x256xf32> to vector<64x256xf32>
    %9 = arith.maximumf %7, %8 : vector<64x256xf32>
    %10 = arith.maximumf %6, %9 : vector<64x256xf32>
    %c0_4 = arith.constant 0 : index
    %c0_5 = arith.constant 0 : index
    %11 = vector.load %arg3[%c0_4, %c0_5] : memref<64x1xf32, #tpu.memory_space<vmem>>, vector<64x1xf32>
    %12 = vector.broadcast %11 : vector<64x1xf32> to vector<64x256xf32>
    %13 = arith.addf %10, %12 : vector<64x256xf32>
    %cst_6 = arith.constant 0.000000e+00 : f32
    %14 = vector.broadcast %cst_6 : f32 to vector<64x256xf32>
    %15 = arith.maximumf %13, %14 : vector<64x256xf32>
    %c0_7 = arith.constant 0 : index
    %c0_8 = arith.constant 0 : index
    %16 = vector.load %arg8[%c0_7, %c0_8] : memref<1x256xf32, #tpu.memory_space<vmem>>, vector<1x256xf32>
    %17 = vector.broadcast %16 : vector<1x256xf32> to vector<64x256xf32>
    %18 = arith.mulf %15, %17 : vector<64x256xf32>
    %19 = arith.truncf %18 : vector<64x256xf32> to vector<64x256xbf16>
    %20 = vector.extract_strided_slice %19 {offsets = [0, 1], sizes = [64, 255], strides = [1, 1]} : vector<64x256xbf16> to vector<64x255xbf16>
    %21 = vector.extract_strided_slice %19 {offsets = [0, 0], sizes = [64, 1], strides = [1, 1]} : vector<64x256xbf16> to vector<64x1xbf16>
    %22 = tpu.concatenate %20, %21 in 1 : vector<64x255xbf16>, vector<64x1xbf16> -> vector<64x256xbf16>
    %23 = vector.extract_strided_slice %19 {offsets = [0, 2], sizes = [64, 254], strides = [1, 1]} : vector<64x256xbf16> to vector<64x254xbf16>
    %24 = vector.extract_strided_slice %19 {offsets = [0, 0], sizes = [64, 2], strides = [1, 1]} : vector<64x256xbf16> to vector<64x2xbf16>
    %25 = tpu.concatenate %23, %24 in 1 : vector<64x254xbf16>, vector<64x2xbf16> -> vector<64x256xbf16>
    %26 = vector.extract_strided_slice %19 {offsets = [0, 9], sizes = [64, 247], strides = [1, 1]} : vector<64x256xbf16> to vector<64x247xbf16>
    %27 = vector.extract_strided_slice %19 {offsets = [0, 0], sizes = [64, 9], strides = [1, 1]} : vector<64x256xbf16> to vector<64x9xbf16>
    %28 = tpu.concatenate %26, %27 in 1 : vector<64x247xbf16>, vector<64x9xbf16> -> vector<64x256xbf16>
    %29 = vector.extract_strided_slice %19 {offsets = [0, 10], sizes = [64, 246], strides = [1, 1]} : vector<64x256xbf16> to vector<64x246xbf16>
    %30 = vector.extract_strided_slice %19 {offsets = [0, 0], sizes = [64, 10], strides = [1, 1]} : vector<64x256xbf16> to vector<64x10xbf16>
    %31 = tpu.concatenate %29, %30 in 1 : vector<64x246xbf16>, vector<64x10xbf16> -> vector<64x256xbf16>
    %32 = vector.extract_strided_slice %19 {offsets = [0, 11], sizes = [64, 245], strides = [1, 1]} : vector<64x256xbf16> to vector<64x245xbf16>
    %33 = vector.extract_strided_slice %19 {offsets = [0, 0], sizes = [64, 11], strides = [1, 1]} : vector<64x256xbf16> to vector<64x11xbf16>
    %34 = tpu.concatenate %32, %33 in 1 : vector<64x245xbf16>, vector<64x11xbf16> -> vector<64x256xbf16>
    %35 = vector.extract_strided_slice %19 {offsets = [0, 18], sizes = [64, 238], strides = [1, 1]} : vector<64x256xbf16> to vector<64x238xbf16>
    %36 = vector.extract_strided_slice %19 {offsets = [0, 0], sizes = [64, 18], strides = [1, 1]} : vector<64x256xbf16> to vector<64x18xbf16>
    %37 = tpu.concatenate %35, %36 in 1 : vector<64x238xbf16>, vector<64x18xbf16> -> vector<64x256xbf16>
    %38 = vector.extract_strided_slice %19 {offsets = [0, 19], sizes = [64, 237], strides = [1, 1]} : vector<64x256xbf16> to vector<64x237xbf16>
    %39 = vector.extract_strided_slice %19 {offsets = [0, 0], sizes = [64, 19], strides = [1, 1]} : vector<64x256xbf16> to vector<64x19xbf16>
    %40 = tpu.concatenate %38, %39 in 1 : vector<64x237xbf16>, vector<64x19xbf16> -> vector<64x256xbf16>
    %41 = vector.extract_strided_slice %19 {offsets = [0, 20], sizes = [64, 236], strides = [1, 1]} : vector<64x256xbf16> to vector<64x236xbf16>
    %42 = vector.extract_strided_slice %19 {offsets = [0, 0], sizes = [64, 20], strides = [1, 1]} : vector<64x256xbf16> to vector<64x20xbf16>
    %43 = tpu.concatenate %41, %42 in 1 : vector<64x236xbf16>, vector<64x20xbf16> -> vector<64x256xbf16>
    %44 = tpu.concatenate %19, %22, %25, %28, %31, %34, %37, %40, %43 in 0 : vector<64x256xbf16>, vector<64x256xbf16>, vector<64x256xbf16>, vector<64x256xbf16>, vector<64x256xbf16>, vector<64x256xbf16>, vector<64x256xbf16>, vector<64x256xbf16>, vector<64x256xbf16> -> vector<576x256xbf16>
    %c0_9 = arith.constant 0 : index
    %c0_10 = arith.constant 0 : index
    %45 = vector.load %arg4[%c0_9, %c0_10] : memref<128x576xbf16, #tpu.memory_space<vmem>>, vector<128x576xbf16>
    %cst_11 = arith.constant dense<0.000000e+00> : vector<128x256xf32>
    %46 = tpu.matmul %45, %44, %cst_11 {dimension_numbers = #tpu.dot_dimension_numbers<[1], [0], [0], [1], [0, 0, 1, 1], [], []>} : vector<128x576xbf16>, vector<576x256xbf16>, vector<128x256xf32> -> vector<128x256xf32>
    %47 = vector.extract_strided_slice %46 {offsets = [0, 0], sizes = [32, 256], strides = [1, 1]} : vector<128x256xf32> to vector<32x256xf32>
    %48 = vector.extract_strided_slice %46 {offsets = [32, 0], sizes = [32, 256], strides = [1, 1]} : vector<128x256xf32> to vector<32x256xf32>
    %49 = arith.maximumf %47, %48 : vector<32x256xf32>
    %50 = vector.extract_strided_slice %46 {offsets = [64, 0], sizes = [32, 256], strides = [1, 1]} : vector<128x256xf32> to vector<32x256xf32>
    %51 = vector.extract_strided_slice %46 {offsets = [96, 0], sizes = [32, 256], strides = [1, 1]} : vector<128x256xf32> to vector<32x256xf32>
    %52 = arith.maximumf %50, %51 : vector<32x256xf32>
    %53 = arith.maximumf %49, %52 : vector<32x256xf32>
    %c0_12 = arith.constant 0 : index
    %c0_13 = arith.constant 0 : index
    %54 = vector.load %arg5[%c0_12, %c0_13] : memref<32x1xf32, #tpu.memory_space<vmem>>, vector<32x1xf32>
    %55 = vector.broadcast %54 : vector<32x1xf32> to vector<32x256xf32>
    %56 = arith.addf %53, %55 : vector<32x256xf32>
    %cst_14 = arith.constant 0.000000e+00 : f32
    %57 = vector.broadcast %cst_14 : f32 to vector<32x256xf32>
    %58 = arith.maximumf %56, %57 : vector<32x256xf32>
    %59 = vector.extract_strided_slice %58 {offsets = [0, 0], sizes = [32, 128], strides = [1, 1]} : vector<32x256xf32> to vector<32x128xf32>
    %60 = vector.extract_strided_slice %59 {offsets = [0, 0], sizes = [1, 128], strides = [1, 1]} : vector<32x128xf32> to vector<1x128xf32>
    %61 = vector.extract_strided_slice %59 {offsets = [1, 0], sizes = [1, 128], strides = [1, 1]} : vector<32x128xf32> to vector<1x128xf32>
    %62 = vector.extract_strided_slice %59 {offsets = [2, 0], sizes = [1, 128], strides = [1, 1]} : vector<32x128xf32> to vector<1x128xf32>
    %63 = vector.extract_strided_slice %59 {offsets = [3, 0], sizes = [1, 128], strides = [1, 1]} : vector<32x128xf32> to vector<1x128xf32>
    %64 = vector.extract_strided_slice %59 {offsets = [4, 0], sizes = [1, 128], strides = [1, 1]} : vector<32x128xf32> to vector<1x128xf32>
    %65 = vector.extract_strided_slice %59 {offsets = [5, 0], sizes = [1, 128], strides = [1, 1]} : vector<32x128xf32> to vector<1x128xf32>
    %66 = vector.extract_strided_slice %59 {offsets = [6, 0], sizes = [1, 128], strides = [1, 1]} : vector<32x128xf32> to vector<1x128xf32>
    %67 = vector.extract_strided_slice %59 {offsets = [7, 0], sizes = [1, 128], strides = [1, 1]} : vector<32x128xf32> to vector<1x128xf32>
    %68 = vector.extract_strided_slice %59 {offsets = [8, 0], sizes = [1, 128], strides = [1, 1]} : vector<32x128xf32> to vector<1x128xf32>
    %69 = vector.extract_strided_slice %59 {offsets = [9, 0], sizes = [1, 128], strides = [1, 1]} : vector<32x128xf32> to vector<1x128xf32>
    %70 = vector.extract_strided_slice %59 {offsets = [10, 0], sizes = [1, 128], strides = [1, 1]} : vector<32x128xf32> to vector<1x128xf32>
    %71 = vector.extract_strided_slice %59 {offsets = [11, 0], sizes = [1, 128], strides = [1, 1]} : vector<32x128xf32> to vector<1x128xf32>
    %72 = vector.extract_strided_slice %59 {offsets = [12, 0], sizes = [1, 128], strides = [1, 1]} : vector<32x128xf32> to vector<1x128xf32>
    %73 = vector.extract_strided_slice %59 {offsets = [13, 0], sizes = [1, 128], strides = [1, 1]} : vector<32x128xf32> to vector<1x128xf32>
    %74 = vector.extract_strided_slice %59 {offsets = [14, 0], sizes = [1, 128], strides = [1, 1]} : vector<32x128xf32> to vector<1x128xf32>
    %75 = vector.extract_strided_slice %59 {offsets = [15, 0], sizes = [1, 128], strides = [1, 1]} : vector<32x128xf32> to vector<1x128xf32>
    %76 = vector.extract_strided_slice %59 {offsets = [16, 0], sizes = [1, 128], strides = [1, 1]} : vector<32x128xf32> to vector<1x128xf32>
    %77 = vector.extract_strided_slice %59 {offsets = [17, 0], sizes = [1, 128], strides = [1, 1]} : vector<32x128xf32> to vector<1x128xf32>
    %78 = vector.extract_strided_slice %59 {offsets = [18, 0], sizes = [1, 128], strides = [1, 1]} : vector<32x128xf32> to vector<1x128xf32>
    %79 = vector.extract_strided_slice %59 {offsets = [19, 0], sizes = [1, 128], strides = [1, 1]} : vector<32x128xf32> to vector<1x128xf32>
    %80 = vector.extract_strided_slice %59 {offsets = [20, 0], sizes = [1, 128], strides = [1, 1]} : vector<32x128xf32> to vector<1x128xf32>
    %81 = vector.extract_strided_slice %59 {offsets = [21, 0], sizes = [1, 128], strides = [1, 1]} : vector<32x128xf32> to vector<1x128xf32>
    %82 = vector.extract_strided_slice %59 {offsets = [22, 0], sizes = [1, 128], strides = [1, 1]} : vector<32x128xf32> to vector<1x128xf32>
    %83 = vector.extract_strided_slice %59 {offsets = [23, 0], sizes = [1, 128], strides = [1, 1]} : vector<32x128xf32> to vector<1x128xf32>
    %84 = vector.extract_strided_slice %59 {offsets = [24, 0], sizes = [1, 128], strides = [1, 1]} : vector<32x128xf32> to vector<1x128xf32>
    %85 = vector.extract_strided_slice %59 {offsets = [25, 0], sizes = [1, 128], strides = [1, 1]} : vector<32x128xf32> to vector<1x128xf32>
    %86 = vector.extract_strided_slice %59 {offsets = [26, 0], sizes = [1, 128], strides = [1, 1]} : vector<32x128xf32> to vector<1x128xf32>
    %87 = vector.extract_strided_slice %59 {offsets = [27, 0], sizes = [1, 128], strides = [1, 1]} : vector<32x128xf32> to vector<1x128xf32>
    %88 = vector.extract_strided_slice %59 {offsets = [28, 0], sizes = [1, 128], strides = [1, 1]} : vector<32x128xf32> to vector<1x128xf32>
    %89 = vector.extract_strided_slice %59 {offsets = [29, 0], sizes = [1, 128], strides = [1, 1]} : vector<32x128xf32> to vector<1x128xf32>
    %90 = vector.extract_strided_slice %59 {offsets = [30, 0], sizes = [1, 128], strides = [1, 1]} : vector<32x128xf32> to vector<1x128xf32>
    %91 = vector.extract_strided_slice %59 {offsets = [31, 0], sizes = [1, 128], strides = [1, 1]} : vector<32x128xf32> to vector<1x128xf32>
    %92 = tpu.concatenate %60, %61, %62, %63, %64, %65, %66, %67, %68, %69, %70, %71, %72, %73, %74, %75 in 1 : vector<1x128xf32>, vector<1x128xf32>, vector<1x128xf32>, vector<1x128xf32>, vector<1x128xf32>, vector<1x128xf32>, vector<1x128xf32>, vector<1x128xf32>, vector<1x128xf32>, vector<1x128xf32>, vector<1x128xf32>, vector<1x128xf32>, vector<1x128xf32>, vector<1x128xf32>, vector<1x128xf32>, vector<1x128xf32> -> vector<1x2048xf32>
    %93 = tpu.concatenate %76, %77, %78, %79, %80, %81, %82, %83, %84, %85, %86, %87, %88, %89, %90, %91 in 1 : vector<1x128xf32>, vector<1x128xf32>, vector<1x128xf32>, vector<1x128xf32>, vector<1x128xf32>, vector<1x128xf32>, vector<1x128xf32>, vector<1x128xf32>, vector<1x128xf32>, vector<1x128xf32>, vector<1x128xf32>, vector<1x128xf32>, vector<1x128xf32>, vector<1x128xf32>, vector<1x128xf32>, vector<1x128xf32> -> vector<1x2048xf32>
    %94 = tpu.concatenate %92, %93 in 1 : vector<1x2048xf32>, vector<1x2048xf32> -> vector<1x4096xf32>
    %95 = vector.extract_strided_slice %58 {offsets = [0, 128], sizes = [32, 128], strides = [1, 1]} : vector<32x256xf32> to vector<32x128xf32>
    %96 = vector.extract_strided_slice %95 {offsets = [0, 0], sizes = [1, 128], strides = [1, 1]} : vector<32x128xf32> to vector<1x128xf32>
    %97 = vector.extract_strided_slice %95 {offsets = [1, 0], sizes = [1, 128], strides = [1, 1]} : vector<32x128xf32> to vector<1x128xf32>
    %98 = vector.extract_strided_slice %95 {offsets = [2, 0], sizes = [1, 128], strides = [1, 1]} : vector<32x128xf32> to vector<1x128xf32>
    %99 = vector.extract_strided_slice %95 {offsets = [3, 0], sizes = [1, 128], strides = [1, 1]} : vector<32x128xf32> to vector<1x128xf32>
    %100 = vector.extract_strided_slice %95 {offsets = [4, 0], sizes = [1, 128], strides = [1, 1]} : vector<32x128xf32> to vector<1x128xf32>
    %101 = vector.extract_strided_slice %95 {offsets = [5, 0], sizes = [1, 128], strides = [1, 1]} : vector<32x128xf32> to vector<1x128xf32>
    %102 = vector.extract_strided_slice %95 {offsets = [6, 0], sizes = [1, 128], strides = [1, 1]} : vector<32x128xf32> to vector<1x128xf32>
    %103 = vector.extract_strided_slice %95 {offsets = [7, 0], sizes = [1, 128], strides = [1, 1]} : vector<32x128xf32> to vector<1x128xf32>
    %104 = vector.extract_strided_slice %95 {offsets = [8, 0], sizes = [1, 128], strides = [1, 1]} : vector<32x128xf32> to vector<1x128xf32>
    %105 = vector.extract_strided_slice %95 {offsets = [9, 0], sizes = [1, 128], strides = [1, 1]} : vector<32x128xf32> to vector<1x128xf32>
    %106 = vector.extract_strided_slice %95 {offsets = [10, 0], sizes = [1, 128], strides = [1, 1]} : vector<32x128xf32> to vector<1x128xf32>
    %107 = vector.extract_strided_slice %95 {offsets = [11, 0], sizes = [1, 128], strides = [1, 1]} : vector<32x128xf32> to vector<1x128xf32>
    %108 = vector.extract_strided_slice %95 {offsets = [12, 0], sizes = [1, 128], strides = [1, 1]} : vector<32x128xf32> to vector<1x128xf32>
    %109 = vector.extract_strided_slice %95 {offsets = [13, 0], sizes = [1, 128], strides = [1, 1]} : vector<32x128xf32> to vector<1x128xf32>
    %110 = vector.extract_strided_slice %95 {offsets = [14, 0], sizes = [1, 128], strides = [1, 1]} : vector<32x128xf32> to vector<1x128xf32>
    %111 = vector.extract_strided_slice %95 {offsets = [15, 0], sizes = [1, 128], strides = [1, 1]} : vector<32x128xf32> to vector<1x128xf32>
    %112 = vector.extract_strided_slice %95 {offsets = [16, 0], sizes = [1, 128], strides = [1, 1]} : vector<32x128xf32> to vector<1x128xf32>
    %113 = vector.extract_strided_slice %95 {offsets = [17, 0], sizes = [1, 128], strides = [1, 1]} : vector<32x128xf32> to vector<1x128xf32>
    %114 = vector.extract_strided_slice %95 {offsets = [18, 0], sizes = [1, 128], strides = [1, 1]} : vector<32x128xf32> to vector<1x128xf32>
    %115 = vector.extract_strided_slice %95 {offsets = [19, 0], sizes = [1, 128], strides = [1, 1]} : vector<32x128xf32> to vector<1x128xf32>
    %116 = vector.extract_strided_slice %95 {offsets = [20, 0], sizes = [1, 128], strides = [1, 1]} : vector<32x128xf32> to vector<1x128xf32>
    %117 = vector.extract_strided_slice %95 {offsets = [21, 0], sizes = [1, 128], strides = [1, 1]} : vector<32x128xf32> to vector<1x128xf32>
    %118 = vector.extract_strided_slice %95 {offsets = [22, 0], sizes = [1, 128], strides = [1, 1]} : vector<32x128xf32> to vector<1x128xf32>
    %119 = vector.extract_strided_slice %95 {offsets = [23, 0], sizes = [1, 128], strides = [1, 1]} : vector<32x128xf32> to vector<1x128xf32>
    %120 = vector.extract_strided_slice %95 {offsets = [24, 0], sizes = [1, 128], strides = [1, 1]} : vector<32x128xf32> to vector<1x128xf32>
    %121 = vector.extract_strided_slice %95 {offsets = [25, 0], sizes = [1, 128], strides = [1, 1]} : vector<32x128xf32> to vector<1x128xf32>
    %122 = vector.extract_strided_slice %95 {offsets = [26, 0], sizes = [1, 128], strides = [1, 1]} : vector<32x128xf32> to vector<1x128xf32>
    %123 = vector.extract_strided_slice %95 {offsets = [27, 0], sizes = [1, 128], strides = [1, 1]} : vector<32x128xf32> to vector<1x128xf32>
    %124 = vector.extract_strided_slice %95 {offsets = [28, 0], sizes = [1, 128], strides = [1, 1]} : vector<32x128xf32> to vector<1x128xf32>
    %125 = vector.extract_strided_slice %95 {offsets = [29, 0], sizes = [1, 128], strides = [1, 1]} : vector<32x128xf32> to vector<1x128xf32>
    %126 = vector.extract_strided_slice %95 {offsets = [30, 0], sizes = [1, 128], strides = [1, 1]} : vector<32x128xf32> to vector<1x128xf32>
    %127 = vector.extract_strided_slice %95 {offsets = [31, 0], sizes = [1, 128], strides = [1, 1]} : vector<32x128xf32> to vector<1x128xf32>
    %128 = tpu.concatenate %96, %97, %98, %99, %100, %101, %102, %103, %104, %105, %106, %107, %108, %109, %110, %111 in 1 : vector<1x128xf32>, vector<1x128xf32>, vector<1x128xf32>, vector<1x128xf32>, vector<1x128xf32>, vector<1x128xf32>, vector<1x128xf32>, vector<1x128xf32>, vector<1x128xf32>, vector<1x128xf32>, vector<1x128xf32>, vector<1x128xf32>, vector<1x128xf32>, vector<1x128xf32>, vector<1x128xf32>, vector<1x128xf32> -> vector<1x2048xf32>
    %129 = tpu.concatenate %112, %113, %114, %115, %116, %117, %118, %119, %120, %121, %122, %123, %124, %125, %126, %127 in 1 : vector<1x128xf32>, vector<1x128xf32>, vector<1x128xf32>, vector<1x128xf32>, vector<1x128xf32>, vector<1x128xf32>, vector<1x128xf32>, vector<1x128xf32>, vector<1x128xf32>, vector<1x128xf32>, vector<1x128xf32>, vector<1x128xf32>, vector<1x128xf32>, vector<1x128xf32>, vector<1x128xf32>, vector<1x128xf32> -> vector<1x2048xf32>
    %130 = tpu.concatenate %128, %129 in 1 : vector<1x2048xf32>, vector<1x2048xf32> -> vector<1x4096xf32>
    %131 = tpu.concatenate %94, %130 in 0 : vector<1x4096xf32>, vector<1x4096xf32> -> vector<2x4096xf32>
    %132 = arith.truncf %131 : vector<2x4096xf32> to vector<2x4096xbf16>
    %c0_15 = arith.constant 0 : index
    %c0_16 = arith.constant 0 : index
    %133 = vector.load %arg6[%c0_15, %c0_16] : memref<4096x128xbf16, #tpu.memory_space<vmem>>, vector<4096x128xbf16>
    %cst_17 = arith.constant dense<0.000000e+00> : vector<2x128xf32>
    %134 = tpu.matmul %132, %133, %cst_17 {dimension_numbers = #tpu.dot_dimension_numbers<[1], [0], [0], [1], [0, 0, 1, 1], [], []>} : vector<2x4096xbf16>, vector<4096x128xbf16>, vector<2x128xf32> -> vector<2x128xf32>
    %c0_18 = arith.constant 0 : index
    %c0_19 = arith.constant 0 : index
    %135 = vector.load %arg7[%c0_18, %c0_19] : memref<1x128xf32, #tpu.memory_space<vmem>>, vector<1x128xf32>
    %136 = vector.broadcast %135 : vector<1x128xf32> to vector<2x128xf32>
    %137 = arith.addf %134, %136 : vector<2x128xf32>
    %c0_20 = arith.constant 0 : index
    %c0_21 = arith.constant 0 : index
    %138 = vector.load %arg9[%c0_20, %c0_21] : memref<2x128xf32, #tpu.memory_space<vmem>>, vector<2x128xf32>
    tpu.vector_store %arg9[%c0_20, %c0_21], %137 {strides = array<i32>} : memref<2x128xf32, #tpu.memory_space<vmem>>, vector<2x128xf32>,
    return
  }
  func.func @transform_0(%arg0: i32) -> (i32, i32, i32) {
    %c0_i32 = arith.constant 0 : i32
    %c0_i32_0 = arith.constant 0 : i32
    %c0_i32_1 = arith.constant 0 : i32
    return %arg0, %c0_i32, %c0_i32_0 : i32, i32, i32
  }
  func.func @transform_1(%arg0: i32) -> (i32, i32) {
    %c0_i32 = arith.constant 0 : i32
    %c0_i32_0 = arith.constant 0 : i32
    %c0_i32_1 = arith.constant 0 : i32
    return %c0_i32, %c0_i32_0 : i32, i32
  }
  func.func @transform_2(%arg0: i32) -> (i32, i32) {
    %c0_i32 = arith.constant 0 : i32
    %c0_i32_0 = arith.constant 0 : i32
    %c0_i32_1 = arith.constant 0 : i32
    return %c0_i32, %c0_i32_0 : i32, i32
  }
  func.func @transform_3(%arg0: i32) -> (i32, i32) {
    %c0_i32 = arith.constant 0 : i32
    %c0_i32_0 = arith.constant 0 : i32
    %c0_i32_1 = arith.constant 0 : i32
    return %c0_i32, %c0_i32_0 : i32, i32
  }
  func.func @transform_4(%arg0: i32) -> (i32, i32) {
    %c0_i32 = arith.constant 0 : i32
    %c0_i32_0 = arith.constant 0 : i32
    %c0_i32_1 = arith.constant 0 : i32
    return %c0_i32, %c0_i32_0 : i32, i32
  }
  func.func @transform_5(%arg0: i32) -> (i32, i32) {
    %c0_i32 = arith.constant 0 : i32
    %c0_i32_0 = arith.constant 0 : i32
    %c0_i32_1 = arith.constant 0 : i32
    return %c0_i32, %c0_i32_0 : i32, i32
  }
  func.func @transform_6(%arg0: i32) -> (i32, i32) {
    %c0_i32 = arith.constant 0 : i32
    %c0_i32_0 = arith.constant 0 : i32
    %c0_i32_1 = arith.constant 0 : i32
    return %c0_i32, %c0_i32_0 : i32, i32
  }
  func.func @transform_7(%arg0: i32) -> (i32, i32) {
    %c0_i32 = arith.constant 0 : i32
    %c0_i32_0 = arith.constant 0 : i32
    %c0_i32_1 = arith.constant 0 : i32
    return %c0_i32, %c0_i32_0 : i32, i32
  }
  func.func @transform_8(%arg0: i32) -> (i32, i32) {
    %c0_i32 = arith.constant 0 : i32
    %c0_i32_0 = arith.constant 0 : i32
    return %arg0, %c0_i32 : i32, i32
  }
}

</mosaic_0001>

<llo_original>
// kernel: tile.8
$region0: #{tile.8}
  #allocation0 [shape = 's32[1]{0}', space=sflag, size = 0x4, scoped, tag = 'scoped memory for tile.8']
  %s0 = inlined_call_operand.vmem [shape: f32[16], index: 0, kind: input, shape index: {}]
  %s1 = inlined_call_operand.vmem [shape: f32[4,16], index: 1, kind: output, shape index: {}]
  // Predicated region
  $region2: #{tile.8} parent=0 // pred_check
    _
  $region3: #{tile.8} parent=0 // pred_check_branch
    %3 = sbr.rel (0) target = $region5
  $region4: #{tile.8} parent=0 // pred_region
    _
  $region5: #{tile.8} parent=0 // pred_fallthru
    _
  %v4 = vld [vmem:[%s0] ss:$0 sm:$0xff]
  %5 = vst [vmem:[%s1] sm:$0xf] %v4

// kernel: tile.0
$region0: #{tile.0}
  %s0 = inlined_call_operand.vmem [shape: f32[4,16], index: 0, kind: input, shape index: {}]
  %s1 = inlined_call_operand.vmem [shape: f32[64,1], index: 1, kind: output, shape index: {}]
  $region1: #{tile.0} parent=0
    #allocation0 [shape = 'u8[4096]{0}', space=vmem, size = 0x1000, scoped, tag = 'scoped mem for input reshape']
    %s3 = ssub.s32 16, 1
    %v4 = vld [vmem:[%s0] sm:%s3]
    %5 = vst [vmem:[#allocation0] sm:%s3] %v4
    %v6 = vld [vmem:[#allocation0] sm:$0xf]
    %vm7 = vcmask 7168
    %8 = vst.msk [vmem:[%s1] ss:$16 sm:$0x3] %vm7, %v6
    %9 = vst.msk [vmem:[%s1] ss:$16 sm:$0xc] %vm7, %v6
    %v10 = vld [vmem:[#allocation0] sm:$0xf]
    %11 = vrot.lane.b32.xlu0 %v10, 127
    %v12 = vpop.permute.xlu0 %11
    %vm13 = vcmask 7168
    %s14 = scalar_lea.vmem %s1, 1
    %15 = vst.msk [vmem:[%s14] ss:$16 sm:$0x3] %vm13, %v12
    %s16 = scalar_lea.vmem %s1, 1
    %17 = vst.msk [vmem:[%s16] ss:$16 sm:$0xc] %vm13, %v12
    %v18 = vld [vmem:[#allocation0] sm:$0xf]
    %19 = vrot.lane.b32.xlu0 %v18, 126
    %v20 = vpop.permute.xlu0 %19
    %vm21 = vcmask 7168
    %s22 = scalar_lea.vmem %s1, 2
    %23 = vst.msk [vmem:[%s22] ss:$16 sm:$0x3] %vm21, %v20
    %s24 = scalar_lea.vmem %s1, 2
    %25 = vst.msk [vmem:[%s24] ss:$16 sm:$0xc] %vm21, %v20
    %v26 = vld [vmem:[#allocation0] sm:$0xf]
    %27 = vrot.lane.b32.xlu0 %v26, 125
    %v28 = vpop.permute.xlu0 %27
    %vm29 = vcmask 7168
    %s30 = scalar_lea.vmem %s1, 3
    %31 = vst.msk [vmem:[%s30] ss:$16 sm:$0x3] %vm29, %v28
    %s32 = scalar_lea.vmem %s1, 3
    %33 = vst.msk [vmem:[%s32] ss:$16 sm:$0xc] %vm29, %v28
    %v34 = vld [vmem:[#allocation0] sm:$0xf]
    %35 = vrot.lane.b32.xlu0 %v34, 124
    %v36 = vpop.permute.xlu0 %35
    %vm37 = vcmask 7168
    %s38 = scalar_lea.vmem %s1, 4
    %39 = vst.msk [vmem:[%s38] ss:$16 sm:$0x3] %vm37, %v36
    %s40 = scalar_lea.vmem %s1, 4
    %41 = vst.msk [vmem:[%s40] ss:$16 sm:$0xc] %vm37, %v36
    %v42 = vld [vmem:[#allocation0] sm:$0xf]
    %43 = vrot.lane.b32.xlu0 %v42, 123
    %v44 = vpop.permute.xlu0 %43
    %vm45 = vcmask 7168
    %s46 = scalar_lea.vmem %s1, 5
    %47 = vst.msk [vmem:[%s46] ss:$16 sm:$0x3] %vm45, %v44
    %s48 = scalar_lea.vmem %s1, 5
    %49 = vst.msk [vmem:[%s48] ss:$16 sm:$0xc] %vm45, %v44
    %v50 = vld [vmem:[#allocation0] sm:$0xf]
    %51 = vrot.lane.b32.xlu0 %v50, 122
    %v52 = vpop.permute.xlu0 %51
    %vm53 = vcmask 7168
    %s54 = scalar_lea.vmem %s1, 6
    %55 = vst.msk [vmem:[%s54] ss:$16 sm:$0x3] %vm53, %v52
    %s56 = scalar_lea.vmem %s1, 6
    %57 = vst.msk [vmem:[%s56] ss:$16 sm:$0xc] %vm53, %v52
    %v58 = vld [vmem:[#allocation0] sm:$0xf]
    %59 = vrot.lane.b32.xlu0 %v58, 121
    %v60 = vpop.permute.xlu0 %59
    %vm61 = vcmask 7168
    %s62 = scalar_lea.vmem %s1, 7
    %63 = vst.msk [vmem:[%s62] ss:$16 sm:$0x3] %vm61, %v60
    %s64 = scalar_lea.vmem %s1, 7
    %65 = vst.msk [vmem:[%s64] ss:$16 sm:$0xc] %vm61, %v60
    %v66 = vld [vmem:[#allocation0] sm:$0xf]
    %67 = vrot.lane.b32.xlu0 %v66, 120
    %v68 = vpop.permute.xlu0 %67
    %vm69 = vcmask 7168
    %s70 = scalar_lea.vmem %s1, 8
    %71 = vst.msk [vmem:[%s70] ss:$16 sm:$0x3] %vm69, %v68
    %s72 = scalar_lea.vmem %s1, 8
    %73 = vst.msk [vmem:[%s72] ss:$16 sm:$0xc] %vm69, %v68
    %v74 = vld [vmem:[#allocation0] sm:$0xf]
    %75 = vrot.lane.b32.xlu0 %v74, 119
    %v76 = vpop.permute.xlu0 %75
    %vm77 = vcmask 7168
    %s78 = scalar_lea.vmem %s1, 9
    %79 = vst.msk [vmem:[%s78] ss:$16 sm:$0x3] %vm77, %v76
    %s80 = scalar_lea.vmem %s1, 9
    %81 = vst.msk [vmem:[%s80] ss:$16 sm:$0xc] %vm77, %v76
    %v82 = vld [vmem:[#allocation0] sm:$0xf]
    %83 = vrot.lane.b32.xlu0 %v82, 118
    %v84 = vpop.permute.xlu0 %83
    %vm85 = vcmask 7168
    %s86 = scalar_lea.vmem %s1, 10
    %87 = vst.msk [vmem:[%s86] ss:$16 sm:$0x3] %vm85, %v84
    %s88 = scalar_lea.vmem %s1, 10
    %89 = vst.msk [vmem:[%s88] ss:$16 sm:$0xc] %vm85, %v84
    %v90 = vld [vmem:[#allocation0] sm:$0xf]
    %91 = vrot.lane.b32.xlu0 %v90, 117
    %v92 = vpop.permute.xlu0 %91
    %vm93 = vcmask 7168
    %s94 = scalar_lea.vmem %s1, 11
    %95 = vst.msk [vmem:[%s94] ss:$16 sm:$0x3] %vm93, %v92
    %s96 = scalar_lea.vmem %s1, 11
    %97 = vst.msk [vmem:[%s96] ss:$16 sm:$0xc] %vm93, %v92
    %v98 = vld [vmem:[#allocation0] sm:$0xf]
    %99 = vrot.lane.b32.xlu0 %v98, 116
    %v100 = vpop.permute.xlu0 %99
    %vm101 = vcmask 7168
    %s102 = scalar_lea.vmem %s1, 12
    %103 = vst.msk [vmem:[%s102] ss:$16 sm:$0x3] %vm101, %v100
    %s104 = scalar_lea.vmem %s1, 12
    %105 = vst.msk [vmem:[%s104] ss:$16 sm:$0xc] %vm101, %v100
    %v106 = vld [vmem:[#allocation0] sm:$0xf]
    %107 = vrot.lane.b32.xlu0 %v106, 115
    %v108 = vpop.permute.xlu0 %107
    %vm109 = vcmask 7168
    %s110 = scalar_lea.vmem %s1, 13
    %111 = vst.msk [vmem:[%s110] ss:$16 sm:$0x3] %vm109, %v108
    %s112 = scalar_lea.vmem %s1, 13
    %113 = vst.msk [vmem:[%s112] ss:$16 sm:$0xc] %vm109, %v108
    %v114 = vld [vmem:[#allocation0] sm:$0xf]
    %115 = vrot.lane.b32.xlu0 %v114, 114
    %v116 = vpop.permute.xlu0 %115
    %vm117 = vcmask 7168
    %s118 = scalar_lea.vmem %s1, 14
    %119 = vst.msk [vmem:[%s118] ss:$16 sm:$0x3] %vm117, %v116
    %s120 = scalar_lea.vmem %s1, 14
    %121 = vst.msk [vmem:[%s120] ss:$16 sm:$0xc] %vm117, %v116
    %v122 = vld [vmem:[#allocation0] sm:$0xf]
    %123 = vrot.lane.b32.xlu0 %v122, 113
    %v124 = vpop.permute.xlu0 %123
    %vm125 = vcmask 7168
    %s126 = scalar_lea.vmem %s1, 15
    %127 = vst.msk [vmem:[%s126] ss:$16 sm:$0x3] %vm125, %v124
    %s128 = scalar_lea.vmem %s1, 15
    %129 = vst.msk [vmem:[%s128] ss:$16 sm:$0xc] %vm125, %v124

// kernel: convnet_forward.1
$region0: #{convnet_forward.1}
  #allocation0 [shape = 'u32[]', space=smem, size = 0x4, offset = 0x4, fixed_abs, tag = 'smem constant byte address 0x4 - core index']
  #allocation1 [shape = 'u32[72,128]{1,0:T(1,128)}', space=vmem, size = 0x9000, scoped, tag = 'internal scratch']
  %s0 = inlined_call_operand.vmem [shape: bf16[1,64,256], index: 0, kind: input, shape index: {}]
  %s1 = inlined_call_operand.vmem [shape: bf16[256,64], index: 1, kind: input, shape index: {}]
  %s2 = inlined_call_operand.vmem [shape: f32[64,1], index: 2, kind: input, shape index: {}]
  %s3 = inlined_call_operand.vmem [shape: bf16[128,576], index: 3, kind: input, shape index: {}]
  %s4 = inlined_call_operand.vmem [shape: f32[32,1], index: 4, kind: input, shape index: {}]
  %s5 = inlined_call_operand.vmem [shape: bf16[4096,128], index: 5, kind: input, shape index: {}]
  %s6 = inlined_call_operand.vmem [shape: f32[1,128], index: 6, kind: input, shape index: {}]
  %s7 = inlined_call_operand.vmem [shape: f32[1,256], index: 7, kind: input, shape index: {}]
  %s8 = inlined_call_operand.hbm [shape: f32[2,128], index: 8, kind: output, shape index: {}]
  %s9 = sld [smem:[#allocation0]]
  $region42: #{convnet_forward.1} parent=0
    _
  %s11 = ssub.s32 1, %s9
  %s12 = scalar_select 0, %s11, %s9
  $region1: #{convnet_forward.1} parent=0
    #allocation2 [shape = 'u8[1024]{0}', space=vmem, size = 0x400, scoped, tag = 'output window, operand 0, single buffered']
    #allocation3 [shape = 's32[1]{0}', space=sflag, size = 0x4, scoped, tag = 'scoped memory for convnet_forward.1']
    %13 = vsyncpa [#allocation3], 0
    // Predicated region
    $region2: #{convnet_forward.1} parent=1 // pred_check
      _
    $region3: #{convnet_forward.1} parent=1 // pred_check_branch
      %15 = sbr.rel (0) target = $region5
    $region4: #{convnet_forward.1} parent=1 // pred_region
      _
    $region5: #{convnet_forward.1} parent=1 // pred_fallthru
      _
    // Predicated region
    $region6: #{convnet_forward.1} parent=1 // pred_check
      _
    $region7: #{convnet_forward.1} parent=1 // pred_check_branch
      %17 = sbr.rel (0) target = $region9
    $region8: #{convnet_forward.1} parent=1 // pred_region
      _
    $region9: #{convnet_forward.1} parent=1 // pred_fallthru
      _
    // Predicated region
    $region10: #{convnet_forward.1} parent=1 // pred_check
      _
    $region11: #{convnet_forward.1} parent=1 // pred_check_branch
      %19 = sbr.rel (0) target = $region13
    $region12: #{convnet_forward.1} parent=1 // pred_region
      _
    $region13: #{convnet_forward.1} parent=1 // pred_fallthru
      _
    // Predicated region
    $region14: #{convnet_forward.1} parent=1 // pred_check
      _
    $region15: #{convnet_forward.1} parent=1 // pred_check_branch
      %21 = sbr.rel (0) target = $region17
    $region16: #{convnet_forward.1} parent=1 // pred_region
      _
    $region17: #{convnet_forward.1} parent=1 // pred_fallthru
      _
    // Predicated region
    $region18: #{convnet_forward.1} parent=1 // pred_check
      _
    $region19: #{convnet_forward.1} parent=1 // pred_check_branch
      %23 = sbr.rel (0) target = $region21
    $region20: #{convnet_forward.1} parent=1 // pred_region
      _
    $region21: #{convnet_forward.1} parent=1 // pred_fallthru
      _
    // Predicated region
    $region22: #{convnet_forward.1} parent=1 // pred_check
      _
    $region23: #{convnet_forward.1} parent=1 // pred_check_branch
      %25 = sbr.rel (0) target = $region25
    $region24: #{convnet_forward.1} parent=1 // pred_region
      _
    $region25: #{convnet_forward.1} parent=1 // pred_fallthru
      _
    // Predicated region
    $region26: #{convnet_forward.1} parent=1 // pred_check
      _
    $region27: #{convnet_forward.1} parent=1 // pred_check_branch
      %27 = sbr.rel (0) target = $region29
    $region28: #{convnet_forward.1} parent=1 // pred_region
      _
    $region29: #{convnet_forward.1} parent=1 // pred_fallthru
      _
    // Predicated region
    $region30: #{convnet_forward.1} parent=1 // pred_check
      _
    $region31: #{convnet_forward.1} parent=1 // pred_check_branch
      %29 = sbr.rel (0) target = $region33
    $region32: #{convnet_forward.1} parent=1 // pred_region
      _
    $region33: #{convnet_forward.1} parent=1 // pred_fallthru
      _
    %v31 = vld [vmem:[%s0] sm:$0xff]
    %v32 = vld [vmem:[%s0 + $0x8] sm:$0xff]
    %v33 = vld [vmem:[%s0 + $0x10] sm:$0xff]
    %v34 = vld [vmem:[%s0 + $0x18] sm:$0xff]
    %v35 = vld [vmem:[%s0 + $0x20] sm:$0xff]
    %v36 = vld [vmem:[%s0 + $0x28] sm:$0xff]
    %v37 = vld [vmem:[%s0 + $0x30] sm:$0xff]
    %v38 = vld [vmem:[%s0 + $0x38] sm:$0xff]
    %v39 = vld [vmem:[%s1] sm:$0xf]
    %v40 = vld [vmem:[%s1 + $0x4] sm:$0xf]
    %v41 = vld [vmem:[%s1 + $0x8] sm:$0xf]
    %v42 = vld [vmem:[%s1 + $0xc] sm:$0xf]
    %v43 = vld [vmem:[%s1 + $0x10] sm:$0xf]
    %v44 = vld [vmem:[%s1 + $0x14] sm:$0xf]
    %v45 = vld [vmem:[%s1 + $0x18] sm:$0xf]
    %v46 = vld [vmem:[%s1 + $0x1c] sm:$0xf]
    %v47 = vld [vmem:[%s1 + $0x20] sm:$0xf]
    %v48 = vld [vmem:[%s1 + $0x24] sm:$0xf]
    %v49 = vld [vmem:[%s1 + $0x28] sm:$0xf]
    %v50 = vld [vmem:[%s1 + $0x2c] sm:$0xf]
    %v51 = vld [vmem:[%s1 + $0x30] sm:$0xf]
    %v52 = vld [vmem:[%s1 + $0x34] sm:$0xf]
    %v53 = vld [vmem:[%s1 + $0x38] sm:$0xf]
    %v54 = vld [vmem:[%s1 + $0x3c] sm:$0xf]
    %v55 = vld [vmem:[%s1 + $0x40] sm:$0xf]
    %v56 = vld [vmem:[%s1 + $0x44] sm:$0xf]
    %v57 = vld [vmem:[%s1 + $0x48] sm:$0xf]
    %v58 = vld [vmem:[%s1 + $0x4c] sm:$0xf]
    %v59 = vld [vmem:[%s1 + $0x50] sm:$0xf]
    %v60 = vld [vmem:[%s1 + $0x54] sm:$0xf]
    %v61 = vld [vmem:[%s1 + $0x58] sm:$0xf]
    %v62 = vld [vmem:[%s1 + $0x5c] sm:$0xf]
    %v63 = vld [vmem:[%s1 + $0x60] sm:$0xf]
    %v64 = vld [vmem:[%s1 + $0x64] sm:$0xf]
    %v65 = vld [vmem:[%s1 + $0x68] sm:$0xf]
    %v66 = vld [vmem:[%s1 + $0x6c] sm:$0xf]
    %v67 = vld [vmem:[%s1 + $0x70] sm:$0xf]
    %v68 = vld [vmem:[%s1 + $0x74] sm:$0xf]
    %v69 = vld [vmem:[%s1 + $0x78] sm:$0xf]
    %v70 = vld [vmem:[%s1 + $0x7c] sm:$0xf]
    %v103 = vunpack.c.l.b16 %v39
    %v104 = vunpack.c.l.b16 %v40
    %v105 = vunpack.c.l.b16 %v41
    %v106 = vunpack.c.l.b16 %v42
    %v107 = vunpack.c.l.b16 %v43
    %v108 = vunpack.c.l.b16 %v44
    %v109 = vunpack.c.l.b16 %v45
    %v110 = vunpack.c.l.b16 %v46
    %v111 = vunpack.c.l.b16 %v47
    %v112 = vunpack.c.l.b16 %v48
    %v113 = vunpack.c.l.b16 %v49
    %v114 = vunpack.c.l.b16 %v50
    %v115 = vunpack.c.l.b16 %v51
    %v116 = vunpack.c.l.b16 %v52
    %v117 = vunpack.c.l.b16 %v53
    %v118 = vunpack.c.l.b16 %v54
    %v119 = vunpack.c.l.b16 %v55
    %v120 = vunpack.c.l.b16 %v56
    %v121 = vunpack.c.l.b16 %v57
    %v122 = vunpack.c.l.b16 %v58
    %v123 = vunpack.c.l.b16 %v59
    %v124 = vunpack.c.l.b16 %v60
    %v125 = vunpack.c.l.b16 %v61
    %v126 = vunpack.c.l.b16 %v62
    %v127 = vunpack.c.l.b16 %v63
    %v128 = vunpack.c.l.b16 %v64
    %v129 = vunpack.c.l.b16 %v65
    %v130 = vunpack.c.l.b16 %v66
    %v131 = vunpack.c.l.b16 %v67
    %v132 = vunpack.c.l.b16 %v68
    %v133 = vunpack.c.l.b16 %v69
    %v134 = vunpack.c.l.b16 %v70
    %v135 = vpack.c.b16 %v104, %v103
    %v136 = vpack.c.b16 %v106, %v105
    %v137 = vpack.c.b16 %v108, %v107
    %v138 = vpack.c.b16 %v110, %v109
    %v139 = vpack.c.b16 %v112, %v111
    %v140 = vpack.c.b16 %v114, %v113
    %v141 = vpack.c.b16 %v116, %v115
    %v142 = vpack.c.b16 %v118, %v117
    %v143 = vpack.c.b16 %v120, %v119
    %v144 = vpack.c.b16 %v122, %v121
    %v145 = vpack.c.b16 %v124, %v123
    %v146 = vpack.c.b16 %v126, %v125
    %v147 = vpack.c.b16 %v128, %v127
    %v148 = vpack.c.b16 %v130, %v129
    %v149 = vpack.c.b16 %v132, %v131
    %v150 = vpack.c.b16 %v134, %v133
    %v159 = vunpack.c.l.b16 %v31
    %v160 = vunpack.c.h.b16 %v31
    %v161 = vunpack.c.l.b16 %v32
    %v162 = vunpack.c.h.b16 %v32
    %v163 = vunpack.c.l.b16 %v33
    %v164 = vunpack.c.h.b16 %v33
    %v165 = vunpack.c.l.b16 %v34
    %v166 = vunpack.c.h.b16 %v34
    %v167 = vunpack.c.l.b16 %v35
    %v168 = vunpack.c.h.b16 %v35
    %v169 = vunpack.c.l.b16 %v36
    %v170 = vunpack.c.h.b16 %v36
    %v171 = vunpack.c.l.b16 %v37
    %v172 = vunpack.c.h.b16 %v37
    %v173 = vunpack.c.l.b16 %v38
    %v174 = vunpack.c.h.b16 %v38
    %v175 = vpack.c.b16 %v161, %v159
    %v176 = vpack.c.b16 %v162, %v160
    %v177 = vpack.c.b16 %v165, %v163
    %v178 = vpack.c.b16 %v166, %v164
    %v179 = vpack.c.b16 %v169, %v167
    %v180 = vpack.c.b16 %v170, %v168
    %v181 = vpack.c.b16 %v173, %v171
    %v182 = vpack.c.b16 %v174, %v172
    %vm191 = vcmask 523264
    %v193 = vsel %vm191, %v135, 0
    %v196 = vsel %vm191, %v136, 0
    %v199 = vsel %vm191, %v137, 0
    %v202 = vsel %vm191, %v138, 0
    %v205 = vsel %vm191, %v139, 0
    %v208 = vsel %vm191, %v140, 0
    %v211 = vsel %vm191, %v141, 0
    %v214 = vsel %vm191, %v142, 0
    %v217 = vsel %vm191, %v143, 0
    %v220 = vsel %vm191, %v144, 0
    %v223 = vsel %vm191, %v145, 0
    %v226 = vsel %vm191, %v146, 0
    %v229 = vsel %vm191, %v147, 0
    %v232 = vsel %vm191, %v148, 0
    %v235 = vsel %vm191, %v149, 0
    %v238 = vsel %vm191, %v150, 0
    %240 = vmatpush.bf16.msra.mxu0 0
    %241 = vmatpush.bf16.msra.mxu0 0
    %242 = vmatpush.bf16.msra.mxu0 0
    %243 = vmatpush.bf16.msra.mxu0 0
    %244 = vmatpush.bf16.msra.mxu0 %v181
    %245 = vmatpush.bf16.msra.mxu0 %v179
    %246 = vmatpush.bf16.msra.mxu0 %v177
    %247 = vmatpush.bf16.msra.mxu0 %v175
    %248 = vmatmul.bf16.gmra.mxu0 %v193
    %v249 = vpop.f32.mrf.mxu0
    %v250 = vadd.f32 0.0, %v249
    %v251 = vpop.f32.mrf.mxu0
    %v252 = vadd.f32 0.0, %v251
    %253 = vmatmul.bf16.gmra.mxu0 %v196
    %v254 = vpop.f32.mrf.mxu0
    %v255 = vadd.f32 0.0, %v254
    %v256 = vpop.f32.mrf.mxu0
    %v257 = vadd.f32 0.0, %v256
    %258 = vmatmul.bf16.gmra.mxu0 %v199
    %v259 = vpop.f32.mrf.mxu0
    %v260 = vadd.f32 0.0, %v259
    %v261 = vpop.f32.mrf.mxu0
    %v262 = vadd.f32 0.0, %v261
    %263 = vmatmul.bf16.gmra.mxu0 %v202
    %v264 = vpop.f32.mrf.mxu0
    %v265 = vadd.f32 0.0, %v264
    %v266 = vpop.f32.mrf.mxu0
    %v267 = vadd.f32 0.0, %v266
    %268 = vmatmul.bf16.gmra.mxu0 %v205
    %v269 = vpop.f32.mrf.mxu0
    %v270 = vadd.f32 0.0, %v269
    %v271 = vpop.f32.mrf.mxu0
    %v272 = vadd.f32 0.0, %v271
    %273 = vmatmul.bf16.gmra.mxu0 %v208
    %v274 = vpop.f32.mrf.mxu0
    %v275 = vadd.f32 0.0, %v274
    %v276 = vpop.f32.mrf.mxu0
    %v277 = vadd.f32 0.0, %v276
    %278 = vmatmul.bf16.gmra.mxu0 %v211
    %v279 = vpop.f32.mrf.mxu0
    %v280 = vadd.f32 0.0, %v279
    %v281 = vpop.f32.mrf.mxu0
    %v282 = vadd.f32 0.0, %v281
    %283 = vmatmul.bf16.gmra.mxu0 %v214
    %v284 = vpop.f32.mrf.mxu0
    %v285 = vadd.f32 0.0, %v284
    %v286 = vpop.f32.mrf.mxu0
    %v287 = vadd.f32 0.0, %v286
    %288 = vmatmul.bf16.gmra.mxu0 %v217
    %v289 = vpop.f32.mrf.mxu0
    %v290 = vadd.f32 0.0, %v289
    %v291 = vpop.f32.mrf.mxu0
    %v292 = vadd.f32 0.0, %v291
    %293 = vmatmul.bf16.gmra.mxu0 %v220
    %v294 = vpop.f32.mrf.mxu0
    %v295 = vadd.f32 0.0, %v294
    %v296 = vpop.f32.mrf.mxu0
    %v297 = vadd.f32 0.0, %v296
    %298 = vmatmul.bf16.gmra.mxu0 %v223
    %v299 = vpop.f32.mrf.mxu0
    %v300 = vadd.f32 0.0, %v299
    %v301 = vpop.f32.mrf.mxu0
    %v302 = vadd.f32 0.0, %v301
    %303 = vmatmul.bf16.gmra.mxu0 %v226
    %v304 = vpop.f32.mrf.mxu0
    %v305 = vadd.f32 0.0, %v304
    %v306 = vpop.f32.mrf.mxu0
    %v307 = vadd.f32 0.0, %v306
    %308 = vmatmul.bf16.gmra.mxu0 %v229
    %v309 = vpop.f32.mrf.mxu0
    %v310 = vadd.f32 0.0, %v309
    %v311 = vpop.f32.mrf.mxu0
    %v312 = vadd.f32 0.0, %v311
    %313 = vmatmul.bf16.gmra.mxu0 %v232
    %v314 = vpop.f32.mrf.mxu0
    %v315 = vadd.f32 0.0, %v314
    %v316 = vpop.f32.mrf.mxu0
    %v317 = vadd.f32 0.0, %v316
    %318 = vmatmul.bf16.gmra.mxu0 %v235
    %v319 = vpop.f32.mrf.mxu0
    %v320 = vadd.f32 0.0, %v319
    %v321 = vpop.f32.mrf.mxu0
    %v322 = vadd.f32 0.0, %v321
    %323 = vmatmul.bf16.gmra.mxu0 %v238
    %v324 = vpop.f32.mrf.mxu0
    %v325 = vadd.f32 0.0, %v324
    %v326 = vpop.f32.mrf.mxu0
    %v327 = vadd.f32 0.0, %v326
    %328 = vdwg.mxu0
    %329 = vmatpush.bf16.msra.mxu0 0
    %330 = vmatpush.bf16.msra.mxu0 0
    %331 = vmatpush.bf16.msra.mxu0 0
    %332 = vmatpush.bf16.msra.mxu0 0
    %333 = vmatpush.bf16.msra.mxu0 %v182
    %334 = vmatpush.bf16.msra.mxu0 %v180
    %335 = vmatpush.bf16.msra.mxu0 %v178
    %336 = vmatpush.bf16.msra.mxu0 %v176
    %337 = vmatmul.bf16.gmra.mxu0 %v193
    %v338 = vpop.f32.mrf.mxu0
    %v339 = vadd.f32 0.0, %v338
    %v340 = vpop.f32.mrf.mxu0
    %v341 = vadd.f32 0.0, %v340
    %342 = vmatmul.bf16.gmra.mxu0 %v196
    %v343 = vpop.f32.mrf.mxu0
    %v344 = vadd.f32 0.0, %v343
    %v345 = vpop.f32.mrf.mxu0
    %v346 = vadd.f32 0.0, %v345
    %347 = vmatmul.bf16.gmra.mxu0 %v199
    %v348 = vpop.f32.mrf.mxu0
    %v349 = vadd.f32 0.0, %v348
    %v350 = vpop.f32.mrf.mxu0
    %v351 = vadd.f32 0.0, %v350
    %352 = vmatmul.bf16.gmra.mxu0 %v202
    %v353 = vpop.f32.mrf.mxu0
    %v354 = vadd.f32 0.0, %v353
    %v355 = vpop.f32.mrf.mxu0
    %v356 = vadd.f32 0.0, %v355
    %357 = vmatmul.bf16.gmra.mxu0 %v205
    %v358 = vpop.f32.mrf.mxu0
    %v359 = vadd.f32 0.0, %v358
    %v360 = vpop.f32.mrf.mxu0
    %v361 = vadd.f32 0.0, %v360
    %362 = vmatmul.bf16.gmra.mxu0 %v208
    %v363 = vpop.f32.mrf.mxu0
    %v364 = vadd.f32 0.0, %v363
    %v365 = vpop.f32.mrf.mxu0
    %v366 = vadd.f32 0.0, %v365
    %367 = vmatmul.bf16.gmra.mxu0 %v211
    %v368 = vpop.f32.mrf.mxu0
    %v369 = vadd.f32 0.0, %v368
    %v370 = vpop.f32.mrf.mxu0
    %v371 = vadd.f32 0.0, %v370
    %372 = vmatmul.bf16.gmra.mxu0 %v214
    %v373 = vpop.f32.mrf.mxu0
    %v374 = vadd.f32 0.0, %v373
    %v375 = vpop.f32.mrf.mxu0
    %v376 = vadd.f32 0.0, %v375
    %377 = vmatmul.bf16.gmra.mxu0 %v217
    %v378 = vpop.f32.mrf.mxu0
    %v379 = vadd.f32 0.0, %v378
    %v380 = vpop.f32.mrf.mxu0
    %v381 = vadd.f32 0.0, %v380
    %382 = vmatmul.bf16.gmra.mxu0 %v220
    %v383 = vpop.f32.mrf.mxu0
    %v384 = vadd.f32 0.0, %v383
    %v385 = vpop.f32.mrf.mxu0
    %v386 = vadd.f32 0.0, %v385
    %387 = vmatmul.bf16.gmra.mxu0 %v223
    %v388 = vpop.f32.mrf.mxu0
    %v389 = vadd.f32 0.0, %v388
    %v390 = vpop.f32.mrf.mxu0
    %v391 = vadd.f32 0.0, %v390
    %392 = vmatmul.bf16.gmra.mxu0 %v226
    %v393 = vpop.f32.mrf.mxu0
    %v394 = vadd.f32 0.0, %v393
    %v395 = vpop.f32.mrf.mxu0
    %v396 = vadd.f32 0.0, %v395
    %397 = vmatmul.bf16.gmra.mxu0 %v229
    %v398 = vpop.f32.mrf.mxu0
    %v399 = vadd.f32 0.0, %v398
    %v400 = vpop.f32.mrf.mxu0
    %v401 = vadd.f32 0.0, %v400
    %402 = vmatmul.bf16.gmra.mxu0 %v232
    %v403 = vpop.f32.mrf.mxu0
    %v404 = vadd.f32 0.0, %v403
    %v405 = vpop.f32.mrf.mxu0
    %v406 = vadd.f32 0.0, %v405
    %407 = vmatmul.bf16.gmra.mxu0 %v235
    %v408 = vpop.f32.mrf.mxu0
    %v409 = vadd.f32 0.0, %v408
    %v410 = vpop.f32.mrf.mxu0
    %v411 = vadd.f32 0.0, %v410
    %412 = vmatmul.bf16.gmra.mxu0 %v238
    %v413 = vpop.f32.mrf.mxu0
    %v414 = vadd.f32 0.0, %v413
    %v415 = vpop.f32.mrf.mxu0
    %v416 = vadd.f32 0.0, %v415
    %417 = vdwg.mxu0
    %v418 = vmax.f32 %v250, %v270
    %v419 = vmax.f32 %v339, %v359
    %v420 = vmax.f32 %v252, %v272
    %v421 = vmax.f32 %v341, %v361
    %v422 = vmax.f32 %v255, %v275
    %v423 = vmax.f32 %v344, %v364
    %v424 = vmax.f32 %v257, %v277
    %v425 = vmax.f32 %v346, %v366
    %v426 = vmax.f32 %v260, %v280
    %v427 = vmax.f32 %v349, %v369
    %v428 = vmax.f32 %v262, %v282
    %v429 = vmax.f32 %v351, %v371
    %v430 = vmax.f32 %v265, %v285
    %v431 = vmax.f32 %v354, %v374
    %v432 = vmax.f32 %v267, %v287
    %v433 = vmax.f32 %v356, %v376
    %v434 = vmax.f32 %v290, %v310
    %v435 = vmax.f32 %v379, %v399
    %v436 = vmax.f32 %v292, %v312
    %v437 = vmax.f32 %v381, %v401
    %v438 = vmax.f32 %v295, %v315
    %v439 = vmax.f32 %v384, %v404
    %v440 = vmax.f32 %v297, %v317
    %v441 = vmax.f32 %v386, %v406
    %v442 = vmax.f32 %v300, %v320
    %v443 = vmax.f32 %v389, %v409
    %v444 = vmax.f32 %v302, %v322
    %v445 = vmax.f32 %v391, %v411
    %v446 = vmax.f32 %v305, %v325
    %v447 = vmax.f32 %v394, %v414
    %v448 = vmax.f32 %v307, %v327
    %v449 = vmax.f32 %v396, %v416
    %v450 = vmax.f32 %v418, %v434
    %v451 = vmax.f32 %v419, %v435
    %v452 = vmax.f32 %v420, %v436
    %v453 = vmax.f32 %v421, %v437
    %v454 = vmax.f32 %v422, %v438
    %v455 = vmax.f32 %v423, %v439
    %v456 = vmax.f32 %v424, %v440
    %v457 = vmax.f32 %v425, %v441
    %v458 = vmax.f32 %v426, %v442
    %v459 = vmax.f32 %v427, %v443
    %v460 = vmax.f32 %v428, %v444
    %v461 = vmax.f32 %v429, %v445
    %v462 = vmax.f32 %v430, %v446
    %v463 = vmax.f32 %v431, %v447
    %v464 = vmax.f32 %v432, %v448
    %v465 = vmax.f32 %v433, %v449
    %v466 = vld [vmem:[%s2] sm:$0xff]
    %v467 = vld [vmem:[%s2 + $0x8] sm:$0xff]
    %v468 = vld [vmem:[%s2 + $0x10] sm:$0xff]
    %v469 = vld [vmem:[%s2 + $0x18] sm:$0xff]
    %v470 = vld [vmem:[%s2 + $0x20] sm:$0xff]
    %v471 = vld [vmem:[%s2 + $0x28] sm:$0xff]
    %v472 = vld [vmem:[%s2 + $0x30] sm:$0xff]
    %v473 = vld [vmem:[%s2 + $0x38] sm:$0xff]
    %475 = vset.pattern.permute.xlu0 0
    %476 = vperm.xlu0 %475, %v466
    %v477 = vpop.permute.xlu0 %476
    %480 = vset.pattern.permute.xlu0 0
    %481 = vperm.xlu0 %480, %v467
    %v482 = vpop.permute.xlu0 %481
    %485 = vset.pattern.permute.xlu0 0
    %486 = vperm.xlu0 %485, %v468
    %v487 = vpop.permute.xlu0 %486
    %490 = vset.pattern.permute.xlu0 0
    %491 = vperm.xlu0 %490, %v469
    %v492 = vpop.permute.xlu0 %491
    %495 = vset.pattern.permute.xlu0 0
    %496 = vperm.xlu0 %495, %v470
    %v497 = vpop.permute.xlu0 %496
    %500 = vset.pattern.permute.xlu0 0
    %501 = vperm.xlu0 %500, %v471
    %v502 = vpop.permute.xlu0 %501
    %505 = vset.pattern.permute.xlu0 0
    %506 = vperm.xlu0 %505, %v472
    %v507 = vpop.permute.xlu0 %506
    %510 = vset.pattern.permute.xlu0 0
    %511 = vperm.xlu0 %510, %v473
    %v512 = vpop.permute.xlu0 %511
    %v514 = vadd.f32 %v450, %v477
    %v515 = vadd.f32 %v451, %v477
    %v516 = vadd.f32 %v452, %v482
    %v517 = vadd.f32 %v453, %v482
    %v518 = vadd.f32 %v454, %v487
    %v519 = vadd.f32 %v455, %v487
    %v520 = vadd.f32 %v456, %v492
    %v521 = vadd.f32 %v457, %v492
    %v522 = vadd.f32 %v458, %v497
    %v523 = vadd.f32 %v459, %v497
    %v524 = vadd.f32 %v460, %v502
    %v525 = vadd.f32 %v461, %v502
    %v526 = vadd.f32 %v462, %v507
    %v527 = vadd.f32 %v463, %v507
    %v528 = vadd.f32 %v464, %v512
    %v529 = vadd.f32 %v465, %v512
    %v530 = vmax.f32 %v514, 0.0
    %v531 = vmax.f32 %v515, 0.0
    %v532 = vmax.f32 %v516, 0.0
    %v533 = vmax.f32 %v517, 0.0
    %v534 = vmax.f32 %v518, 0.0
    %v535 = vmax.f32 %v519, 0.0
    %v536 = vmax.f32 %v520, 0.0
    %v537 = vmax.f32 %v521, 0.0
    %v538 = vmax.f32 %v522, 0.0
    %v539 = vmax.f32 %v523, 0.0
    %v540 = vmax.f32 %v524, 0.0
    %v541 = vmax.f32 %v525, 0.0
    %v542 = vmax.f32 %v526, 0.0
    %v543 = vmax.f32 %v527, 0.0
    %v544 = vmax.f32 %v528, 0.0
    %v545 = vmax.f32 %v529, 0.0
    %v546 = vld [vmem:[%s7] sm:$0x3]
    %v548 = vperm.slane %v546, 0
    %v549 = vperm.slane %v546, 1
    %v552 = vmul.f32 %v530, %v548
    %v553 = vmul.f32 %v531, %v549
    %v554 = vmul.f32 %v532, %v548
    %v555 = vmul.f32 %v533, %v549
    %v556 = vmul.f32 %v534, %v548
    %v557 = vmul.f32 %v535, %v549
    %v558 = vmul.f32 %v536, %v548
    %v559 = vmul.f32 %v537, %v549
    %v560 = vmul.f32 %v538, %v548
    %v561 = vmul.f32 %v539, %v549
    %v562 = vmul.f32 %v540, %v548
    %v563 = vmul.f32 %v541, %v549
    %v564 = vmul.f32 %v542, %v548
    %v565 = vmul.f32 %v543, %v549
    %v566 = vmul.f32 %v544, %v548
    %v567 = vmul.f32 %v545, %v549
    %v568 = vpack.c.bf16 %v553, %v552
    %v569 = vpack.c.bf16 %v555, %v554
    %v570 = vpack.c.bf16 %v557, %v556
    %v571 = vpack.c.bf16 %v559, %v558
    %v572 = vpack.c.bf16 %v561, %v560
    %v573 = vpack.c.bf16 %v563, %v562
    %v574 = vpack.c.bf16 %v565, %v564
    %v575 = vpack.c.bf16 %v567, %v566
    %v584 = vunpack.c.l.b16 %v568
    %v585 = vunpack.c.h.b16 %v568
    %v586 = vunpack.c.l.b16 %v569
    %v587 = vunpack.c.h.b16 %v569
    %v588 = vunpack.c.l.b16 %v570
    %v589 = vunpack.c.h.b16 %v570
    %v590 = vunpack.c.l.b16 %v571
    %v591 = vunpack.c.h.b16 %v571
    %v592 = vunpack.c.l.b16 %v572
    %v593 = vunpack.c.h.b16 %v572
    %v594 = vunpack.c.l.b16 %v573
    %v595 = vunpack.c.h.b16 %v573
    %v596 = vunpack.c.l.b16 %v574
    %v597 = vunpack.c.h.b16 %v574
    %v598 = vunpack.c.l.b16 %v575
    %v599 = vunpack.c.h.b16 %v575
    %v600 = vpack.c.b16 %v586, %v584
    %v601 = vpack.c.b16 %v587, %v585
    %v602 = vpack.c.b16 %v590, %v588
    %v603 = vpack.c.b16 %v591, %v589
    %v604 = vpack.c.b16 %v594, %v592
    %v605 = vpack.c.b16 %v595, %v593
    %v606 = vpack.c.b16 %v598, %v596
    %v607 = vpack.c.b16 %v599, %v597
    %608 = vrot.lane.b32.xlu0 %v600, 127
    %v609 = vpop.permute.xlu0 %608
    %610 = vrot.lane.b32.xlu0 %v601, 127
    %v611 = vpop.permute.xlu0 %610
    %612 = vrot.lane.b32.xlu0 %v602, 127
    %v613 = vpop.permute.xlu0 %612
    %614 = vrot.lane.b32.xlu0 %v603, 127
    %v615 = vpop.permute.xlu0 %614
    %616 = vrot.lane.b32.xlu0 %v604, 127
    %v617 = vpop.permute.xlu0 %616
    %618 = vrot.lane.b32.xlu0 %v605, 127
    %v619 = vpop.permute.xlu0 %618
    %620 = vrot.lane.b32.xlu0 %v606, 127
    %v621 = vpop.permute.xlu0 %620
    %622 = vrot.lane.b32.xlu0 %v607, 127
    %v623 = vpop.permute.xlu0 %622
    %vm624 = vcmask 1039360
    %v625 = vsel %vm624, %v609, %v611
    %v626 = vsel %vm624, %v613, %v615
    %v627 = vsel %vm624, %v617, %v619
    %v628 = vsel %vm624, %v621, %v623
    %vm633 = vcmask 1039360
    %v636 = vsel %vm633, %v611, %v609
    %v640 = vsel %vm633, %v615, %v613
    %v644 = vsel %vm633, %v619, %v617
    %v648 = vsel %vm633, %v623, %v621
    %650 = vrot.lane.b32.xlu0 %v600, 126
    %v651 = vpop.permute.xlu0 %650
    %652 = vrot.lane.b32.xlu0 %v601, 126
    %v653 = vpop.permute.xlu0 %652
    %654 = vrot.lane.b32.xlu0 %v602, 126
    %v655 = vpop.permute.xlu0 %654
    %656 = vrot.lane.b32.xlu0 %v603, 126
    %v657 = vpop.permute.xlu0 %656
    %658 = vrot.lane.b32.xlu0 %v604, 126
    %v659 = vpop.permute.xlu0 %658
    %660 = vrot.lane.b32.xlu0 %v605, 126
    %v661 = vpop.permute.xlu0 %660
    %662 = vrot.lane.b32.xlu0 %v606, 126
    %v663 = vpop.permute.xlu0 %662
    %664 = vrot.lane.b32.xlu0 %v607, 126
    %v665 = vpop.permute.xlu0 %664
    %vm666 = vcmask 1031168
    %v667 = vsel %vm666, %v651, %v653
    %v668 = vsel %vm666, %v655, %v657
    %v669 = vsel %vm666, %v659, %v661
    %v670 = vsel %vm666, %v663, %v665
    %vm675 = vcmask 1031168
    %v678 = vsel %vm675, %v653, %v651
    %v682 = vsel %vm675, %v657, %v655
    %v686 = vsel %vm675, %v661, %v659
    %v690 = vsel %vm675, %v665, %v663
    %692 = vrot.lane.b32.xlu0 %v600, 119
    %v693 = vpop.permute.xlu0 %692
    %694 = vrot.lane.b32.xlu0 %v601, 119
    %v695 = vpop.permute.xlu0 %694
    %696 = vrot.lane.b32.xlu0 %v602, 119
    %v697 = vpop.permute.xlu0 %696
    %698 = vrot.lane.b32.xlu0 %v603, 119
    %v699 = vpop.permute.xlu0 %698
    %700 = vrot.lane.b32.xlu0 %v604, 119
    %v701 = vpop.permute.xlu0 %700
    %702 = vrot.lane.b32.xlu0 %v605, 119
    %v703 = vpop.permute.xlu0 %702
    %704 = vrot.lane.b32.xlu0 %v606, 119
    %v705 = vpop.permute.xlu0 %704
    %706 = vrot.lane.b32.xlu0 %v607, 119
    %v707 = vpop.permute.xlu0 %706
    %vm708 = vcmask 973824
    %v709 = vsel %vm708, %v693, %v695
    %v710 = vsel %vm708, %v697, %v699
    %v711 = vsel %vm708, %v701, %v703
    %v712 = vsel %vm708, %v705, %v707
    %vm717 = vcmask 973824
    %v720 = vsel %vm717, %v695, %v693
    %v724 = vsel %vm717, %v699, %v697
    %v728 = vsel %vm717, %v703, %v701
    %v732 = vsel %vm717, %v707, %v705
    %734 = vrot.lane.b32.xlu0 %v600, 118
    %v735 = vpop.permute.xlu0 %734
    %736 = vrot.lane.b32.xlu0 %v601, 118
    %v737 = vpop.permute.xlu0 %736
    %738 = vrot.lane.b32.xlu0 %v602, 118
    %v739 = vpop.permute.xlu0 %738
    %740 = vrot.lane.b32.xlu0 %v603, 118
    %v741 = vpop.permute.xlu0 %740
    %742 = vrot.lane.b32.xlu0 %v604, 118
    %v743 = vpop.permute.xlu0 %742
    %744 = vrot.lane.b32.xlu0 %v605, 118
    %v745 = vpop.permute.xlu0 %744
    %746 = vrot.lane.b32.xlu0 %v606, 118
    %v747 = vpop.permute.xlu0 %746
    %748 = vrot.lane.b32.xlu0 %v607, 118
    %v749 = vpop.permute.xlu0 %748
    %vm750 = vcmask 965632
    %v751 = vsel %vm750, %v735, %v737
    %v752 = vsel %vm750, %v739, %v741
    %v753 = vsel %vm750, %v743, %v745
    %v754 = vsel %vm750, %v747, %v749
    %vm759 = vcmask 965632
    %v762 = vsel %vm759, %v737, %v735
    %v766 = vsel %vm759, %v741, %v739
    %v770 = vsel %vm759, %v745, %v743
    %v774 = vsel %vm759, %v749, %v747
    %776 = vrot.lane.b32.xlu0 %v600, 117
    %v777 = vpop.permute.xlu0 %776
    %778 = vrot.lane.b32.xlu0 %v601, 117
    %v779 = vpop.permute.xlu0 %778
    %780 = vrot.lane.b32.xlu0 %v602, 117
    %v781 = vpop.permute.xlu0 %780
    %782 = vrot.lane.b32.xlu0 %v603, 117
    %v783 = vpop.permute.xlu0 %782
    %784 = vrot.lane.b32.xlu0 %v604, 117
    %v785 = vpop.permute.xlu0 %784
    %786 = vrot.lane.b32.xlu0 %v605, 117
    %v787 = vpop.permute.xlu0 %786
    %788 = vrot.lane.b32.xlu0 %v606, 117
    %v789 = vpop.permute.xlu0 %788
    %790 = vrot.lane.b32.xlu0 %v607, 117
    %v791 = vpop.permute.xlu0 %790
    %vm792 = vcmask 957440
    %v793 = vsel %vm792, %v777, %v779
    %v794 = vsel %vm792, %v781, %v783
    %v795 = vsel %vm792, %v785, %v787
    %v796 = vsel %vm792, %v789, %v791
    %vm801 = vcmask 957440
    %v804 = vsel %vm801, %v779, %v777
    %v808 = vsel %vm801, %v783, %v781
    %v812 = vsel %vm801, %v787, %v785
    %v816 = vsel %vm801, %v791, %v789
    %818 = vrot.lane.b32.xlu0 %v600, 110
    %v819 = vpop.permute.xlu0 %818
    %820 = vrot.lane.b32.xlu0 %v601, 110
    %v821 = vpop.permute.xlu0 %820
    %822 = vrot.lane.b32.xlu0 %v602, 110
    %v823 = vpop.permute.xlu0 %822
    %824 = vrot.lane.b32.xlu0 %v603, 110
    %v825 = vpop.permute.xlu0 %824
    %826 = vrot.lane.b32.xlu0 %v604, 110
    %v827 = vpop.permute.xlu0 %826
    %828 = vrot.lane.b32.xlu0 %v605, 110
    %v829 = vpop.permute.xlu0 %828
    %830 = vrot.lane.b32.xlu0 %v606, 110
    %v831 = vpop.permute.xlu0 %830
    %832 = vrot.lane.b32.xlu0 %v607, 110
    %v833 = vpop.permute.xlu0 %832
    %vm834 = vcmask 900096
    %v835 = vsel %vm834, %v819, %v821
    %v836 = vsel %vm834, %v823, %v825
    %v837 = vsel %vm834, %v827, %v829
    %v838 = vsel %vm834, %v831, %v833
    %vm843 = vcmask 900096
    %v846 = vsel %vm843, %v821, %v819
    %v850 = vsel %vm843, %v825, %v823
    %v854 = vsel %vm843, %v829, %v827
    %v858 = vsel %vm843, %v833, %v831
    %860 = vrot.lane.b32.xlu0 %v600, 109
    %v861 = vpop.permute.xlu0 %860
    %862 = vrot.lane.b32.xlu0 %v601, 109
    %v863 = vpop.permute.xlu0 %862
    %864 = vrot.lane.b32.xlu0 %v602, 109
    %v865 = vpop.permute.xlu0 %864
    %866 = vrot.lane.b32.xlu0 %v603, 109
    %v867 = vpop.permute.xlu0 %866
    %868 = vrot.lane.b32.xlu0 %v604, 109
    %v869 = vpop.permute.xlu0 %868
    %870 = vrot.lane.b32.xlu0 %v605, 109
    %v871 = vpop.permute.xlu0 %870
    %872 = vrot.lane.b32.xlu0 %v606, 109
    %v873 = vpop.permute.xlu0 %872
    %874 = vrot.lane.b32.xlu0 %v607, 109
    %v875 = vpop.permute.xlu0 %874
    %vm876 = vcmask 891904
    %v877 = vsel %vm876, %v861, %v863
    %v878 = vsel %vm876, %v865, %v867
    %v879 = vsel %vm876, %v869, %v871
    %v880 = vsel %vm876, %v873, %v875
    %vm885 = vcmask 891904
    %v888 = vsel %vm885, %v863, %v861
    %v892 = vsel %vm885, %v867, %v865
    %v896 = vsel %vm885, %v871, %v869
    %v900 = vsel %vm885, %v875, %v873
    %902 = vrot.lane.b32.xlu0 %v600, 108
    %v903 = vpop.permute.xlu0 %902
    %904 = vrot.lane.b32.xlu0 %v601, 108
    %v905 = vpop.permute.xlu0 %904
    %906 = vrot.lane.b32.xlu0 %v602, 108
    %v907 = vpop.permute.xlu0 %906
    %908 = vrot.lane.b32.xlu0 %v603, 108
    %v909 = vpop.permute.xlu0 %908
    %910 = vrot.lane.b32.xlu0 %v604, 108
    %v911 = vpop.permute.xlu0 %910
    %912 = vrot.lane.b32.xlu0 %v605, 108
    %v913 = vpop.permute.xlu0 %912
    %914 = vrot.lane.b32.xlu0 %v606, 108
    %v915 = vpop.permute.xlu0 %914
    %916 = vrot.lane.b32.xlu0 %v607, 108
    %v917 = vpop.permute.xlu0 %916
    %vm918 = vcmask 883712
    %v919 = vsel %vm918, %v903, %v905
    %v920 = vsel %vm918, %v907, %v909
    %v921 = vsel %vm918, %v911, %v913
    %v922 = vsel %vm918, %v915, %v917
    %vm927 = vcmask 883712
    %v930 = vsel %vm927, %v905, %v903
    %v934 = vsel %vm927, %v909, %v907
    %v938 = vsel %vm927, %v913, %v911
    %v942 = vsel %vm927, %v917, %v915
    %v952 = vld [vmem:[%s3] sm:$0xff]
    %v953 = vld [vmem:[%s3 + $0x8] sm:$0xff]
    %v954 = vld [vmem:[%s3 + $0x10] sm:$0xf]
    %v955 = vld [vmem:[%s3 + $0x14] sm:$0xff]
    %v956 = vld [vmem:[%s3 + $0x1c] sm:$0xff]
    %v957 = vld [vmem:[%s3 + $0x24] sm:$0xf]
    %v958 = vld [vmem:[%s3 + $0x28] sm:$0xff]
    %v959 = vld [vmem:[%s3 + $0x30] sm:$0xff]
    %v960 = vld [vmem:[%s3 + $0x38] sm:$0xf]
    %v961 = vld [vmem:[%s3 + $0x3c] sm:$0xff]
    %v962 = vld [vmem:[%s3 + $0x44] sm:$0xff]
    %v963 = vld [vmem:[%s3 + $0x4c] sm:$0xf]
    %v964 = vld [vmem:[%s3 + $0x50] sm:$0xff]
    %v965 = vld [vmem:[%s3 + $0x58] sm:$0xff]
    %v966 = vld [vmem:[%s3 + $0x60] sm:$0xf]
    %v967 = vld [vmem:[%s3 + $0x64] sm:$0xff]
    %v968 = vld [vmem:[%s3 + $0x6c] sm:$0xff]
    %v969 = vld [vmem:[%s3 + $0x74] sm:$0xf]
    %v970 = vld [vmem:[%s3 + $0x78] sm:$0xff]
    %v971 = vld [vmem:[%s3 + $0x80] sm:$0xff]
    %v972 = vld [vmem:[%s3 + $0x88] sm:$0xf]
    %v973 = vld [vmem:[%s3 + $0x8c] sm:$0xff]
    %v974 = vld [vmem:[%s3 + $0x94] sm:$0xff]
    %v975 = vld [vmem:[%s3 + $0x9c] sm:$0xf]
    %v976 = vld [vmem:[%s3 + $0xa0] sm:$0xff]
    %v977 = vld [vmem:[%s3 + $0xa8] sm:$0xff]
    %v978 = vld [vmem:[%s3 + $0xb0] sm:$0xf]
    %v979 = vld [vmem:[%s3 + $0xb4] sm:$0xff]
    %v980 = vld [vmem:[%s3 + $0xbc] sm:$0xff]
    %v981 = vld [vmem:[%s3 + $0xc4] sm:$0xf]
    %v982 = vld [vmem:[%s3 + $0xc8] sm:$0xff]
    %v983 = vld [vmem:[%s3 + $0xd0] sm:$0xff]
    %v984 = vld [vmem:[%s3 + $0xd8] sm:$0xf]
    %v985 = vld [vmem:[%s3 + $0xdc] sm:$0xff]
    %v986 = vld [vmem:[%s3 + $0xe4] sm:$0xff]
    %v987 = vld [vmem:[%s3 + $0xec] sm:$0xf]
    %v988 = vld [vmem:[%s3 + $0xf0] sm:$0xff]
    %v989 = vld [vmem:[%s3 + $0xf8] sm:$0xff]
    %v990 = vld [vmem:[%s3 + $0x100] sm:$0xf]
    %v991 = vld [vmem:[%s3 + $0x104] sm:$0xff]
    %v992 = vld [vmem:[%s3 + $0x10c] sm:$0xff]
    %v993 = vld [vmem:[%s3 + $0x114] sm:$0xf]
    %v994 = vld [vmem:[%s3 + $0x118] sm:$0xff]
    %v995 = vld [vmem:[%s3 + $0x120] sm:$0xff]
    %v996 = vld [vmem:[%s3 + $0x128] sm:$0xf]
    %v997 = vld [vmem:[%s3 + $0x12c] sm:$0xff]
    %v998 = vld [vmem:[%s3 + $0x134] sm:$0xff]
    %v999 = vld [vmem:[%s3 + $0x13c] sm:$0xf]
    %v1048 = vunpack.c.l.b16 %v952
    %v1049 = vunpack.c.h.b16 %v952
    %v1050 = vunpack.c.l.b16 %v953
    %v1051 = vunpack.c.h.b16 %v953
    %v1052 = vunpack.c.l.b16 %v954
    %v1053 = vunpack.c.l.b16 %v955
    %v1054 = vunpack.c.h.b16 %v955
    %v1055 = vunpack.c.l.b16 %v956
    %v1056 = vunpack.c.h.b16 %v956
    %v1057 = vunpack.c.l.b16 %v957
    %v1058 = vunpack.c.l.b16 %v958
    %v1059 = vunpack.c.h.b16 %v958
    %v1060 = vunpack.c.l.b16 %v959
    %v1061 = vunpack.c.h.b16 %v959
    %v1062 = vunpack.c.l.b16 %v960
    %v1063 = vunpack.c.l.b16 %v961
    %v1064 = vunpack.c.h.b16 %v961
    %v1065 = vunpack.c.l.b16 %v962
    %v1066 = vunpack.c.h.b16 %v962
    %v1067 = vunpack.c.l.b16 %v963
    %v1068 = vunpack.c.l.b16 %v964
    %v1069 = vunpack.c.h.b16 %v964
    %v1070 = vunpack.c.l.b16 %v965
    %v1071 = vunpack.c.h.b16 %v965
    %v1072 = vunpack.c.l.b16 %v966
    %v1073 = vunpack.c.l.b16 %v967
    %v1074 = vunpack.c.h.b16 %v967
    %v1075 = vunpack.c.l.b16 %v968
    %v1076 = vunpack.c.h.b16 %v968
    %v1077 = vunpack.c.l.b16 %v969
    %v1078 = vunpack.c.l.b16 %v970
    %v1079 = vunpack.c.h.b16 %v970
    %v1080 = vunpack.c.l.b16 %v971
    %v1081 = vunpack.c.h.b16 %v971
    %v1082 = vunpack.c.l.b16 %v972
    %v1083 = vunpack.c.l.b16 %v973
    %v1084 = vunpack.c.h.b16 %v973
    %v1085 = vunpack.c.l.b16 %v974
    %v1086 = vunpack.c.h.b16 %v974
    %v1087 = vunpack.c.l.b16 %v975
    %v1088 = vunpack.c.l.b16 %v976
    %v1089 = vunpack.c.h.b16 %v976
    %v1090 = vunpack.c.l.b16 %v977
    %v1091 = vunpack.c.h.b16 %v977
    %v1092 = vunpack.c.l.b16 %v978
    %v1093 = vunpack.c.l.b16 %v979
    %v1094 = vunpack.c.h.b16 %v979
    %v1095 = vunpack.c.l.b16 %v980
    %v1096 = vunpack.c.h.b16 %v980
    %v1097 = vunpack.c.l.b16 %v981
    %v1098 = vunpack.c.l.b16 %v982
    %v1099 = vunpack.c.h.b16 %v982
    %v1100 = vunpack.c.l.b16 %v983
    %v1101 = vunpack.c.h.b16 %v983
    %v1102 = vunpack.c.l.b16 %v984
    %v1103 = vunpack.c.l.b16 %v985
    %v1104 = vunpack.c.h.b16 %v985
    %v1105 = vunpack.c.l.b16 %v986
    %v1106 = vunpack.c.h.b16 %v986
    %v1107 = vunpack.c.l.b16 %v987
    %v1108 = vunpack.c.l.b16 %v988
    %v1109 = vunpack.c.h.b16 %v988
    %v1110 = vunpack.c.l.b16 %v989
    %v1111 = vunpack.c.h.b16 %v989
    %v1112 = vunpack.c.l.b16 %v990
    %v1113 = vunpack.c.l.b16 %v991
    %v1114 = vunpack.c.h.b16 %v991
    %v1115 = vunpack.c.l.b16 %v992
    %v1116 = vunpack.c.h.b16 %v992
    %v1117 = vunpack.c.l.b16 %v993
    %v1118 = vunpack.c.l.b16 %v994
    %v1119 = vunpack.c.h.b16 %v994
    %v1120 = vunpack.c.l.b16 %v995
    %v1121 = vunpack.c.h.b16 %v995
    %v1122 = vunpack.c.l.b16 %v996
    %v1123 = vunpack.c.l.b16 %v997
    %v1124 = vunpack.c.h.b16 %v997
    %v1125 = vunpack.c.l.b16 %v998
    %v1126 = vunpack.c.h.b16 %v998
    %v1127 = vunpack.c.l.b16 %v999
    %v1128 = vpack.c.b16 %v1053, %v1048
    %v1129 = vpack.c.b16 %v1054, %v1049
    %v1130 = vpack.c.b16 %v1055, %v1050
    %v1131 = vpack.c.b16 %v1056, %v1051
    %v1132 = vpack.c.b16 %v1057, %v1052
    %v1133 = vpack.c.b16 %v1063, %v1058
    %v1134 = vpack.c.b16 %v1064, %v1059
    %v1135 = vpack.c.b16 %v1065, %v1060
    %v1136 = vpack.c.b16 %v1066, %v1061
    %v1137 = vpack.c.b16 %v1067, %v1062
    %v1138 = vpack.c.b16 %v1073, %v1068
    %v1139 = vpack.c.b16 %v1074, %v1069
    %v1140 = vpack.c.b16 %v1075, %v1070
    %v1141 = vpack.c.b16 %v1076, %v1071
    %v1142 = vpack.c.b16 %v1077, %v1072
    %v1143 = vpack.c.b16 %v1083, %v1078
    %v1144 = vpack.c.b16 %v1084, %v1079
    %v1145 = vpack.c.b16 %v1085, %v1080
    %v1146 = vpack.c.b16 %v1086, %v1081
    %v1147 = vpack.c.b16 %v1087, %v1082
    %v1148 = vpack.c.b16 %v1093, %v1088
    %v1149 = vpack.c.b16 %v1094, %v1089
    %v1150 = vpack.c.b16 %v1095, %v1090
    %v1151 = vpack.c.b16 %v1096, %v1091
    %v1152 = vpack.c.b16 %v1097, %v1092
    %v1153 = vpack.c.b16 %v1103, %v1098
    %v1154 = vpack.c.b16 %v1104, %v1099
    %v1155 = vpack.c.b16 %v1105, %v1100
    %v1156 = vpack.c.b16 %v1106, %v1101
    %v1157 = vpack.c.b16 %v1107, %v1102
    %v1158 = vpack.c.b16 %v1113, %v1108
    %v1159 = vpack.c.b16 %v1114, %v1109
    %v1160 = vpack.c.b16 %v1115, %v1110
    %v1161 = vpack.c.b16 %v1116, %v1111
    %v1162 = vpack.c.b16 %v1117, %v1112
    %v1163 = vpack.c.b16 %v1123, %v1118
    %v1164 = vpack.c.b16 %v1124, %v1119
    %v1165 = vpack.c.b16 %v1125, %v1120
    %v1166 = vpack.c.b16 %v1126, %v1121
    %v1167 = vpack.c.b16 %v1127, %v1122
    %v1201 = vsel %vm191, %v1132, 0
    %v1204 = vsel %vm191, %v1137, 0
    %v1207 = vsel %vm191, %v1142, 0
    %v1210 = vsel %vm191, %v1147, 0
    %v1213 = vsel %vm191, %v1152, 0
    %v1216 = vsel %vm191, %v1157, 0
    %v1219 = vsel %vm191, %v1162, 0
    %v1222 = vsel %vm191, %v1167, 0
    %1224 = vmatpush.bf16.msra.mxu0 %v628
    %1225 = vmatpush.bf16.msra.mxu0 %v627
    %1226 = vmatpush.bf16.msra.mxu0 %v626
    %1227 = vmatpush.bf16.msra.mxu0 %v625
    %1228 = vmatpush.bf16.msra.mxu0 %v606
    %1229 = vmatpush.bf16.msra.mxu0 %v604
    %1230 = vmatpush.bf16.msra.mxu0 %v602
    %1231 = vmatpush.bf16.msra.mxu0 %v600
    %1232 = vmatmul.bf16.gmra.mxu0 %v1128
    %v1233 = vpop.f32.mrf.mxu0
    %v1234 = vadd.f32 0.0, %v1233
    %v1235 = vpop.f32.mrf.mxu0
    %v1236 = vadd.f32 0.0, %v1235
    %1237 = vmatmul.bf16.gmra.mxu0 %v1133
    %v1238 = vpop.f32.mrf.mxu0
    %v1239 = vadd.f32 0.0, %v1238
    %v1240 = vpop.f32.mrf.mxu0
    %v1241 = vadd.f32 0.0, %v1240
    %1242 = vmatmul.bf16.gmra.mxu0 %v1138
    %v1243 = vpop.f32.mrf.mxu0
    %v1244 = vadd.f32 0.0, %v1243
    %v1245 = vpop.f32.mrf.mxu0
    %v1246 = vadd.f32 0.0, %v1245
    %1247 = vmatmul.bf16.gmra.mxu0 %v1143
    %v1248 = vpop.f32.mrf.mxu0
    %v1249 = vadd.f32 0.0, %v1248
    %v1250 = vpop.f32.mrf.mxu0
    %v1251 = vadd.f32 0.0, %v1250
    %1252 = vmatmul.bf16.gmra.mxu0 %v1148
    %v1253 = vpop.f32.mrf.mxu0
    %v1254 = vadd.f32 0.0, %v1253
    %v1255 = vpop.f32.mrf.mxu0
    %v1256 = vadd.f32 0.0, %v1255
    %1257 = vmatmul.bf16.gmra.mxu0 %v1153
    %v1258 = vpop.f32.mrf.mxu0
    %v1259 = vadd.f32 0.0, %v1258
    %v1260 = vpop.f32.mrf.mxu0
    %v1261 = vadd.f32 0.0, %v1260
    %1262 = vmatmul.bf16.gmra.mxu0 %v1158
    %v1263 = vpop.f32.mrf.mxu0
    %v1264 = vadd.f32 0.0, %v1263
    %v1265 = vpop.f32.mrf.mxu0
    %v1266 = vadd.f32 0.0, %v1265
    %1267 = vmatmul.bf16.gmra.mxu0 %v1163
    %v1268 = vpop.f32.mrf.mxu0
    %v1269 = vadd.f32 0.0, %v1268
    %v1270 = vpop.f32.mrf.mxu0
    %v1271 = vadd.f32 0.0, %v1270
    %1272 = vdwg.mxu0
    %1273 = vmatpush.bf16.msra.mxu0 %v712
    %1274 = vmatpush.bf16.msra.mxu0 %v711
    %1275 = vmatpush.bf16.msra.mxu0 %v710
    %1276 = vmatpush.bf16.msra.mxu0 %v709
    %1277 = vmatpush.bf16.msra.mxu0 %v670
    %1278 = vmatpush.bf16.msra.mxu0 %v669
    %1279 = vmatpush.bf16.msra.mxu0 %v668
    %1280 = vmatpush.bf16.msra.mxu0 %v667
    %1281 = vmatmul.bf16.gmra.mxu0 %v1129
    %v1282 = vpop.f32.mrf.mxu0
    %v1283 = vadd.f32 %v1234, %v1282
    %v1284 = vpop.f32.mrf.mxu0
    %v1285 = vadd.f32 %v1236, %v1284
    %1286 = vmatmul.bf16.gmra.mxu0 %v1134
    %v1287 = vpop.f32.mrf.mxu0
    %v1288 = vadd.f32 %v1239, %v1287
    %v1289 = vpop.f32.mrf.mxu0
    %v1290 = vadd.f32 %v1241, %v1289
    %1291 = vmatmul.bf16.gmra.mxu0 %v1139
    %v1292 = vpop.f32.mrf.mxu0
    %v1293 = vadd.f32 %v1244, %v1292
    %v1294 = vpop.f32.mrf.mxu0
    %v1295 = vadd.f32 %v1246, %v1294
    %1296 = vmatmul.bf16.gmra.mxu0 %v1144
    %v1297 = vpop.f32.mrf.mxu0
    %v1298 = vadd.f32 %v1249, %v1297
    %v1299 = vpop.f32.mrf.mxu0
    %v1300 = vadd.f32 %v1251, %v1299
    %1301 = vmatmul.bf16.gmra.mxu0 %v1149
    %v1302 = vpop.f32.mrf.mxu0
    %v1303 = vadd.f32 %v1254, %v1302
    %v1304 = vpop.f32.mrf.mxu0
    %v1305 = vadd.f32 %v1256, %v1304
    %1306 = vmatmul.bf16.gmra.mxu0 %v1154
    %v1307 = vpop.f32.mrf.mxu0
    %v1308 = vadd.f32 %v1259, %v1307
    %v1309 = vpop.f32.mrf.mxu0
    %v1310 = vadd.f32 %v1261, %v1309
    %1311 = vmatmul.bf16.gmra.mxu0 %v1159
    %v1312 = vpop.f32.mrf.mxu0
    %v1313 = vadd.f32 %v1264, %v1312
    %v1314 = vpop.f32.mrf.mxu0
    %v1315 = vadd.f32 %v1266, %v1314
    %1316 = vmatmul.bf16.gmra.mxu0 %v1164
    %v1317 = vpop.f32.mrf.mxu0
    %v1318 = vadd.f32 %v1269, %v1317
    %v1319 = vpop.f32.mrf.mxu0
    %v1320 = vadd.f32 %v1271, %v1319
    %1321 = vdwg.mxu0
    %1322 = vmatpush.bf16.msra.mxu0 %v796
    %1323 = vmatpush.bf16.msra.mxu0 %v795
    %1324 = vmatpush.bf16.msra.mxu0 %v794
    %1325 = vmatpush.bf16.msra.mxu0 %v793
    %1326 = vmatpush.bf16.msra.mxu0 %v754
    %1327 = vmatpush.bf16.msra.mxu0 %v753
    %1328 = vmatpush.bf16.msra.mxu0 %v752
    %1329 = vmatpush.bf16.msra.mxu0 %v751
    %1330 = vmatmul.bf16.gmra.mxu0 %v1130
    %v1331 = vpop.f32.mrf.mxu0
    %v1332 = vadd.f32 %v1283, %v1331
    %v1333 = vpop.f32.mrf.mxu0
    %v1334 = vadd.f32 %v1285, %v1333
    %1335 = vmatmul.bf16.gmra.mxu0 %v1135
    %v1336 = vpop.f32.mrf.mxu0
    %v1337 = vadd.f32 %v1288, %v1336
    %v1338 = vpop.f32.mrf.mxu0
    %v1339 = vadd.f32 %v1290, %v1338
    %1340 = vmatmul.bf16.gmra.mxu0 %v1140
    %v1341 = vpop.f32.mrf.mxu0
    %v1342 = vadd.f32 %v1293, %v1341
    %v1343 = vpop.f32.mrf.mxu0
    %v1344 = vadd.f32 %v1295, %v1343
    %1345 = vmatmul.bf16.gmra.mxu0 %v1145
    %v1346 = vpop.f32.mrf.mxu0
    %v1347 = vadd.f32 %v1298, %v1346
    %v1348 = vpop.f32.mrf.mxu0
    %v1349 = vadd.f32 %v1300, %v1348
    %1350 = vmatmul.bf16.gmra.mxu0 %v1150
    %v1351 = vpop.f32.mrf.mxu0
    %v1352 = vadd.f32 %v1303, %v1351
    %v1353 = vpop.f32.mrf.mxu0
    %v1354 = vadd.f32 %v1305, %v1353
    %1355 = vmatmul.bf16.gmra.mxu0 %v1155
    %v1356 = vpop.f32.mrf.mxu0
    %v1357 = vadd.f32 %v1308, %v1356
    %v1358 = vpop.f32.mrf.mxu0
    %v1359 = vadd.f32 %v1310, %v1358
    %1360 = vmatmul.bf16.gmra.mxu0 %v1160
    %v1361 = vpop.f32.mrf.mxu0
    %v1362 = vadd.f32 %v1313, %v1361
    %v1363 = vpop.f32.mrf.mxu0
    %v1364 = vadd.f32 %v1315, %v1363
    %1365 = vmatmul.bf16.gmra.mxu0 %v1165
    %v1366 = vpop.f32.mrf.mxu0
    %v1367 = vadd.f32 %v1318, %v1366
    %v1368 = vpop.f32.mrf.mxu0
    %v1369 = vadd.f32 %v1320, %v1368
    %1370 = vdwg.mxu0
    %1371 = vmatpush.bf16.msra.mxu0 %v880
    %1372 = vmatpush.bf16.msra.mxu0 %v879
    %1373 = vmatpush.bf16.msra.mxu0 %v878
    %1374 = vmatpush.bf16.msra.mxu0 %v877
    %1375 = vmatpush.bf16.msra.mxu0 %v838
    %1376 = vmatpush.bf16.msra.mxu0 %v837
    %1377 = vmatpush.bf16.msra.mxu0 %v836
    %1378 = vmatpush.bf16.msra.mxu0 %v835
    %1379 = vmatmul.bf16.gmra.mxu0 %v1131
    %v1380 = vpop.f32.mrf.mxu0
    %v1381 = vadd.f32 %v1332, %v1380
    %v1382 = vpop.f32.mrf.mxu0
    %v1383 = vadd.f32 %v1334, %v1382
    %1384 = vmatmul.bf16.gmra.mxu0 %v1136
    %v1385 = vpop.f32.mrf.mxu0
    %v1386 = vadd.f32 %v1337, %v1385
    %v1387 = vpop.f32.mrf.mxu0
    %v1388 = vadd.f32 %v1339, %v1387
    %1389 = vmatmul.bf16.gmra.mxu0 %v1141
    %v1390 = vpop.f32.mrf.mxu0
    %v1391 = vadd.f32 %v1342, %v1390
    %v1392 = vpop.f32.mrf.mxu0
    %v1393 = vadd.f32 %v1344, %v1392
    %1394 = vmatmul.bf16.gmra.mxu0 %v1146
    %v1395 = vpop.f32.mrf.mxu0
    %v1396 = vadd.f32 %v1347, %v1395
    %v1397 = vpop.f32.mrf.mxu0
    %v1398 = vadd.f32 %v1349, %v1397
    %1399 = vmatmul.bf16.gmra.mxu0 %v1151
    %v1400 = vpop.f32.mrf.mxu0
    %v1401 = vadd.f32 %v1352, %v1400
    %v1402 = vpop.f32.mrf.mxu0
    %v1403 = vadd.f32 %v1354, %v1402
    %1404 = vmatmul.bf16.gmra.mxu0 %v1156
    %v1405 = vpop.f32.mrf.mxu0
    %v1406 = vadd.f32 %v1357, %v1405
    %v1407 = vpop.f32.mrf.mxu0
    %v1408 = vadd.f32 %v1359, %v1407
    %1409 = vmatmul.bf16.gmra.mxu0 %v1161
    %v1410 = vpop.f32.mrf.mxu0
    %v1411 = vadd.f32 %v1362, %v1410
    %v1412 = vpop.f32.mrf.mxu0
    %v1413 = vadd.f32 %v1364, %v1412
    %1414 = vmatmul.bf16.gmra.mxu0 %v1166
    %v1415 = vpop.f32.mrf.mxu0
    %v1416 = vadd.f32 %v1367, %v1415
    %v1417 = vpop.f32.mrf.mxu0
    %v1418 = vadd.f32 %v1369, %v1417
    %1419 = vdwg.mxu0
    %1420 = vmatpush.bf16.msra.mxu0 0
    %1421 = vmatpush.bf16.msra.mxu0 0
    %1422 = vmatpush.bf16.msra.mxu0 0
    %1423 = vmatpush.bf16.msra.mxu0 0
    %1424 = vmatpush.bf16.msra.mxu0 %v922
    %1425 = vmatpush.bf16.msra.mxu0 %v921
    %1426 = vmatpush.bf16.msra.mxu0 %v920
    %1427 = vmatpush.bf16.msra.mxu0 %v919
    %1428 = vmatmul.bf16.gmra.mxu0 %v1201
    %v1429 = vpop.f32.mrf.mxu0
    %v1430 = vadd.f32 %v1381, %v1429
    %v1431 = vpop.f32.mrf.mxu0
    %v1432 = vadd.f32 %v1383, %v1431
    %1433 = vmatmul.bf16.gmra.mxu0 %v1204
    %v1434 = vpop.f32.mrf.mxu0
    %v1435 = vadd.f32 %v1386, %v1434
    %v1436 = vpop.f32.mrf.mxu0
    %v1437 = vadd.f32 %v1388, %v1436
    %1438 = vmatmul.bf16.gmra.mxu0 %v1207
    %v1439 = vpop.f32.mrf.mxu0
    %v1440 = vadd.f32 %v1391, %v1439
    %v1441 = vpop.f32.mrf.mxu0
    %v1442 = vadd.f32 %v1393, %v1441
    %1443 = vmatmul.bf16.gmra.mxu0 %v1210
    %v1444 = vpop.f32.mrf.mxu0
    %v1445 = vadd.f32 %v1396, %v1444
    %v1446 = vpop.f32.mrf.mxu0
    %v1447 = vadd.f32 %v1398, %v1446
    %1448 = vmatmul.bf16.gmra.mxu0 %v1213
    %v1449 = vpop.f32.mrf.mxu0
    %v1450 = vadd.f32 %v1401, %v1449
    %v1451 = vpop.f32.mrf.mxu0
    %v1452 = vadd.f32 %v1403, %v1451
    %1453 = vmatmul.bf16.gmra.mxu0 %v1216
    %v1454 = vpop.f32.mrf.mxu0
    %v1455 = vadd.f32 %v1406, %v1454
    %v1456 = vpop.f32.mrf.mxu0
    %v1457 = vadd.f32 %v1408, %v1456
    %1458 = vmatmul.bf16.gmra.mxu0 %v1219
    %v1459 = vpop.f32.mrf.mxu0
    %v1460 = vadd.f32 %v1411, %v1459
    %v1461 = vpop.f32.mrf.mxu0
    %v1462 = vadd.f32 %v1413, %v1461
    %1463 = vmatmul.bf16.gmra.mxu0 %v1222
    %v1464 = vpop.f32.mrf.mxu0
    %v1465 = vadd.f32 %v1416, %v1464
    %v1466 = vpop.f32.mrf.mxu0
    %v1467 = vadd.f32 %v1418, %v1466
    %1468 = vdwg.mxu0
    %1469 = vmatpush.bf16.msra.mxu0 %v648
    %1470 = vmatpush.bf16.msra.mxu0 %v644
    %1471 = vmatpush.bf16.msra.mxu0 %v640
    %1472 = vmatpush.bf16.msra.mxu0 %v636
    %1473 = vmatpush.bf16.msra.mxu0 %v607
    %1474 = vmatpush.bf16.msra.mxu0 %v605
    %1475 = vmatpush.bf16.msra.mxu0 %v603
    %1476 = vmatpush.bf16.msra.mxu0 %v601
    %1477 = vmatmul.bf16.gmra.mxu0 %v1128
    %v1478 = vpop.f32.mrf.mxu0
    %v1479 = vadd.f32 0.0, %v1478
    %v1480 = vpop.f32.mrf.mxu0
    %v1481 = vadd.f32 0.0, %v1480
    %1482 = vmatmul.bf16.gmra.mxu0 %v1133
    %v1483 = vpop.f32.mrf.mxu0
    %v1484 = vadd.f32 0.0, %v1483
    %v1485 = vpop.f32.mrf.mxu0
    %v1486 = vadd.f32 0.0, %v1485
    %1487 = vmatmul.bf16.gmra.mxu0 %v1138
    %v1488 = vpop.f32.mrf.mxu0
    %v1489 = vadd.f32 0.0, %v1488
    %v1490 = vpop.f32.mrf.mxu0
    %v1491 = vadd.f32 0.0, %v1490
    %1492 = vmatmul.bf16.gmra.mxu0 %v1143
    %v1493 = vpop.f32.mrf.mxu0
    %v1494 = vadd.f32 0.0, %v1493
    %v1495 = vpop.f32.mrf.mxu0
    %v1496 = vadd.f32 0.0, %v1495
    %1497 = vmatmul.bf16.gmra.mxu0 %v1148
    %v1498 = vpop.f32.mrf.mxu0
    %v1499 = vadd.f32 0.0, %v1498
    %v1500 = vpop.f32.mrf.mxu0
    %v1501 = vadd.f32 0.0, %v1500
    %1502 = vmatmul.bf16.gmra.mxu0 %v1153
    %v1503 = vpop.f32.mrf.mxu0
    %v1504 = vadd.f32 0.0, %v1503
    %v1505 = vpop.f32.mrf.mxu0
    %v1506 = vadd.f32 0.0, %v1505
    %1507 = vmatmul.bf16.gmra.mxu0 %v1158
    %v1508 = vpop.f32.mrf.mxu0
    %v1509 = vadd.f32 0.0, %v1508
    %v1510 = vpop.f32.mrf.mxu0
    %v1511 = vadd.f32 0.0, %v1510
    %1512 = vmatmul.bf16.gmra.mxu0 %v1163
    %v1513 = vpop.f32.mrf.mxu0
    %v1514 = vadd.f32 0.0, %v1513
    %v1515 = vpop.f32.mrf.mxu0
    %v1516 = vadd.f32 0.0, %v1515
    %1517 = vdwg.mxu0
    %1518 = vmatpush.bf16.msra.mxu0 %v732
    %1519 = vmatpush.bf16.msra.mxu0 %v728
    %1520 = vmatpush.bf16.msra.mxu0 %v724
    %1521 = vmatpush.bf16.msra.mxu0 %v720
    %1522 = vmatpush.bf16.msra.mxu0 %v690
    %1523 = vmatpush.bf16.msra.mxu0 %v686
    %1524 = vmatpush.bf16.msra.mxu0 %v682
    %1525 = vmatpush.bf16.msra.mxu0 %v678
    %1526 = vmatmul.bf16.gmra.mxu0 %v1129
    %v1527 = vpop.f32.mrf.mxu0
    %v1528 = vadd.f32 %v1479, %v1527
    %v1529 = vpop.f32.mrf.mxu0
    %v1530 = vadd.f32 %v1481, %v1529
    %1531 = vmatmul.bf16.gmra.mxu0 %v1134
    %v1532 = vpop.f32.mrf.mxu0
    %v1533 = vadd.f32 %v1484, %v1532
    %v1534 = vpop.f32.mrf.mxu0
    %v1535 = vadd.f32 %v1486, %v1534
    %1536 = vmatmul.bf16.gmra.mxu0 %v1139
    %v1537 = vpop.f32.mrf.mxu0
    %v1538 = vadd.f32 %v1489, %v1537
    %v1539 = vpop.f32.mrf.mxu0
    %v1540 = vadd.f32 %v1491, %v1539
    %1541 = vmatmul.bf16.gmra.mxu0 %v1144
    %v1542 = vpop.f32.mrf.mxu0
    %v1543 = vadd.f32 %v1494, %v1542
    %v1544 = vpop.f32.mrf.mxu0
    %v1545 = vadd.f32 %v1496, %v1544
    %1546 = vmatmul.bf16.gmra.mxu0 %v1149
    %v1547 = vpop.f32.mrf.mxu0
    %v1548 = vadd.f32 %v1499, %v1547
    %v1549 = vpop.f32.mrf.mxu0
    %v1550 = vadd.f32 %v1501, %v1549
    %1551 = vmatmul.bf16.gmra.mxu0 %v1154
    %v1552 = vpop.f32.mrf.mxu0
    %v1553 = vadd.f32 %v1504, %v1552
    %v1554 = vpop.f32.mrf.mxu0
    %v1555 = vadd.f32 %v1506, %v1554
    %1556 = vmatmul.bf16.gmra.mxu0 %v1159
    %v1557 = vpop.f32.mrf.mxu0
    %v1558 = vadd.f32 %v1509, %v1557
    %v1559 = vpop.f32.mrf.mxu0
    %v1560 = vadd.f32 %v1511, %v1559
    %1561 = vmatmul.bf16.gmra.mxu0 %v1164
    %v1562 = vpop.f32.mrf.mxu0
    %v1563 = vadd.f32 %v1514, %v1562
    %v1564 = vpop.f32.mrf.mxu0
    %v1565 = vadd.f32 %v1516, %v1564
    %1566 = vdwg.mxu0
    %1567 = vmatpush.bf16.msra.mxu0 %v816
    %1568 = vmatpush.bf16.msra.mxu0 %v812
    %1569 = vmatpush.bf16.msra.mxu0 %v808
    %1570 = vmatpush.bf16.msra.mxu0 %v804
    %1571 = vmatpush.bf16.msra.mxu0 %v774
    %1572 = vmatpush.bf16.msra.mxu0 %v770
    %1573 = vmatpush.bf16.msra.mxu0 %v766
    %1574 = vmatpush.bf16.msra.mxu0 %v762
    %1575 = vmatmul.bf16.gmra.mxu0 %v1130
    %v1576 = vpop.f32.mrf.mxu0
    %v1577 = vadd.f32 %v1528, %v1576
    %v1578 = vpop.f32.mrf.mxu0
    %v1579 = vadd.f32 %v1530, %v1578
    %1580 = vmatmul.bf16.gmra.mxu0 %v1135
    %v1581 = vpop.f32.mrf.mxu0
    %v1582 = vadd.f32 %v1533, %v1581
    %v1583 = vpop.f32.mrf.mxu0
    %v1584 = vadd.f32 %v1535, %v1583
    %1585 = vmatmul.bf16.gmra.mxu0 %v1140
    %v1586 = vpop.f32.mrf.mxu0
    %v1587 = vadd.f32 %v1538, %v1586
    %v1588 = vpop.f32.mrf.mxu0
    %v1589 = vadd.f32 %v1540, %v1588
    %1590 = vmatmul.bf16.gmra.mxu0 %v1145
    %v1591 = vpop.f32.mrf.mxu0
    %v1592 = vadd.f32 %v1543, %v1591
    %v1593 = vpop.f32.mrf.mxu0
    %v1594 = vadd.f32 %v1545, %v1593
    %1595 = vmatmul.bf16.gmra.mxu0 %v1150
    %v1596 = vpop.f32.mrf.mxu0
    %v1597 = vadd.f32 %v1548, %v1596
    %v1598 = vpop.f32.mrf.mxu0
    %v1599 = vadd.f32 %v1550, %v1598
    %1600 = vmatmul.bf16.gmra.mxu0 %v1155
    %v1601 = vpop.f32.mrf.mxu0
    %v1602 = vadd.f32 %v1553, %v1601
    %v1603 = vpop.f32.mrf.mxu0
    %v1604 = vadd.f32 %v1555, %v1603
    %1605 = vmatmul.bf16.gmra.mxu0 %v1160
    %v1606 = vpop.f32.mrf.mxu0
    %v1607 = vadd.f32 %v1558, %v1606
    %v1608 = vpop.f32.mrf.mxu0
    %v1609 = vadd.f32 %v1560, %v1608
    %1610 = vmatmul.bf16.gmra.mxu0 %v1165
    %v1611 = vpop.f32.mrf.mxu0
    %v1612 = vadd.f32 %v1563, %v1611
    %v1613 = vpop.f32.mrf.mxu0
    %v1614 = vadd.f32 %v1565, %v1613
    %1615 = vdwg.mxu0
    %1616 = vmatpush.bf16.msra.mxu0 %v900
    %1617 = vmatpush.bf16.msra.mxu0 %v896
    %1618 = vmatpush.bf16.msra.mxu0 %v892
    %1619 = vmatpush.bf16.msra.mxu0 %v888
    %1620 = vmatpush.bf16.msra.mxu0 %v858
    %1621 = vmatpush.bf16.msra.mxu0 %v854
    %1622 = vmatpush.bf16.msra.mxu0 %v850
    %1623 = vmatpush.bf16.msra.mxu0 %v846
    %1624 = vmatmul.bf16.gmra.mxu0 %v1131
    %v1625 = vpop.f32.mrf.mxu0
    %v1626 = vadd.f32 %v1577, %v1625
    %v1627 = vpop.f32.mrf.mxu0
    %v1628 = vadd.f32 %v1579, %v1627
    %1629 = vmatmul.bf16.gmra.mxu0 %v1136
    %v1630 = vpop.f32.mrf.mxu0
    %v1631 = vadd.f32 %v1582, %v1630
    %v1632 = vpop.f32.mrf.mxu0
    %v1633 = vadd.f32 %v1584, %v1632
    %1634 = vmatmul.bf16.gmra.mxu0 %v1141
    %v1635 = vpop.f32.mrf.mxu0
    %v1636 = vadd.f32 %v1587, %v1635
    %v1637 = vpop.f32.mrf.mxu0
    %v1638 = vadd.f32 %v1589, %v1637
    %1639 = vmatmul.bf16.gmra.mxu0 %v1146
    %v1640 = vpop.f32.mrf.mxu0
    %v1641 = vadd.f32 %v1592, %v1640
    %v1642 = vpop.f32.mrf.mxu0
    %v1643 = vadd.f32 %v1594, %v1642
    %1644 = vmatmul.bf16.gmra.mxu0 %v1151
    %v1645 = vpop.f32.mrf.mxu0
    %v1646 = vadd.f32 %v1597, %v1645
    %v1647 = vpop.f32.mrf.mxu0
    %v1648 = vadd.f32 %v1599, %v1647
    %1649 = vmatmul.bf16.gmra.mxu0 %v1156
    %v1650 = vpop.f32.mrf.mxu0
    %v1651 = vadd.f32 %v1602, %v1650
    %v1652 = vpop.f32.mrf.mxu0
    %v1653 = vadd.f32 %v1604, %v1652
    %1654 = vmatmul.bf16.gmra.mxu0 %v1161
    %v1655 = vpop.f32.mrf.mxu0
    %v1656 = vadd.f32 %v1607, %v1655
    %v1657 = vpop.f32.mrf.mxu0
    %v1658 = vadd.f32 %v1609, %v1657
    %1659 = vmatmul.bf16.gmra.mxu0 %v1166
    %v1660 = vpop.f32.mrf.mxu0
    %v1661 = vadd.f32 %v1612, %v1660
    %v1662 = vpop.f32.mrf.mxu0
    %v1663 = vadd.f32 %v1614, %v1662
    %1664 = vdwg.mxu0
    %1665 = vmatpush.bf16.msra.mxu0 0
    %1666 = vmatpush.bf16.msra.mxu0 0
    %1667 = vmatpush.bf16.msra.mxu0 0
    %1668 = vmatpush.bf16.msra.mxu0 0
    %1669 = vmatpush.bf16.msra.mxu0 %v942
    %1670 = vmatpush.bf16.msra.mxu0 %v938
    %1671 = vmatpush.bf16.msra.mxu0 %v934
    %1672 = vmatpush.bf16.msra.mxu0 %v930
    %1673 = vmatmul.bf16.gmra.mxu0 %v1201
    %v1674 = vpop.f32.mrf.mxu0
    %v1675 = vadd.f32 %v1626, %v1674
    %v1676 = vpop.f32.mrf.mxu0
    %v1677 = vadd.f32 %v1628, %v1676
    %1678 = vmatmul.bf16.gmra.mxu0 %v1204
    %v1679 = vpop.f32.mrf.mxu0
    %v1680 = vadd.f32 %v1631, %v1679
    %v1681 = vpop.f32.mrf.mxu0
    %v1682 = vadd.f32 %v1633, %v1681
    %1683 = vmatmul.bf16.gmra.mxu0 %v1207
    %v1684 = vpop.f32.mrf.mxu0
    %v1685 = vadd.f32 %v1636, %v1684
    %v1686 = vpop.f32.mrf.mxu0
    %v1687 = vadd.f32 %v1638, %v1686
    %1688 = vmatmul.bf16.gmra.mxu0 %v1210
    %v1689 = vpop.f32.mrf.mxu0
    %v1690 = vadd.f32 %v1641, %v1689
    %v1691 = vpop.f32.mrf.mxu0
    %v1692 = vadd.f32 %v1643, %v1691
    %1693 = vmatmul.bf16.gmra.mxu0 %v1213
    %v1694 = vpop.f32.mrf.mxu0
    %v1695 = vadd.f32 %v1646, %v1694
    %v1696 = vpop.f32.mrf.mxu0
    %v1697 = vadd.f32 %v1648, %v1696
    %1698 = vmatmul.bf16.gmra.mxu0 %v1216
    %v1699 = vpop.f32.mrf.mxu0
    %v1700 = vadd.f32 %v1651, %v1699
    %v1701 = vpop.f32.mrf.mxu0
    %v1702 = vadd.f32 %v1653, %v1701
    %1703 = vmatmul.bf16.gmra.mxu0 %v1219
    %v1704 = vpop.f32.mrf.mxu0
    %v1705 = vadd.f32 %v1656, %v1704
    %v1706 = vpop.f32.mrf.mxu0
    %v1707 = vadd.f32 %v1658, %v1706
    %1708 = vmatmul.bf16.gmra.mxu0 %v1222
    %v1709 = vpop.f32.mrf.mxu0
    %v1710 = vadd.f32 %v1661, %v1709
    %v1711 = vpop.f32.mrf.mxu0
    %v1712 = vadd.f32 %v1663, %v1711
    %1713 = vdwg.mxu0
    %v1714 = vmax.f32 %v1430, %v1440
    %v1715 = vmax.f32 %v1675, %v1685
    %v1716 = vmax.f32 %v1432, %v1442
    %v1717 = vmax.f32 %v1677, %v1687
    %v1718 = vmax.f32 %v1435, %v1445
    %v1719 = vmax.f32 %v1680, %v1690
    %v1720 = vmax.f32 %v1437, %v1447
    %v1721 = vmax.f32 %v1682, %v1692
    %v1722 = vmax.f32 %v1450, %v1460
    %v1723 = vmax.f32 %v1695, %v1705
    %v1724 = vmax.f32 %v1452, %v1462
    %v1725 = vmax.f32 %v1697, %v1707
    %v1726 = vmax.f32 %v1455, %v1465
    %v1727 = vmax.f32 %v1700, %v1710
    %v1728 = vmax.f32 %v1457, %v1467
    %v1729 = vmax.f32 %v1702, %v1712
    %v1730 = vmax.f32 %v1714, %v1722
    %v1731 = vmax.f32 %v1715, %v1723
    %v1732 = vmax.f32 %v1716, %v1724
    %v1733 = vmax.f32 %v1717, %v1725
    %v1734 = vmax.f32 %v1718, %v1726
    %v1735 = vmax.f32 %v1719, %v1727
    %v1736 = vmax.f32 %v1720, %v1728
    %v1737 = vmax.f32 %v1721, %v1729
    %v1738 = vld [vmem:[%s4] sm:$0xff]
    %v1739 = vld [vmem:[%s4 + $0x8] sm:$0xff]
    %v1740 = vld [vmem:[%s4 + $0x10] sm:$0xff]
    %v1741 = vld [vmem:[%s4 + $0x18] sm:$0xff]
    %1743 = vset.pattern.permute.xlu0 0
    %1744 = vperm.xlu0 %1743, %v1738
    %v1745 = vpop.permute.xlu0 %1744
    %1748 = vset.pattern.permute.xlu0 0
    %1749 = vperm.xlu0 %1748, %v1739
    %v1750 = vpop.permute.xlu0 %1749
    %1753 = vset.pattern.permute.xlu0 0
    %1754 = vperm.xlu0 %1753, %v1740
    %v1755 = vpop.permute.xlu0 %1754
    %1758 = vset.pattern.permute.xlu0 0
    %1759 = vperm.xlu0 %1758, %v1741
    %v1760 = vpop.permute.xlu0 %1759
    %v1762 = vadd.f32 %v1730, %v1745
    %v1763 = vadd.f32 %v1731, %v1745
    %v1764 = vadd.f32 %v1732, %v1750
    %v1765 = vadd.f32 %v1733, %v1750
    %v1766 = vadd.f32 %v1734, %v1755
    %v1767 = vadd.f32 %v1735, %v1755
    %v1768 = vadd.f32 %v1736, %v1760
    %v1769 = vadd.f32 %v1737, %v1760
    %v1770 = vmax.f32 %v1762, 0.0
    %v1771 = vmax.f32 %v1763, 0.0
    %v1772 = vmax.f32 %v1764, 0.0
    %v1773 = vmax.f32 %v1765, 0.0
    %v1774 = vmax.f32 %v1766, 0.0
    %v1775 = vmax.f32 %v1767, 0.0
    %v1776 = vmax.f32 %v1768, 0.0
    %v1777 = vmax.f32 %v1769, 0.0
    %v1779 = vrot.slane %v1770, 1
    %v1781 = vrot.slane %v1770, 2
    %v1783 = vrot.slane %v1770, 3
    %v1785 = vrot.slane %v1770, 4
    %v1787 = vrot.slane %v1770, 5
    %v1789 = vrot.slane %v1770, 6
    %v1791 = vrot.slane %v1770, 7
    %v1794 = vrot.slane %v1772, 1
    %v1796 = vrot.slane %v1772, 2
    %v1798 = vrot.slane %v1772, 3
    %v1800 = vrot.slane %v1772, 4
    %v1802 = vrot.slane %v1772, 5
    %v1804 = vrot.slane %v1772, 6
    %v1806 = vrot.slane %v1772, 7
    %v1809 = vrot.slane %v1774, 1
    %v1811 = vrot.slane %v1774, 2
    %v1813 = vrot.slane %v1774, 3
    %v1815 = vrot.slane %v1774, 4
    %v1817 = vrot.slane %v1774, 5
    %v1819 = vrot.slane %v1774, 6
    %v1821 = vrot.slane %v1774, 7
    %v1824 = vrot.slane %v1776, 1
    %v1826 = vrot.slane %v1776, 2
    %v1828 = vrot.slane %v1776, 3
    %v1830 = vrot.slane %v1776, 4
    %v1832 = vrot.slane %v1776, 5
    %v1834 = vrot.slane %v1776, 6
    %v1836 = vrot.slane %v1776, 7
    %v1839 = vrot.slane %v1771, 1
    %v1840 = vrot.slane %v1771, 2
    %v1841 = vrot.slane %v1771, 3
    %v1842 = vrot.slane %v1771, 4
    %v1843 = vrot.slane %v1771, 5
    %v1844 = vrot.slane %v1771, 6
    %v1845 = vrot.slane %v1771, 7
    %v1847 = vrot.slane %v1773, 1
    %v1848 = vrot.slane %v1773, 2
    %v1849 = vrot.slane %v1773, 3
    %v1850 = vrot.slane %v1773, 4
    %v1851 = vrot.slane %v1773, 5
    %v1852 = vrot.slane %v1773, 6
    %v1853 = vrot.slane %v1773, 7
    %v1855 = vrot.slane %v1775, 1
    %v1856 = vrot.slane %v1775, 2
    %v1857 = vrot.slane %v1775, 3
    %v1858 = vrot.slane %v1775, 4
    %v1859 = vrot.slane %v1775, 5
    %v1860 = vrot.slane %v1775, 6
    %v1861 = vrot.slane %v1775, 7
    %v1863 = vrot.slane %v1777, 1
    %v1864 = vrot.slane %v1777, 2
    %v1865 = vrot.slane %v1777, 3
    %v1866 = vrot.slane %v1777, 4
    %v1867 = vrot.slane %v1777, 5
    %v1868 = vrot.slane %v1777, 6
    %v1869 = vrot.slane %v1777, 7
    %v1870 = vrot.slane %v1839, 7
    %v1871 = vrot.slane %v1840, 7
    %v1872 = vrot.slane %v1841, 7
    %v1873 = vrot.slane %v1842, 7
    %v1874 = vrot.slane %v1843, 7
    %v1875 = vrot.slane %v1844, 7
    %v1876 = vrot.slane %v1845, 7
    %v1877 = vrot.slane %v1847, 7
    %v1878 = vrot.slane %v1848, 7
    %v1879 = vrot.slane %v1849, 7
    %v1880 = vrot.slane %v1850, 7
    %v1881 = vrot.slane %v1851, 7
    %v1882 = vrot.slane %v1852, 7
    %v1883 = vrot.slane %v1853, 7
    %v1884 = vrot.slane %v1855, 7
    %v1885 = vrot.slane %v1856, 7
    %v1886 = vrot.slane %v1857, 7
    %v1887 = vrot.slane %v1858, 7
    %v1888 = vrot.slane %v1859, 7
    %v1889 = vrot.slane %v1860, 7
    %v1890 = vrot.slane %v1861, 7
    %v1891 = vrot.slane %v1863, 7
    %v1892 = vrot.slane %v1864, 7
    %v1893 = vrot.slane %v1865, 7
    %v1894 = vrot.slane %v1866, 7
    %v1895 = vrot.slane %v1867, 7
    %v1896 = vrot.slane %v1868, 7
    %v1897 = vrot.slane %v1869, 7
    %vm1930 = vcmask 1040384
    %v1931 = vsel %vm1930, %v1770, %v1845
    %v1932 = vsel %vm1930, %v1779, %v1870
    %v1933 = vsel %vm1930, %v1781, %v1871
    %v1934 = vsel %vm1930, %v1783, %v1872
    %v1935 = vsel %vm1930, %v1785, %v1873
    %v1936 = vsel %vm1930, %v1787, %v1874
    %v1937 = vsel %vm1930, %v1789, %v1875
    %v1938 = vsel %vm1930, %v1791, %v1876
    %v1939 = vsel %vm1930, %v1772, %v1853
    %v1940 = vsel %vm1930, %v1794, %v1877
    %v1941 = vsel %vm1930, %v1796, %v1878
    %v1942 = vsel %vm1930, %v1798, %v1879
    %v1943 = vsel %vm1930, %v1800, %v1880
    %v1944 = vsel %vm1930, %v1802, %v1881
    %v1945 = vsel %vm1930, %v1804, %v1882
    %v1946 = vsel %vm1930, %v1806, %v1883
    %v1947 = vsel %vm1930, %v1774, %v1861
    %v1948 = vsel %vm1930, %v1809, %v1884
    %v1949 = vsel %vm1930, %v1811, %v1885
    %v1950 = vsel %vm1930, %v1813, %v1886
    %v1951 = vsel %vm1930, %v1815, %v1887
    %v1952 = vsel %vm1930, %v1817, %v1888
    %v1953 = vsel %vm1930, %v1819, %v1889
    %v1954 = vsel %vm1930, %v1821, %v1890
    %v1955 = vsel %vm1930, %v1776, %v1869
    %v1956 = vsel %vm1930, %v1824, %v1891
    %v1957 = vsel %vm1930, %v1826, %v1892
    %v1958 = vsel %vm1930, %v1828, %v1893
    %v1959 = vsel %vm1930, %v1830, %v1894
    %v1960 = vsel %vm1930, %v1832, %v1895
    %v1961 = vsel %vm1930, %v1834, %v1896
    %v1962 = vsel %vm1930, %v1836, %v1897
    %v1963 = vpack.c.bf16 %v1931, %v1931
    %v1964 = vpack.c.bf16 %v1932, %v1932
    %v1965 = vpack.c.bf16 %v1933, %v1933
    %v1966 = vpack.c.bf16 %v1934, %v1934
    %v1967 = vpack.c.bf16 %v1935, %v1935
    %v1968 = vpack.c.bf16 %v1936, %v1936
    %v1969 = vpack.c.bf16 %v1937, %v1937
    %v1970 = vpack.c.bf16 %v1938, %v1938
    %v1971 = vpack.c.bf16 %v1939, %v1939
    %v1972 = vpack.c.bf16 %v1940, %v1940
    %v1973 = vpack.c.bf16 %v1941, %v1941
    %v1974 = vpack.c.bf16 %v1942, %v1942
    %v1975 = vpack.c.bf16 %v1943, %v1943
    %v1976 = vpack.c.bf16 %v1944, %v1944
    %v1977 = vpack.c.bf16 %v1945, %v1945
    %v1978 = vpack.c.bf16 %v1946, %v1946
    %v1979 = vpack.c.bf16 %v1947, %v1947
    %v1980 = vpack.c.bf16 %v1948, %v1948
    %v1981 = vpack.c.bf16 %v1949, %v1949
    %v1982 = vpack.c.bf16 %v1950, %v1950
    %v1983 = vpack.c.bf16 %v1951, %v1951
    %v1984 = vpack.c.bf16 %v1952, %v1952
    %v1985 = vpack.c.bf16 %v1953, %v1953
    %v1986 = vpack.c.bf16 %v1954, %v1954
    %v1987 = vpack.c.bf16 %v1955, %v1955
    %v1988 = vpack.c.bf16 %v1956, %v1956
    %v1989 = vpack.c.bf16 %v1957, %v1957
    %v1990 = vpack.c.bf16 %v1958, %v1958
    %v1991 = vpack.c.bf16 %v1959, %v1959
    %v1992 = vpack.c.bf16 %v1960, %v1960
    %v1993 = vpack.c.bf16 %v1961, %v1961
    %v1994 = vpack.c.bf16 %v1962, %v1962
    %v1995 = vld [vmem:[%s5] sm:$0xf]
    %v1996 = vld [vmem:[%s5 + $0x4] sm:$0xf]
    %v1997 = vld [vmem:[%s5 + $0x8] sm:$0xf]
    %v1998 = vld [vmem:[%s5 + $0xc] sm:$0xf]
    %v1999 = vld [vmem:[%s5 + $0x10] sm:$0xf]
    %v2000 = vld [vmem:[%s5 + $0x14] sm:$0xf]
    %v2001 = vld [vmem:[%s5 + $0x18] sm:$0xf]
    %v2002 = vld [vmem:[%s5 + $0x1c] sm:$0xf]
    %v2003 = vld [vmem:[%s5 + $0x20] sm:$0xf]
    %v2004 = vld [vmem:[%s5 + $0x24] sm:$0xf]
    %v2005 = vld [vmem:[%s5 + $0x28] sm:$0xf]
    %v2006 = vld [vmem:[%s5 + $0x2c] sm:$0xf]
    %v2007 = vld [vmem:[%s5 + $0x30] sm:$0xf]
    %v2008 = vld [vmem:[%s5 + $0x34] sm:$0xf]
    %v2009 = vld [vmem:[%s5 + $0x38] sm:$0xf]
    %v2010 = vld [vmem:[%s5 + $0x3c] sm:$0xf]
    %v2011 = vld [vmem:[%s5 + $0x40] sm:$0xf]
    %v2012 = vld [vmem:[%s5 + $0x44] sm:$0xf]
    %v2013 = vld [vmem:[%s5 + $0x48] sm:$0xf]
    %v2014 = vld [vmem:[%s5 + $0x4c] sm:$0xf]
    %v2015 = vld [vmem:[%s5 + $0x50] sm:$0xf]
    %v2016 = vld [vmem:[%s5 + $0x54] sm:$0xf]
    %v2017 = vld [vmem:[%s5 + $0x58] sm:$0xf]
    %v2018 = vld [vmem:[%s5 + $0x5c] sm:$0xf]
    %v2019 = vld [vmem:[%s5 + $0x60] sm:$0xf]
    %v2020 = vld [vmem:[%s5 + $0x64] sm:$0xf]
    %v2021 = vld [vmem:[%s5 + $0x68] sm:$0xf]
    %v2022 = vld [vmem:[%s5 + $0x6c] sm:$0xf]
    %v2023 = vld [vmem:[%s5 + $0x70] sm:$0xf]
    %v2024 = vld [vmem:[%s5 + $0x74] sm:$0xf]
    %v2025 = vld [vmem:[%s5 + $0x78] sm:$0xf]
    %v2026 = vld [vmem:[%s5 + $0x7c] sm:$0xf]
    %v2027 = vld [vmem:[%s5 + $0x80] sm:$0xf]
    %v2028 = vld [vmem:[%s5 + $0x84] sm:$0xf]
    %v2029 = vld [vmem:[%s5 + $0x88] sm:$0xf]
    %v2030 = vld [vmem:[%s5 + $0x8c] sm:$0xf]
    %v2031 = vld [vmem:[%s5 + $0x90] sm:$0xf]
    %v2032 = vld [vmem:[%s5 + $0x94] sm:$0xf]
    %v2033 = vld [vmem:[%s5 + $0x98] sm:$0xf]
    %v2034 = vld [vmem:[%s5 + $0x9c] sm:$0xf]
    %v2035 = vld [vmem:[%s5 + $0xa0] sm:$0xf]
    %v2036 = vld [vmem:[%s5 + $0xa4] sm:$0xf]
    %v2037 = vld [vmem:[%s5 + $0xa8] sm:$0xf]
    %v2038 = vld [vmem:[%s5 + $0xac] sm:$0xf]
    %v2039 = vld [vmem:[%s5 + $0xb0] sm:$0xf]
    %v2040 = vld [vmem:[%s5 + $0xb4] sm:$0xf]
    %v2041 = vld [vmem:[%s5 + $0xb8] sm:$0xf]
    %v2042 = vld [vmem:[%s5 + $0xbc] sm:$0xf]
    %v2043 = vld [vmem:[%s5 + $0xc0] sm:$0xf]
    %v2044 = vld [vmem:[%s5 + $0xc4] sm:$0xf]
    %v2045 = vld [vmem:[%s5 + $0xc8] sm:$0xf]
    %v2046 = vld [vmem:[%s5 + $0xcc] sm:$0xf]
    %v2047 = vld [vmem:[%s5 + $0xd0] sm:$0xf]
    %v2048 = vld [vmem:[%s5 + $0xd4] sm:$0xf]
    %v2049 = vld [vmem:[%s5 + $0xd8] sm:$0xf]
    %v2050 = vld [vmem:[%s5 + $0xdc] sm:$0xf]
    %v2051 = vld [vmem:[%s5 + $0xe0] sm:$0xf]
    %v2052 = vld [vmem:[%s5 + $0xe4] sm:$0xf]
    %v2053 = vld [vmem:[%s5 + $0xe8] sm:$0xf]
    %v2054 = vld [vmem:[%s5 + $0xec] sm:$0xf]
    %v2055 = vld [vmem:[%s5 + $0xf0] sm:$0xf]
    %v2056 = vld [vmem:[%s5 + $0xf4] sm:$0xf]
    %v2057 = vld [vmem:[%s5 + $0xf8] sm:$0xf]
    %v2058 = vld [vmem:[%s5 + $0xfc] sm:$0xf]
    %v2059 = vld [vmem:[%s5 + $0x100] sm:$0xf]
    %v2060 = vld [vmem:[%s5 + $0x104] sm:$0xf]
    %v2061 = vld [vmem:[%s5 + $0x108] sm:$0xf]
    %v2062 = vld [vmem:[%s5 + $0x10c] sm:$0xf]
    %v2063 = vld [vmem:[%s5 + $0x110] sm:$0xf]
    %v2064 = vld [vmem:[%s5 + $0x114] sm:$0xf]
    %v2065 = vld [vmem:[%s5 + $0x118] sm:$0xf]
    %v2066 = vld [vmem:[%s5 + $0x11c] sm:$0xf]
    %v2067 = vld [vmem:[%s5 + $0x120] sm:$0xf]
    %v2068 = vld [vmem:[%s5 + $0x124] sm:$0xf]
    %v2069 = vld [vmem:[%s5 + $0x128] sm:$0xf]
    %v2070 = vld [vmem:[%s5 + $0x12c] sm:$0xf]
    %v2071 = vld [vmem:[%s5 + $0x130] sm:$0xf]
    %v2072 = vld [vmem:[%s5 + $0x134] sm:$0xf]
    %v2073 = vld [vmem:[%s5 + $0x138] sm:$0xf]
    %v2074 = vld [vmem:[%s5 + $0x13c] sm:$0xf]
    %v2075 = vld [vmem:[%s5 + $0x140] sm:$0xf]
    %v2076 = vld [vmem:[%s5 + $0x144] sm:$0xf]
    %v2077 = vld [vmem:[%s5 + $0x148] sm:$0xf]
    %v2078 = vld [vmem:[%s5 + $0x14c] sm:$0xf]
    %v2079 = vld [vmem:[%s5 + $0x150] sm:$0xf]
    %v2080 = vld [vmem:[%s5 + $0x154] sm:$0xf]
    %v2081 = vld [vmem:[%s5 + $0x158] sm:$0xf]
    %v2082 = vld [vmem:[%s5 + $0x15c] sm:$0xf]
    %v2083 = vld [vmem:[%s5 + $0x160] sm:$0xf]
    %v2084 = vld [vmem:[%s5 + $0x164] sm:$0xf]
    %v2085 = vld [vmem:[%s5 + $0x168] sm:$0xf]
    %v2086 = vld [vmem:[%s5 + $0x16c] sm:$0xf]
    %v2087 = vld [vmem:[%s5 + $0x170] sm:$0xf]
    %v2088 = vld [vmem:[%s5 + $0x174] sm:$0xf]
    %v2089 = vld [vmem:[%s5 + $0x178] sm:$0xf]
    %v2090 = vld [vmem:[%s5 + $0x17c] sm:$0xf]
    %v2091 = vld [vmem:[%s5 + $0x180] sm:$0xf]
    %v2092 = vld [vmem:[%s5 + $0x184] sm:$0xf]
    %v2093 = vld [vmem:[%s5 + $0x188] sm:$0xf]
    %v2094 = vld [vmem:[%s5 + $0x18c] sm:$0xf]
    %v2095 = vld [vmem:[%s5 + $0x190] sm:$0xf]
    %v2096 = vld [vmem:[%s5 + $0x194] sm:$0xf]
    %v2097 = vld [vmem:[%s5 + $0x198] sm:$0xf]
    %v2098 = vld [vmem:[%s5 + $0x19c] sm:$0xf]
    %v2099 = vld [vmem:[%s5 + $0x1a0] sm:$0xf]
    %v2100 = vld [vmem:[%s5 + $0x1a4] sm:$0xf]
    %v2101 = vld [vmem:[%s5 + $0x1a8] sm:$0xf]
    %v2102 = vld [vmem:[%s5 + $0x1ac] sm:$0xf]
    %v2103 = vld [vmem:[%s5 + $0x1b0] sm:$0xf]
    %v2104 = vld [vmem:[%s5 + $0x1b4] sm:$0xf]
    %v2105 = vld [vmem:[%s5 + $0x1b8] sm:$0xf]
    %v2106 = vld [vmem:[%s5 + $0x1bc] sm:$0xf]
    %v2107 = vld [vmem:[%s5 + $0x1c0] sm:$0xf]
    %v2108 = vld [vmem:[%s5 + $0x1c4] sm:$0xf]
    %v2109 = vld [vmem:[%s5 + $0x1c8] sm:$0xf]
    %v2110 = vld [vmem:[%s5 + $0x1cc] sm:$0xf]
    %v2111 = vld [vmem:[%s5 + $0x1d0] sm:$0xf]
    %v2112 = vld [vmem:[%s5 + $0x1d4] sm:$0xf]
    %v2113 = vld [vmem:[%s5 + $0x1d8] sm:$0xf]
    %v2114 = vld [vmem:[%s5 + $0x1dc] sm:$0xf]
    %v2115 = vld [vmem:[%s5 + $0x1e0] sm:$0xf]
    %v2116 = vld [vmem:[%s5 + $0x1e4] sm:$0xf]
    %v2117 = vld [vmem:[%s5 + $0x1e8] sm:$0xf]
    %v2118 = vld [vmem:[%s5 + $0x1ec] sm:$0xf]
    %v2119 = vld [vmem:[%s5 + $0x1f0] sm:$0xf]
    %v2120 = vld [vmem:[%s5 + $0x1f4] sm:$0xf]
    %v2121 = vld [vmem:[%s5 + $0x1f8] sm:$0xf]
    %v2122 = vld [vmem:[%s5 + $0x1fc] sm:$0xf]
    %v2123 = vld [vmem:[%s5 + $0x200] sm:$0xf]
    %v2124 = vld [vmem:[%s5 + $0x204] sm:$0xf]
    %v2125 = vld [vmem:[%s5 + $0x208] sm:$0xf]
    %v2126 = vld [vmem:[%s5 + $0x20c] sm:$0xf]
    %v2127 = vld [vmem:[%s5 + $0x210] sm:$0xf]
    %v2128 = vld [vmem:[%s5 + $0x214] sm:$0xf]
    %v2129 = vld [vmem:[%s5 + $0x218] sm:$0xf]
    %v2130 = vld [vmem:[%s5 + $0x21c] sm:$0xf]
    %v2131 = vld [vmem:[%s5 + $0x220] sm:$0xf]
    %v2132 = vld [vmem:[%s5 + $0x224] sm:$0xf]
    %v2133 = vld [vmem:[%s5 + $0x228] sm:$0xf]
    %v2134 = vld [vmem:[%s5 + $0x22c] sm:$0xf]
    %v2135 = vld [vmem:[%s5 + $0x230] sm:$0xf]
    %v2136 = vld [vmem:[%s5 + $0x234] sm:$0xf]
    %v2137 = vld [vmem:[%s5 + $0x238] sm:$0xf]
    %v2138 = vld [vmem:[%s5 + $0x23c] sm:$0xf]
    %v2139 = vld [vmem:[%s5 + $0x240] sm:$0xf]
    %v2140 = vld [vmem:[%s5 + $0x244] sm:$0xf]
    %v2141 = vld [vmem:[%s5 + $0x248] sm:$0xf]
    %v2142 = vld [vmem:[%s5 + $0x24c] sm:$0xf]
    %v2143 = vld [vmem:[%s5 + $0x250] sm:$0xf]
    %v2144 = vld [vmem:[%s5 + $0x254] sm:$0xf]
    %v2145 = vld [vmem:[%s5 + $0x258] sm:$0xf]
    %v2146 = vld [vmem:[%s5 + $0x25c] sm:$0xf]
    %v2147 = vld [vmem:[%s5 + $0x260] sm:$0xf]
    %v2148 = vld [vmem:[%s5 + $0x264] sm:$0xf]
    %v2149 = vld [vmem:[%s5 + $0x268] sm:$0xf]
    %v2150 = vld [vmem:[%s5 + $0x26c] sm:$0xf]
    %v2151 = vld [vmem:[%s5 + $0x270] sm:$0xf]
    %v2152 = vld [vmem:[%s5 + $0x274] sm:$0xf]
    %v2153 = vld [vmem:[%s5 + $0x278] sm:$0xf]
    %v2154 = vld [vmem:[%s5 + $0x27c] sm:$0xf]
    %v2155 = vld [vmem:[%s5 + $0x280] sm:$0xf]
    %v2156 = vld [vmem:[%s5 + $0x284] sm:$0xf]
    %v2157 = vld [vmem:[%s5 + $0x288] sm:$0xf]
    %v2158 = vld [vmem:[%s5 + $0x28c] sm:$0xf]
    %v2159 = vld [vmem:[%s5 + $0x290] sm:$0xf]
    %v2160 = vld [vmem:[%s5 + $0x294] sm:$0xf]
    %v2161 = vld [vmem:[%s5 + $0x298] sm:$0xf]
    %v2162 = vld [vmem:[%s5 + $0x29c] sm:$0xf]
    %v2163 = vld [vmem:[%s5 + $0x2a0] sm:$0xf]
    %v2164 = vld [vmem:[%s5 + $0x2a4] sm:$0xf]
    %v2165 = vld [vmem:[%s5 + $0x2a8] sm:$0xf]
    %v2166 = vld [vmem:[%s5 + $0x2ac] sm:$0xf]
    %v2167 = vld [vmem:[%s5 + $0x2b0] sm:$0xf]
    %v2168 = vld [vmem:[%s5 + $0x2b4] sm:$0xf]
    %v2169 = vld [vmem:[%s5 + $0x2b8] sm:$0xf]
    %v2170 = vld [vmem:[%s5 + $0x2bc] sm:$0xf]
    %v2171 = vld [vmem:[%s5 + $0x2c0] sm:$0xf]
    %v2172 = vld [vmem:[%s5 + $0x2c4] sm:$0xf]
    %v2173 = vld [vmem:[%s5 + $0x2c8] sm:$0xf]
    %v2174 = vld [vmem:[%s5 + $0x2cc] sm:$0xf]
    %v2175 = vld [vmem:[%s5 + $0x2d0] sm:$0xf]
    %v2176 = vld [vmem:[%s5 + $0x2d4] sm:$0xf]
    %v2177 = vld [vmem:[%s5 + $0x2d8] sm:$0xf]
    %v2178 = vld [vmem:[%s5 + $0x2dc] sm:$0xf]
    %v2179 = vld [vmem:[%s5 + $0x2e0] sm:$0xf]
    %v2180 = vld [vmem:[%s5 + $0x2e4] sm:$0xf]
    %v2181 = vld [vmem:[%s5 + $0x2e8] sm:$0xf]
    %v2182 = vld [vmem:[%s5 + $0x2ec] sm:$0xf]
    %v2183 = vld [vmem:[%s5 + $0x2f0] sm:$0xf]
    %v2184 = vld [vmem:[%s5 + $0x2f4] sm:$0xf]
    %v2185 = vld [vmem:[%s5 + $0x2f8] sm:$0xf]
    %v2186 = vld [vmem:[%s5 + $0x2fc] sm:$0xf]
    %v2187 = vld [vmem:[%s5 + $0x300] sm:$0xf]
    %v2188 = vld [vmem:[%s5 + $0x304] sm:$0xf]
    %v2189 = vld [vmem:[%s5 + $0x308] sm:$0xf]
    %v2190 = vld [vmem:[%s5 + $0x30c] sm:$0xf]
    %v2191 = vld [vmem:[%s5 + $0x310] sm:$0xf]
    %v2192 = vld [vmem:[%s5 + $0x314] sm:$0xf]
    %v2193 = vld [vmem:[%s5 + $0x318] sm:$0xf]
    %v2194 = vld [vmem:[%s5 + $0x31c] sm:$0xf]
    %v2195 = vld [vmem:[%s5 + $0x320] sm:$0xf]
    %v2196 = vld [vmem:[%s5 + $0x324] sm:$0xf]
    %v2197 = vld [vmem:[%s5 + $0x328] sm:$0xf]
    %v2198 = vld [vmem:[%s5 + $0x32c] sm:$0xf]
    %v2199 = vld [vmem:[%s5 + $0x330] sm:$0xf]
    %v2200 = vld [vmem:[%s5 + $0x334] sm:$0xf]
    %v2201 = vld [vmem:[%s5 + $0x338] sm:$0xf]
    %v2202 = vld [vmem:[%s5 + $0x33c] sm:$0xf]
    %v2203 = vld [vmem:[%s5 + $0x340] sm:$0xf]
    %v2204 = vld [vmem:[%s5 + $0x344] sm:$0xf]
    %v2205 = vld [vmem:[%s5 + $0x348] sm:$0xf]
    %v2206 = vld [vmem:[%s5 + $0x34c] sm:$0xf]
    %v2207 = vld [vmem:[%s5 + $0x350] sm:$0xf]
    %v2208 = vld [vmem:[%s5 + $0x354] sm:$0xf]
    %v2209 = vld [vmem:[%s5 + $0x358] sm:$0xf]
    %v2210 = vld [vmem:[%s5 + $0x35c] sm:$0xf]
    %v2211 = vld [vmem:[%s5 + $0x360] sm:$0xf]
    %v2212 = vld [vmem:[%s5 + $0x364] sm:$0xf]
    %v2213 = vld [vmem:[%s5 + $0x368] sm:$0xf]
    %v2214 = vld [vmem:[%s5 + $0x36c] sm:$0xf]
    %v2215 = vld [vmem:[%s5 + $0x370] sm:$0xf]
    %v2216 = vld [vmem:[%s5 + $0x374] sm:$0xf]
    %v2217 = vld [vmem:[%s5 + $0x378] sm:$0xf]
    %v2218 = vld [vmem:[%s5 + $0x37c] sm:$0xf]
    %v2219 = vld [vmem:[%s5 + $0x380] sm:$0xf]
    %v2220 = vld [vmem:[%s5 + $0x384] sm:$0xf]
    %v2221 = vld [vmem:[%s5 + $0x388] sm:$0xf]
    %v2222 = vld [vmem:[%s5 + $0x38c] sm:$0xf]
    %v2223 = vld [vmem:[%s5 + $0x390] sm:$0xf]
    %v2224 = vld [vmem:[%s5 + $0x394] sm:$0xf]
    %v2225 = vld [vmem:[%s5 + $0x398] sm:$0xf]
    %v2226 = vld [vmem:[%s5 + $0x39c] sm:$0xf]
    %v2227 = vld [vmem:[%s5 + $0x3a0] sm:$0xf]
    %v2228 = vld [vmem:[%s5 + $0x3a4] sm:$0xf]
    %v2229 = vld [vmem:[%s5 + $0x3a8] sm:$0xf]
    %v2230 = vld [vmem:[%s5 + $0x3ac] sm:$0xf]
    %v2231 = vld [vmem:[%s5 + $0x3b0] sm:$0xf]
    %v2232 = vld [vmem:[%s5 + $0x3b4] sm:$0xf]
    %v2233 = vld [vmem:[%s5 + $0x3b8] sm:$0xf]
    %v2234 = vld [vmem:[%s5 + $0x3bc] sm:$0xf]
    %v2235 = vld [vmem:[%s5 + $0x3c0] sm:$0xf]
    %v2236 = vld [vmem:[%s5 + $0x3c4] sm:$0xf]
    %v2237 = vld [vmem:[%s5 + $0x3c8] sm:$0xf]
    %v2238 = vld [vmem:[%s5 + $0x3cc] sm:$0xf]
    %v2239 = vld [vmem:[%s5 + $0x3d0] sm:$0xf]
    %v2240 = vld [vmem:[%s5 + $0x3d4] sm:$0xf]
    %v2241 = vld [vmem:[%s5 + $0x3d8] sm:$0xf]
    %v2242 = vld [vmem:[%s5 + $0x3dc] sm:$0xf]
    %v2243 = vld [vmem:[%s5 + $0x3e0] sm:$0xf]
    %v2244 = vld [vmem:[%s5 + $0x3e4] sm:$0xf]
    %v2245 = vld [vmem:[%s5 + $0x3e8] sm:$0xf]
    %v2246 = vld [vmem:[%s5 + $0x3ec] sm:$0xf]
    %v2247 = vld [vmem:[%s5 + $0x3f0] sm:$0xf]
    %v2248 = vld [vmem:[%s5 + $0x3f4] sm:$0xf]
    %v2249 = vld [vmem:[%s5 + $0x3f8] sm:$0xf]
    %v2250 = vld [vmem:[%s5 + $0x3fc] sm:$0xf]
    %v2251 = vld [vmem:[%s5 + $0x400] sm:$0xf]
    %v2252 = vld [vmem:[%s5 + $0x404] sm:$0xf]
    %v2253 = vld [vmem:[%s5 + $0x408] sm:$0xf]
    %v2254 = vld [vmem:[%s5 + $0x40c] sm:$0xf]
    %v2255 = vld [vmem:[%s5 + $0x410] sm:$0xf]
    %v2256 = vld [vmem:[%s5 + $0x414] sm:$0xf]
    %v2257 = vld [vmem:[%s5 + $0x418] sm:$0xf]
    %v2258 = vld [vmem:[%s5 + $0x41c] sm:$0xf]
    %v2259 = vld [vmem:[%s5 + $0x420] sm:$0xf]
    %v2260 = vld [vmem:[%s5 + $0x424] sm:$0xf]
    %v2261 = vld [vmem:[%s5 + $0x428] sm:$0xf]
    %v2262 = vld [vmem:[%s5 + $0x42c] sm:$0xf]
    %v2263 = vld [vmem:[%s5 + $0x430] sm:$0xf]
    %v2264 = vld [vmem:[%s5 + $0x434] sm:$0xf]
    %v2265 = vld [vmem:[%s5 + $0x438] sm:$0xf]
    %v2266 = vld [vmem:[%s5 + $0x43c] sm:$0xf]
    %v2267 = vld [vmem:[%s5 + $0x440] sm:$0xf]
    %v2268 = vld [vmem:[%s5 + $0x444] sm:$0xf]
    %v2269 = vld [vmem:[%s5 + $0x448] sm:$0xf]
    %v2270 = vld [vmem:[%s5 + $0x44c] sm:$0xf]
    %v2271 = vld [vmem:[%s5 + $0x450] sm:$0xf]
    %v2272 = vld [vmem:[%s5 + $0x454] sm:$0xf]
    %v2273 = vld [vmem:[%s5 + $0x458] sm:$0xf]
    %v2274 = vld [vmem:[%s5 + $0x45c] sm:$0xf]
    %v2275 = vld [vmem:[%s5 + $0x460] sm:$0xf]
    %v2276 = vld [vmem:[%s5 + $0x464] sm:$0xf]
    %v2277 = vld [vmem:[%s5 + $0x468] sm:$0xf]
    %v2278 = vld [vmem:[%s5 + $0x46c] sm:$0xf]
    %v2279 = vld [vmem:[%s5 + $0x470] sm:$0xf]
    %v2280 = vld [vmem:[%s5 + $0x474] sm:$0xf]
    %v2281 = vld [vmem:[%s5 + $0x478] sm:$0xf]
    %v2282 = vld [vmem:[%s5 + $0x47c] sm:$0xf]
    %v2283 = vld [vmem:[%s5 + $0x480] sm:$0xf]
    %v2284 = vld [vmem:[%s5 + $0x484] sm:$0xf]
    %v2285 = vld [vmem:[%s5 + $0x488] sm:$0xf]
    %v2286 = vld [vmem:[%s5 + $0x48c] sm:$0xf]
    %v2287 = vld [vmem:[%s5 + $0x490] sm:$0xf]
    %v2288 = vld [vmem:[%s5 + $0x494] sm:$0xf]
    %v2289 = vld [vmem:[%s5 + $0x498] sm:$0xf]
    %v2290 = vld [vmem:[%s5 + $0x49c] sm:$0xf]
    %v2291 = vld [vmem:[%s5 + $0x4a0] sm:$0xf]
    %v2292 = vld [vmem:[%s5 + $0x4a4] sm:$0xf]
    %v2293 = vld [vmem:[%s5 + $0x4a8] sm:$0xf]
    %v2294 = vld [vmem:[%s5 + $0x4ac] sm:$0xf]
    %v2295 = vld [vmem:[%s5 + $0x4b0] sm:$0xf]
    %v2296 = vld [vmem:[%s5 + $0x4b4] sm:$0xf]
    %v2297 = vld [vmem:[%s5 + $0x4b8] sm:$0xf]
    %v2298 = vld [vmem:[%s5 + $0x4bc] sm:$0xf]
    %v2299 = vld [vmem:[%s5 + $0x4c0] sm:$0xf]
    %v2300 = vld [vmem:[%s5 + $0x4c4] sm:$0xf]
    %v2301 = vld [vmem:[%s5 + $0x4c8] sm:$0xf]
    %v2302 = vld [vmem:[%s5 + $0x4cc] sm:$0xf]
    %v2303 = vld [vmem:[%s5 + $0x4d0] sm:$0xf]
    %v2304 = vld [vmem:[%s5 + $0x4d4] sm:$0xf]
    %v2305 = vld [vmem:[%s5 + $0x4d8] sm:$0xf]
    %v2306 = vld [vmem:[%s5 + $0x4dc] sm:$0xf]
    %v2307 = vld [vmem:[%s5 + $0x4e0] sm:$0xf]
    %v2308 = vld [vmem:[%s5 + $0x4e4] sm:$0xf]
    %v2309 = vld [vmem:[%s5 + $0x4e8] sm:$0xf]
    %v2310 = vld [vmem:[%s5 + $0x4ec] sm:$0xf]
    %v2311 = vld [vmem:[%s5 + $0x4f0] sm:$0xf]
    %v2312 = vld [vmem:[%s5 + $0x4f4] sm:$0xf]
    %v2313 = vld [vmem:[%s5 + $0x4f8] sm:$0xf]
    %v2314 = vld [vmem:[%s5 + $0x4fc] sm:$0xf]
    %v2315 = vld [vmem:[%s5 + $0x500] sm:$0xf]
    %v2316 = vld [vmem:[%s5 + $0x504] sm:$0xf]
    %v2317 = vld [vmem:[%s5 + $0x508] sm:$0xf]
    %v2318 = vld [vmem:[%s5 + $0x50c] sm:$0xf]
    %v2319 = vld [vmem:[%s5 + $0x510] sm:$0xf]
    %v2320 = vld [vmem:[%s5 + $0x514] sm:$0xf]
    %v2321 = vld [vmem:[%s5 + $0x518] sm:$0xf]
    %v2322 = vld [vmem:[%s5 + $0x51c] sm:$0xf]
    %v2323 = vld [vmem:[%s5 + $0x520] sm:$0xf]
    %v2324 = vld [vmem:[%s5 + $0x524] sm:$0xf]
    %v2325 = vld [vmem:[%s5 + $0x528] sm:$0xf]
    %v2326 = vld [vmem:[%s5 + $0x52c] sm:$0xf]
    %v2327 = vld [vmem:[%s5 + $0x530] sm:$0xf]
    %v2328 = vld [vmem:[%s5 + $0x534] sm:$0xf]
    %v2329 = vld [vmem:[%s5 + $0x538] sm:$0xf]
    %v2330 = vld [vmem:[%s5 + $0x53c] sm:$0xf]
    %v2331 = vld [vmem:[%s5 + $0x540] sm:$0xf]
    %v2332 = vld [vmem:[%s5 + $0x544] sm:$0xf]
    %v2333 = vld [vmem:[%s5 + $0x548] sm:$0xf]
    %v2334 = vld [vmem:[%s5 + $0x54c] sm:$0xf]
    %v2335 = vld [vmem:[%s5 + $0x550] sm:$0xf]
    %v2336 = vld [vmem:[%s5 + $0x554] sm:$0xf]
    %v2337 = vld [vmem:[%s5 + $0x558] sm:$0xf]
    %v2338 = vld [vmem:[%s5 + $0x55c] sm:$0xf]
    %v2339 = vld [vmem:[%s5 + $0x560] sm:$0xf]
    %v2340 = vld [vmem:[%s5 + $0x564] sm:$0xf]
    %v2341 = vld [vmem:[%s5 + $0x568] sm:$0xf]
    %v2342 = vld [vmem:[%s5 + $0x56c] sm:$0xf]
    %v2343 = vld [vmem:[%s5 + $0x570] sm:$0xf]
    %v2344 = vld [vmem:[%s5 + $0x574] sm:$0xf]
    %v2345 = vld [vmem:[%s5 + $0x578] sm:$0xf]
    %v2346 = vld [vmem:[%s5 + $0x57c] sm:$0xf]
    %v2347 = vld [vmem:[%s5 + $0x580] sm:$0xf]
    %v2348 = vld [vmem:[%s5 + $0x584] sm:$0xf]
    %v2349 = vld [vmem:[%s5 + $0x588] sm:$0xf]
    %v2350 = vld [vmem:[%s5 + $0x58c] sm:$0xf]
    %v2351 = vld [vmem:[%s5 + $0x590] sm:$0xf]
    %v2352 = vld [vmem:[%s5 + $0x594] sm:$0xf]
    %v2353 = vld [vmem:[%s5 + $0x598] sm:$0xf]
    %v2354 = vld [vmem:[%s5 + $0x59c] sm:$0xf]
    %v2355 = vld [vmem:[%s5 + $0x5a0] sm:$0xf]
    %v2356 = vld [vmem:[%s5 + $0x5a4] sm:$0xf]
    %v2357 = vld [vmem:[%s5 + $0x5a8] sm:$0xf]
    %v2358 = vld [vmem:[%s5 + $0x5ac] sm:$0xf]
    %v2359 = vld [vmem:[%s5 + $0x5b0] sm:$0xf]
    %v2360 = vld [vmem:[%s5 + $0x5b4] sm:$0xf]
    %v2361 = vld [vmem:[%s5 + $0x5b8] sm:$0xf]
    %v2362 = vld [vmem:[%s5 + $0x5bc] sm:$0xf]
    %v2363 = vld [vmem:[%s5 + $0x5c0] sm:$0xf]
    %v2364 = vld [vmem:[%s5 + $0x5c4] sm:$0xf]
    %v2365 = vld [vmem:[%s5 + $0x5c8] sm:$0xf]
    %v2366 = vld [vmem:[%s5 + $0x5cc] sm:$0xf]
    %v2367 = vld [vmem:[%s5 + $0x5d0] sm:$0xf]
    %v2368 = vld [vmem:[%s5 + $0x5d4] sm:$0xf]
    %v2369 = vld [vmem:[%s5 + $0x5d8] sm:$0xf]
    %v2370 = vld [vmem:[%s5 + $0x5dc] sm:$0xf]
    %v2371 = vld [vmem:[%s5 + $0x5e0] sm:$0xf]
    %v2372 = vld [vmem:[%s5 + $0x5e4] sm:$0xf]
    %v2373 = vld [vmem:[%s5 + $0x5e8] sm:$0xf]
    %v2374 = vld [vmem:[%s5 + $0x5ec] sm:$0xf]
    %v2375 = vld [vmem:[%s5 + $0x5f0] sm:$0xf]
    %v2376 = vld [vmem:[%s5 + $0x5f4] sm:$0xf]
    %v2377 = vld [vmem:[%s5 + $0x5f8] sm:$0xf]
    %v2378 = vld [vmem:[%s5 + $0x5fc] sm:$0xf]
    %v2379 = vld [vmem:[%s5 + $0x600] sm:$0xf]
    %v2380 = vld [vmem:[%s5 + $0x604] sm:$0xf]
    %v2381 = vld [vmem:[%s5 + $0x608] sm:$0xf]
    %v2382 = vld [vmem:[%s5 + $0x60c] sm:$0xf]
    %v2383 = vld [vmem:[%s5 + $0x610] sm:$0xf]
    %v2384 = vld [vmem:[%s5 + $0x614] sm:$0xf]
    %v2385 = vld [vmem:[%s5 + $0x618] sm:$0xf]
    %v2386 = vld [vmem:[%s5 + $0x61c] sm:$0xf]
    %v2387 = vld [vmem:[%s5 + $0x620] sm:$0xf]
    %v2388 = vld [vmem:[%s5 + $0x624] sm:$0xf]
    %v2389 = vld [vmem:[%s5 + $0x628] sm:$0xf]
    %v2390 = vld [vmem:[%s5 + $0x62c] sm:$0xf]
    %v2391 = vld [vmem:[%s5 + $0x630] sm:$0xf]
    %v2392 = vld [vmem:[%s5 + $0x634] sm:$0xf]
    %v2393 = vld [vmem:[%s5 + $0x638] sm:$0xf]
    %v2394 = vld [vmem:[%s5 + $0x63c] sm:$0xf]
    %v2395 = vld [vmem:[%s5 + $0x640] sm:$0xf]
    %v2396 = vld [vmem:[%s5 + $0x644] sm:$0xf]
    %v2397 = vld [vmem:[%s5 + $0x648] sm:$0xf]
    %v2398 = vld [vmem:[%s5 + $0x64c] sm:$0xf]
    %v2399 = vld [vmem:[%s5 + $0x650] sm:$0xf]
    %v2400 = vld [vmem:[%s5 + $0x654] sm:$0xf]
    %v2401 = vld [vmem:[%s5 + $0x658] sm:$0xf]
    %v2402 = vld [vmem:[%s5 + $0x65c] sm:$0xf]
    %v2403 = vld [vmem:[%s5 + $0x660] sm:$0xf]
    %v2404 = vld [vmem:[%s5 + $0x664] sm:$0xf]
    %v2405 = vld [vmem:[%s5 + $0x668] sm:$0xf]
    %v2406 = vld [vmem:[%s5 + $0x66c] sm:$0xf]
    %v2407 = vld [vmem:[%s5 + $0x670] sm:$0xf]
    %v2408 = vld [vmem:[%s5 + $0x674] sm:$0xf]
    %v2409 = vld [vmem:[%s5 + $0x678] sm:$0xf]
    %v2410 = vld [vmem:[%s5 + $0x67c] sm:$0xf]
    %v2411 = vld [vmem:[%s5 + $0x680] sm:$0xf]
    %v2412 = vld [vmem:[%s5 + $0x684] sm:$0xf]
    %v2413 = vld [vmem:[%s5 + $0x688] sm:$0xf]
    %v2414 = vld [vmem:[%s5 + $0x68c] sm:$0xf]
    %v2415 = vld [vmem:[%s5 + $0x690] sm:$0xf]
    %v2416 = vld [vmem:[%s5 + $0x694] sm:$0xf]
    %v2417 = vld [vmem:[%s5 + $0x698] sm:$0xf]
    %v2418 = vld [vmem:[%s5 + $0x69c] sm:$0xf]
    %v2419 = vld [vmem:[%s5 + $0x6a0] sm:$0xf]
    %v2420 = vld [vmem:[%s5 + $0x6a4] sm:$0xf]
    %v2421 = vld [vmem:[%s5 + $0x6a8] sm:$0xf]
    %v2422 = vld [vmem:[%s5 + $0x6ac] sm:$0xf]
    %v2423 = vld [vmem:[%s5 + $0x6b0] sm:$0xf]
    %v2424 = vld [vmem:[%s5 + $0x6b4] sm:$0xf]
    %v2425 = vld [vmem:[%s5 + $0x6b8] sm:$0xf]
    %v2426 = vld [vmem:[%s5 + $0x6bc] sm:$0xf]
    %v2427 = vld [vmem:[%s5 + $0x6c0] sm:$0xf]
    %v2428 = vld [vmem:[%s5 + $0x6c4] sm:$0xf]
    %v2429 = vld [vmem:[%s5 + $0x6c8] sm:$0xf]
    %v2430 = vld [vmem:[%s5 + $0x6cc] sm:$0xf]
    %v2431 = vld [vmem:[%s5 + $0x6d0] sm:$0xf]
    %v2432 = vld [vmem:[%s5 + $0x6d4] sm:$0xf]
    %v2433 = vld [vmem:[%s5 + $0x6d8] sm:$0xf]
    %v2434 = vld [vmem:[%s5 + $0x6dc] sm:$0xf]
    %v2435 = vld [vmem:[%s5 + $0x6e0] sm:$0xf]
    %v2436 = vld [vmem:[%s5 + $0x6e4] sm:$0xf]
    %v2437 = vld [vmem:[%s5 + $0x6e8] sm:$0xf]
    %v2438 = vld [vmem:[%s5 + $0x6ec] sm:$0xf]
    %v2439 = vld [vmem:[%s5 + $0x6f0] sm:$0xf]
    %v2440 = vld [vmem:[%s5 + $0x6f4] sm:$0xf]
    %v2441 = vld [vmem:[%s5 + $0x6f8] sm:$0xf]
    %v2442 = vld [vmem:[%s5 + $0x6fc] sm:$0xf]
    %v2443 = vld [vmem:[%s5 + $0x700] sm:$0xf]
    %v2444 = vld [vmem:[%s5 + $0x704] sm:$0xf]
    %v2445 = vld [vmem:[%s5 + $0x708] sm:$0xf]
    %v2446 = vld [vmem:[%s5 + $0x70c] sm:$0xf]
    %v2447 = vld [vmem:[%s5 + $0x710] sm:$0xf]
    %v2448 = vld [vmem:[%s5 + $0x714] sm:$0xf]
    %v2449 = vld [vmem:[%s5 + $0x718] sm:$0xf]
    %v2450 = vld [vmem:[%s5 + $0x71c] sm:$0xf]
    %v2451 = vld [vmem:[%s5 + $0x720] sm:$0xf]
    %v2452 = vld [vmem:[%s5 + $0x724] sm:$0xf]
    %v2453 = vld [vmem:[%s5 + $0x728] sm:$0xf]
    %v2454 = vld [vmem:[%s5 + $0x72c] sm:$0xf]
    %v2455 = vld [vmem:[%s5 + $0x730] sm:$0xf]
    %v2456 = vld [vmem:[%s5 + $0x734] sm:$0xf]
    %v2457 = vld [vmem:[%s5 + $0x738] sm:$0xf]
    %v2458 = vld [vmem:[%s5 + $0x73c] sm:$0xf]
    %v2459 = vld [vmem:[%s5 + $0x740] sm:$0xf]
    %v2460 = vld [vmem:[%s5 + $0x744] sm:$0xf]
    %v2461 = vld [vmem:[%s5 + $0x748] sm:$0xf]
    %v2462 = vld [vmem:[%s5 + $0x74c] sm:$0xf]
    %v2463 = vld [vmem:[%s5 + $0x750] sm:$0xf]
    %v2464 = vld [vmem:[%s5 + $0x754] sm:$0xf]
    %v2465 = vld [vmem:[%s5 + $0x758] sm:$0xf]
    %v2466 = vld [vmem:[%s5 + $0x75c] sm:$0xf]
    %v2467 = vld [vmem:[%s5 + $0x760] sm:$0xf]
    %v2468 = vld [vmem:[%s5 + $0x764] sm:$0xf]
    %v2469 = vld [vmem:[%s5 + $0x768] sm:$0xf]
    %v2470 = vld [vmem:[%s5 + $0x76c] sm:$0xf]
    %v2471 = vld [vmem:[%s5 + $0x770] sm:$0xf]
    %v2472 = vld [vmem:[%s5 + $0x774] sm:$0xf]
    %v2473 = vld [vmem:[%s5 + $0x778] sm:$0xf]
    %v2474 = vld [vmem:[%s5 + $0x77c] sm:$0xf]
    %v2475 = vld [vmem:[%s5 + $0x780] sm:$0xf]
    %v2476 = vld [vmem:[%s5 + $0x784] sm:$0xf]
    %v2477 = vld [vmem:[%s5 + $0x788] sm:$0xf]
    %v2478 = vld [vmem:[%s5 + $0x78c] sm:$0xf]
    %v2479 = vld [vmem:[%s5 + $0x790] sm:$0xf]
    %v2480 = vld [vmem:[%s5 + $0x794] sm:$0xf]
    %v2481 = vld [vmem:[%s5 + $0x798] sm:$0xf]
    %v2482 = vld [vmem:[%s5 + $0x79c] sm:$0xf]
    %v2483 = vld [vmem:[%s5 + $0x7a0] sm:$0xf]
    %v2484 = vld [vmem:[%s5 + $0x7a4] sm:$0xf]
    %v2485 = vld [vmem:[%s5 + $0x7a8] sm:$0xf]
    %v2486 = vld [vmem:[%s5 + $0x7ac] sm:$0xf]
    %v2487 = vld [vmem:[%s5 + $0x7b0] sm:$0xf]
    %v2488 = vld [vmem:[%s5 + $0x7b4] sm:$0xf]
    %v2489 = vld [vmem:[%s5 + $0x7b8] sm:$0xf]
    %v2490 = vld [vmem:[%s5 + $0x7bc] sm:$0xf]
    %v2491 = vld [vmem:[%s5 + $0x7c0] sm:$0xf]
    %v2492 = vld [vmem:[%s5 + $0x7c4] sm:$0xf]
    %v2493 = vld [vmem:[%s5 + $0x7c8] sm:$0xf]
    %v2494 = vld [vmem:[%s5 + $0x7cc] sm:$0xf]
    %v2495 = vld [vmem:[%s5 + $0x7d0] sm:$0xf]
    %v2496 = vld [vmem:[%s5 + $0x7d4] sm:$0xf]
    %v2497 = vld [vmem:[%s5 + $0x7d8] sm:$0xf]
    %v2498 = vld [vmem:[%s5 + $0x7dc] sm:$0xf]
    %v2499 = vld [vmem:[%s5 + $0x7e0] sm:$0xf]
    %v2500 = vld [vmem:[%s5 + $0x7e4] sm:$0xf]
    %v2501 = vld [vmem:[%s5 + $0x7e8] sm:$0xf]
    %v2502 = vld [vmem:[%s5 + $0x7ec] sm:$0xf]
    %v2503 = vld [vmem:[%s5 + $0x7f0] sm:$0xf]
    %v2504 = vld [vmem:[%s5 + $0x7f4] sm:$0xf]
    %v2505 = vld [vmem:[%s5 + $0x7f8] sm:$0xf]
    %v2506 = vld [vmem:[%s5 + $0x7fc] sm:$0xf]
    %v2507 = vld [vmem:[%s6] sm:$0x1]
    %v2509 = vperm.slane %v2507, 0
    %v3023 = vunpack.c.l.b16 %v1995
    %v3024 = vunpack.c.l.b16 %v1996
    %v3025 = vunpack.c.l.b16 %v1997
    %v3026 = vunpack.c.l.b16 %v1998
    %v3027 = vunpack.c.l.b16 %v1999
    %v3028 = vunpack.c.l.b16 %v2000
    %v3029 = vunpack.c.l.b16 %v2001
    %v3030 = vunpack.c.l.b16 %v2002
    %v3031 = vunpack.c.l.b16 %v2003
    %v3032 = vunpack.c.l.b16 %v2004
    %v3033 = vunpack.c.l.b16 %v2005
    %v3034 = vunpack.c.l.b16 %v2006
    %v3035 = vunpack.c.l.b16 %v2007
    %v3036 = vunpack.c.l.b16 %v2008
    %v3037 = vunpack.c.l.b16 %v2009
    %v3038 = vunpack.c.l.b16 %v2010
    %v3039 = vunpack.c.l.b16 %v2011
    %v3040 = vunpack.c.l.b16 %v2012
    %v3041 = vunpack.c.l.b16 %v2013
    %v3042 = vunpack.c.l.b16 %v2014
    %v3043 = vunpack.c.l.b16 %v2015
    %v3044 = vunpack.c.l.b16 %v2016
    %v3045 = vunpack.c.l.b16 %v2017
    %v3046 = vunpack.c.l.b16 %v2018
    %v3047 = vunpack.c.l.b16 %v2019
    %v3048 = vunpack.c.l.b16 %v2020
    %v3049 = vunpack.c.l.b16 %v2021
    %v3050 = vunpack.c.l.b16 %v2022
    %v3051 = vunpack.c.l.b16 %v2023
    %v3052 = vunpack.c.l.b16 %v2024
    %v3053 = vunpack.c.l.b16 %v2025
    %v3054 = vunpack.c.l.b16 %v2026
    %v3055 = vunpack.c.l.b16 %v2027
    %v3056 = vunpack.c.l.b16 %v2028
    %v3057 = vunpack.c.l.b16 %v2029
    %v3058 = vunpack.c.l.b16 %v2030
    %v3059 = vunpack.c.l.b16 %v2031
    %v3060 = vunpack.c.l.b16 %v2032
    %v3061 = vunpack.c.l.b16 %v2033
    %v3062 = vunpack.c.l.b16 %v2034
    %v3063 = vunpack.c.l.b16 %v2035
    %v3064 = vunpack.c.l.b16 %v2036
    %v3065 = vunpack.c.l.b16 %v2037
    %v3066 = vunpack.c.l.b16 %v2038
    %v3067 = vunpack.c.l.b16 %v2039
    %v3068 = vunpack.c.l.b16 %v2040
    %v3069 = vunpack.c.l.b16 %v2041
    %v3070 = vunpack.c.l.b16 %v2042
    %v3071 = vunpack.c.l.b16 %v2043
    %v3072 = vunpack.c.l.b16 %v2044
    %v3073 = vunpack.c.l.b16 %v2045
    %v3074 = vunpack.c.l.b16 %v2046
    %v3075 = vunpack.c.l.b16 %v2047
    %v3076 = vunpack.c.l.b16 %v2048
    %v3077 = vunpack.c.l.b16 %v2049
    %v3078 = vunpack.c.l.b16 %v2050
    %v3079 = vunpack.c.l.b16 %v2051
    %v3080 = vunpack.c.l.b16 %v2052
    %v3081 = vunpack.c.l.b16 %v2053
    %v3082 = vunpack.c.l.b16 %v2054
    %v3083 = vunpack.c.l.b16 %v2055
    %v3084 = vunpack.c.l.b16 %v2056
    %v3085 = vunpack.c.l.b16 %v2057
    %v3086 = vunpack.c.l.b16 %v2058
    %v3087 = vunpack.c.l.b16 %v2059
    %v3088 = vunpack.c.l.b16 %v2060
    %v3089 = vunpack.c.l.b16 %v2061
    %v3090 = vunpack.c.l.b16 %v2062
    %v3091 = vunpack.c.l.b16 %v2063
    %v3092 = vunpack.c.l.b16 %v2064
    %v3093 = vunpack.c.l.b16 %v2065
    %v3094 = vunpack.c.l.b16 %v2066
    %v3095 = vunpack.c.l.b16 %v2067
    %v3096 = vunpack.c.l.b16 %v2068
    %v3097 = vunpack.c.l.b16 %v2069
    %v3098 = vunpack.c.l.b16 %v2070
    %v3099 = vunpack.c.l.b16 %v2071
    %v3100 = vunpack.c.l.b16 %v2072
    %v3101 = vunpack.c.l.b16 %v2073
    %v3102 = vunpack.c.l.b16 %v2074
    %v3103 = vunpack.c.l.b16 %v2075
    %v3104 = vunpack.c.l.b16 %v2076
    %v3105 = vunpack.c.l.b16 %v2077
    %v3106 = vunpack.c.l.b16 %v2078
    %v3107 = vunpack.c.l.b16 %v2079
    %v3108 = vunpack.c.l.b16 %v2080
    %v3109 = vunpack.c.l.b16 %v2081
    %v3110 = vunpack.c.l.b16 %v2082
    %v3111 = vunpack.c.l.b16 %v2083
    %v3112 = vunpack.c.l.b16 %v2084
    %v3113 = vunpack.c.l.b16 %v2085
    %v3114 = vunpack.c.l.b16 %v2086
    %v3115 = vunpack.c.l.b16 %v2087
    %v3116 = vunpack.c.l.b16 %v2088
    %v3117 = vunpack.c.l.b16 %v2089
    %v3118 = vunpack.c.l.b16 %v2090
    %v3119 = vunpack.c.l.b16 %v2091
    %v3120 = vunpack.c.l.b16 %v2092
    %v3121 = vunpack.c.l.b16 %v2093
    %v3122 = vunpack.c.l.b16 %v2094
    %v3123 = vunpack.c.l.b16 %v2095
    %v3124 = vunpack.c.l.b16 %v2096
    %v3125 = vunpack.c.l.b16 %v2097
    %v3126 = vunpack.c.l.b16 %v2098
    %v3127 = vunpack.c.l.b16 %v2099
    %v3128 = vunpack.c.l.b16 %v2100
    %v3129 = vunpack.c.l.b16 %v2101
    %v3130 = vunpack.c.l.b16 %v2102
    %v3131 = vunpack.c.l.b16 %v2103
    %v3132 = vunpack.c.l.b16 %v2104
    %v3133 = vunpack.c.l.b16 %v2105
    %v3134 = vunpack.c.l.b16 %v2106
    %v3135 = vunpack.c.l.b16 %v2107
    %v3136 = vunpack.c.l.b16 %v2108
    %v3137 = vunpack.c.l.b16 %v2109
    %v3138 = vunpack.c.l.b16 %v2110
    %v3139 = vunpack.c.l.b16 %v2111
    %v3140 = vunpack.c.l.b16 %v2112
    %v3141 = vunpack.c.l.b16 %v2113
    %v3142 = vunpack.c.l.b16 %v2114
    %v3143 = vunpack.c.l.b16 %v2115
    %v3144 = vunpack.c.l.b16 %v2116
    %v3145 = vunpack.c.l.b16 %v2117
    %v3146 = vunpack.c.l.b16 %v2118
    %v3147 = vunpack.c.l.b16 %v2119
    %v3148 = vunpack.c.l.b16 %v2120
    %v3149 = vunpack.c.l.b16 %v2121
    %v3150 = vunpack.c.l.b16 %v2122
    %v3151 = vunpack.c.l.b16 %v2123
    %v3152 = vunpack.c.l.b16 %v2124
    %v3153 = vunpack.c.l.b16 %v2125
    %v3154 = vunpack.c.l.b16 %v2126
    %v3155 = vunpack.c.l.b16 %v2127
    %v3156 = vunpack.c.l.b16 %v2128
    %v3157 = vunpack.c.l.b16 %v2129
    %v3158 = vunpack.c.l.b16 %v2130
    %v3159 = vunpack.c.l.b16 %v2131
    %v3160 = vunpack.c.l.b16 %v2132
    %v3161 = vunpack.c.l.b16 %v2133
    %v3162 = vunpack.c.l.b16 %v2134
    %v3163 = vunpack.c.l.b16 %v2135
    %v3164 = vunpack.c.l.b16 %v2136
    %v3165 = vunpack.c.l.b16 %v2137
    %v3166 = vunpack.c.l.b16 %v2138
    %v3167 = vunpack.c.l.b16 %v2139
    %v3168 = vunpack.c.l.b16 %v2140
    %v3169 = vunpack.c.l.b16 %v2141
    %v3170 = vunpack.c.l.b16 %v2142
    %v3171 = vunpack.c.l.b16 %v2143
    %v3172 = vunpack.c.l.b16 %v2144
    %v3173 = vunpack.c.l.b16 %v2145
    %v3174 = vunpack.c.l.b16 %v2146
    %v3175 = vunpack.c.l.b16 %v2147
    %v3176 = vunpack.c.l.b16 %v2148
    %v3177 = vunpack.c.l.b16 %v2149
    %v3178 = vunpack.c.l.b16 %v2150
    %v3179 = vunpack.c.l.b16 %v2151
    %v3180 = vunpack.c.l.b16 %v2152
    %v3181 = vunpack.c.l.b16 %v2153
    %v3182 = vunpack.c.l.b16 %v2154
    %v3183 = vunpack.c.l.b16 %v2155
    %v3184 = vunpack.c.l.b16 %v2156
    %v3185 = vunpack.c.l.b16 %v2157
    %v3186 = vunpack.c.l.b16 %v2158
    %v3187 = vunpack.c.l.b16 %v2159
    %v3188 = vunpack.c.l.b16 %v2160
    %v3189 = vunpack.c.l.b16 %v2161
    %v3190 = vunpack.c.l.b16 %v2162
    %v3191 = vunpack.c.l.b16 %v2163
    %v3192 = vunpack.c.l.b16 %v2164
    %v3193 = vunpack.c.l.b16 %v2165
    %v3194 = vunpack.c.l.b16 %v2166
    %v3195 = vunpack.c.l.b16 %v2167
    %v3196 = vunpack.c.l.b16 %v2168
    %v3197 = vunpack.c.l.b16 %v2169
    %v3198 = vunpack.c.l.b16 %v2170
    %v3199 = vunpack.c.l.b16 %v2171
    %v3200 = vunpack.c.l.b16 %v2172
    %v3201 = vunpack.c.l.b16 %v2173
    %v3202 = vunpack.c.l.b16 %v2174
    %v3203 = vunpack.c.l.b16 %v2175
    %v3204 = vunpack.c.l.b16 %v2176
    %v3205 = vunpack.c.l.b16 %v2177
    %v3206 = vunpack.c.l.b16 %v2178
    %v3207 = vunpack.c.l.b16 %v2179
    %v3208 = vunpack.c.l.b16 %v2180
    %v3209 = vunpack.c.l.b16 %v2181
    %v3210 = vunpack.c.l.b16 %v2182
    %v3211 = vunpack.c.l.b16 %v2183
    %v3212 = vunpack.c.l.b16 %v2184
    %v3213 = vunpack.c.l.b16 %v2185
    %v3214 = vunpack.c.l.b16 %v2186
    %v3215 = vunpack.c.l.b16 %v2187
    %v3216 = vunpack.c.l.b16 %v2188
    %v3217 = vunpack.c.l.b16 %v2189
    %v3218 = vunpack.c.l.b16 %v2190
    %v3219 = vunpack.c.l.b16 %v2191
    %v3220 = vunpack.c.l.b16 %v2192
    %v3221 = vunpack.c.l.b16 %v2193
    %v3222 = vunpack.c.l.b16 %v2194
    %v3223 = vunpack.c.l.b16 %v2195
    %v3224 = vunpack.c.l.b16 %v2196
    %v3225 = vunpack.c.l.b16 %v2197
    %v3226 = vunpack.c.l.b16 %v2198
    %v3227 = vunpack.c.l.b16 %v2199
    %v3228 = vunpack.c.l.b16 %v2200
    %v3229 = vunpack.c.l.b16 %v2201
    %v3230 = vunpack.c.l.b16 %v2202
    %v3231 = vunpack.c.l.b16 %v2203
    %v3232 = vunpack.c.l.b16 %v2204
    %v3233 = vunpack.c.l.b16 %v2205
    %v3234 = vunpack.c.l.b16 %v2206
    %v3235 = vunpack.c.l.b16 %v2207
    %v3236 = vunpack.c.l.b16 %v2208
    %v3237 = vunpack.c.l.b16 %v2209
    %v3238 = vunpack.c.l.b16 %v2210
    %v3239 = vunpack.c.l.b16 %v2211
    %v3240 = vunpack.c.l.b16 %v2212
    %v3241 = vunpack.c.l.b16 %v2213
    %v3242 = vunpack.c.l.b16 %v2214
    %v3243 = vunpack.c.l.b16 %v2215
    %v3244 = vunpack.c.l.b16 %v2216
    %v3245 = vunpack.c.l.b16 %v2217
    %v3246 = vunpack.c.l.b16 %v2218
    %v3247 = vunpack.c.l.b16 %v2219
    %v3248 = vunpack.c.l.b16 %v2220
    %v3249 = vunpack.c.l.b16 %v2221
    %v3250 = vunpack.c.l.b16 %v2222
    %v3251 = vunpack.c.l.b16 %v2223
    %v3252 = vunpack.c.l.b16 %v2224
    %v3253 = vunpack.c.l.b16 %v2225
    %v3254 = vunpack.c.l.b16 %v2226
    %v3255 = vunpack.c.l.b16 %v2227
    %v3256 = vunpack.c.l.b16 %v2228
    %v3257 = vunpack.c.l.b16 %v2229
    %v3258 = vunpack.c.l.b16 %v2230
    %v3259 = vunpack.c.l.b16 %v2231
    %v3260 = vunpack.c.l.b16 %v2232
    %v3261 = vunpack.c.l.b16 %v2233
    %v3262 = vunpack.c.l.b16 %v2234
    %v3263 = vunpack.c.l.b16 %v2235
    %v3264 = vunpack.c.l.b16 %v2236
    %v3265 = vunpack.c.l.b16 %v2237
    %v3266 = vunpack.c.l.b16 %v2238
    %v3267 = vunpack.c.l.b16 %v2239
    %v3268 = vunpack.c.l.b16 %v2240
    %v3269 = vunpack.c.l.b16 %v2241
    %v3270 = vunpack.c.l.b16 %v2242
    %v3271 = vunpack.c.l.b16 %v2243
    %v3272 = vunpack.c.l.b16 %v2244
    %v3273 = vunpack.c.l.b16 %v2245
    %v3274 = vunpack.c.l.b16 %v2246
    %v3275 = vunpack.c.l.b16 %v2247
    %v3276 = vunpack.c.l.b16 %v2248
    %v3277 = vunpack.c.l.b16 %v2249
    %v3278 = vunpack.c.l.b16 %v2250
    %v3279 = vunpack.c.l.b16 %v2251
    %v3280 = vunpack.c.l.b16 %v2252
    %v3281 = vunpack.c.l.b16 %v2253
    %v3282 = vunpack.c.l.b16 %v2254
    %v3283 = vunpack.c.l.b16 %v2255
    %v3284 = vunpack.c.l.b16 %v2256
    %v3285 = vunpack.c.l.b16 %v2257
    %v3286 = vunpack.c.l.b16 %v2258
    %v3287 = vunpack.c.l.b16 %v2259
    %v3288 = vunpack.c.l.b16 %v2260
    %v3289 = vunpack.c.l.b16 %v2261
    %v3290 = vunpack.c.l.b16 %v2262
    %v3291 = vunpack.c.l.b16 %v2263
    %v3292 = vunpack.c.l.b16 %v2264
    %v3293 = vunpack.c.l.b16 %v2265
    %v3294 = vunpack.c.l.b16 %v2266
    %v3295 = vunpack.c.l.b16 %v2267
    %v3296 = vunpack.c.l.b16 %v2268
    %v3297 = vunpack.c.l.b16 %v2269
    %v3298 = vunpack.c.l.b16 %v2270
    %v3299 = vunpack.c.l.b16 %v2271
    %v3300 = vunpack.c.l.b16 %v2272
    %v3301 = vunpack.c.l.b16 %v2273
    %v3302 = vunpack.c.l.b16 %v2274
    %v3303 = vunpack.c.l.b16 %v2275
    %v3304 = vunpack.c.l.b16 %v2276
    %v3305 = vunpack.c.l.b16 %v2277
    %v3306 = vunpack.c.l.b16 %v2278
    %v3307 = vunpack.c.l.b16 %v2279
    %v3308 = vunpack.c.l.b16 %v2280
    %v3309 = vunpack.c.l.b16 %v2281
    %v3310 = vunpack.c.l.b16 %v2282
    %v3311 = vunpack.c.l.b16 %v2283
    %v3312 = vunpack.c.l.b16 %v2284
    %v3313 = vunpack.c.l.b16 %v2285
    %v3314 = vunpack.c.l.b16 %v2286
    %v3315 = vunpack.c.l.b16 %v2287
    %v3316 = vunpack.c.l.b16 %v2288
    %v3317 = vunpack.c.l.b16 %v2289
    %v3318 = vunpack.c.l.b16 %v2290
    %v3319 = vunpack.c.l.b16 %v2291
    %v3320 = vunpack.c.l.b16 %v2292
    %v3321 = vunpack.c.l.b16 %v2293
    %v3322 = vunpack.c.l.b16 %v2294
    %v3323 = vunpack.c.l.b16 %v2295
    %v3324 = vunpack.c.l.b16 %v2296
    %v3325 = vunpack.c.l.b16 %v2297
    %v3326 = vunpack.c.l.b16 %v2298
    %v3327 = vunpack.c.l.b16 %v2299
    %v3328 = vunpack.c.l.b16 %v2300
    %v3329 = vunpack.c.l.b16 %v2301
    %v3330 = vunpack.c.l.b16 %v2302
    %v3331 = vunpack.c.l.b16 %v2303
    %v3332 = vunpack.c.l.b16 %v2304
    %v3333 = vunpack.c.l.b16 %v2305
    %v3334 = vunpack.c.l.b16 %v2306
    %v3335 = vunpack.c.l.b16 %v2307
    %v3336 = vunpack.c.l.b16 %v2308
    %v3337 = vunpack.c.l.b16 %v2309
    %v3338 = vunpack.c.l.b16 %v2310
    %v3339 = vunpack.c.l.b16 %v2311
    %v3340 = vunpack.c.l.b16 %v2312
    %v3341 = vunpack.c.l.b16 %v2313
    %v3342 = vunpack.c.l.b16 %v2314
    %v3343 = vunpack.c.l.b16 %v2315
    %v3344 = vunpack.c.l.b16 %v2316
    %v3345 = vunpack.c.l.b16 %v2317
    %v3346 = vunpack.c.l.b16 %v2318
    %v3347 = vunpack.c.l.b16 %v2319
    %v3348 = vunpack.c.l.b16 %v2320
    %v3349 = vunpack.c.l.b16 %v2321
    %v3350 = vunpack.c.l.b16 %v2322
    %v3351 = vunpack.c.l.b16 %v2323
    %v3352 = vunpack.c.l.b16 %v2324
    %v3353 = vunpack.c.l.b16 %v2325
    %v3354 = vunpack.c.l.b16 %v2326
    %v3355 = vunpack.c.l.b16 %v2327
    %v3356 = vunpack.c.l.b16 %v2328
    %v3357 = vunpack.c.l.b16 %v2329
    %v3358 = vunpack.c.l.b16 %v2330
    %v3359 = vunpack.c.l.b16 %v2331
    %v3360 = vunpack.c.l.b16 %v2332
    %v3361 = vunpack.c.l.b16 %v2333
    %v3362 = vunpack.c.l.b16 %v2334
    %v3363 = vunpack.c.l.b16 %v2335
    %v3364 = vunpack.c.l.b16 %v2336
    %v3365 = vunpack.c.l.b16 %v2337
    %v3366 = vunpack.c.l.b16 %v2338
    %v3367 = vunpack.c.l.b16 %v2339
    %v3368 = vunpack.c.l.b16 %v2340
    %v3369 = vunpack.c.l.b16 %v2341
    %v3370 = vunpack.c.l.b16 %v2342
    %v3371 = vunpack.c.l.b16 %v2343
    %v3372 = vunpack.c.l.b16 %v2344
    %v3373 = vunpack.c.l.b16 %v2345
    %v3374 = vunpack.c.l.b16 %v2346
    %v3375 = vunpack.c.l.b16 %v2347
    %v3376 = vunpack.c.l.b16 %v2348
    %v3377 = vunpack.c.l.b16 %v2349
    %v3378 = vunpack.c.l.b16 %v2350
    %v3379 = vunpack.c.l.b16 %v2351
    %v3380 = vunpack.c.l.b16 %v2352
    %v3381 = vunpack.c.l.b16 %v2353
    %v3382 = vunpack.c.l.b16 %v2354
    %v3383 = vunpack.c.l.b16 %v2355
    %v3384 = vunpack.c.l.b16 %v2356
    %v3385 = vunpack.c.l.b16 %v2357
    %v3386 = vunpack.c.l.b16 %v2358
    %v3387 = vunpack.c.l.b16 %v2359
    %v3388 = vunpack.c.l.b16 %v2360
    %v3389 = vunpack.c.l.b16 %v2361
    %v3390 = vunpack.c.l.b16 %v2362
    %v3391 = vunpack.c.l.b16 %v2363
    %v3392 = vunpack.c.l.b16 %v2364
    %v3393 = vunpack.c.l.b16 %v2365
    %v3394 = vunpack.c.l.b16 %v2366
    %v3395 = vunpack.c.l.b16 %v2367
    %v3396 = vunpack.c.l.b16 %v2368
    %v3397 = vunpack.c.l.b16 %v2369
    %v3398 = vunpack.c.l.b16 %v2370
    %v3399 = vunpack.c.l.b16 %v2371
    %v3400 = vunpack.c.l.b16 %v2372
    %v3401 = vunpack.c.l.b16 %v2373
    %v3402 = vunpack.c.l.b16 %v2374
    %v3403 = vunpack.c.l.b16 %v2375
    %v3404 = vunpack.c.l.b16 %v2376
    %v3405 = vunpack.c.l.b16 %v2377
    %v3406 = vunpack.c.l.b16 %v2378
    %v3407 = vunpack.c.l.b16 %v2379
    %v3408 = vunpack.c.l.b16 %v2380
    %v3409 = vunpack.c.l.b16 %v2381
    %v3410 = vunpack.c.l.b16 %v2382
    %v3411 = vunpack.c.l.b16 %v2383
    %v3412 = vunpack.c.l.b16 %v2384
    %v3413 = vunpack.c.l.b16 %v2385
    %v3414 = vunpack.c.l.b16 %v2386
    %v3415 = vunpack.c.l.b16 %v2387
    %v3416 = vunpack.c.l.b16 %v2388
    %v3417 = vunpack.c.l.b16 %v2389
    %v3418 = vunpack.c.l.b16 %v2390
    %v3419 = vunpack.c.l.b16 %v2391
    %v3420 = vunpack.c.l.b16 %v2392
    %v3421 = vunpack.c.l.b16 %v2393
    %v3422 = vunpack.c.l.b16 %v2394
    %v3423 = vunpack.c.l.b16 %v2395
    %v3424 = vunpack.c.l.b16 %v2396
    %v3425 = vunpack.c.l.b16 %v2397
    %v3426 = vunpack.c.l.b16 %v2398
    %v3427 = vunpack.c.l.b16 %v2399
    %v3428 = vunpack.c.l.b16 %v2400
    %v3429 = vunpack.c.l.b16 %v2401
    %v3430 = vunpack.c.l.b16 %v2402
    %v3431 = vunpack.c.l.b16 %v2403
    %v3432 = vunpack.c.l.b16 %v2404
    %v3433 = vunpack.c.l.b16 %v2405
    %v3434 = vunpack.c.l.b16 %v2406
    %v3435 = vunpack.c.l.b16 %v2407
    %v3436 = vunpack.c.l.b16 %v2408
    %v3437 = vunpack.c.l.b16 %v2409
    %v3438 = vunpack.c.l.b16 %v2410
    %v3439 = vunpack.c.l.b16 %v2411
    %v3440 = vunpack.c.l.b16 %v2412
    %v3441 = vunpack.c.l.b16 %v2413
    %v3442 = vunpack.c.l.b16 %v2414
    %v3443 = vunpack.c.l.b16 %v2415
    %v3444 = vunpack.c.l.b16 %v2416
    %v3445 = vunpack.c.l.b16 %v2417
    %v3446 = vunpack.c.l.b16 %v2418
    %v3447 = vunpack.c.l.b16 %v2419
    %v3448 = vunpack.c.l.b16 %v2420
    %v3449 = vunpack.c.l.b16 %v2421
    %v3450 = vunpack.c.l.b16 %v2422
    %v3451 = vunpack.c.l.b16 %v2423
    %v3452 = vunpack.c.l.b16 %v2424
    %v3453 = vunpack.c.l.b16 %v2425
    %v3454 = vunpack.c.l.b16 %v2426
    %v3455 = vunpack.c.l.b16 %v2427
    %v3456 = vunpack.c.l.b16 %v2428
    %v3457 = vunpack.c.l.b16 %v2429
    %v3458 = vunpack.c.l.b16 %v2430
    %v3459 = vunpack.c.l.b16 %v2431
    %v3460 = vunpack.c.l.b16 %v2432
    %v3461 = vunpack.c.l.b16 %v2433
    %v3462 = vunpack.c.l.b16 %v2434
    %v3463 = vunpack.c.l.b16 %v2435
    %v3464 = vunpack.c.l.b16 %v2436
    %v3465 = vunpack.c.l.b16 %v2437
    %v3466 = vunpack.c.l.b16 %v2438
    %v3467 = vunpack.c.l.b16 %v2439
    %v3468 = vunpack.c.l.b16 %v2440
    %v3469 = vunpack.c.l.b16 %v2441
    %v3470 = vunpack.c.l.b16 %v2442
    %v3471 = vunpack.c.l.b16 %v2443
    %v3472 = vunpack.c.l.b16 %v2444
    %v3473 = vunpack.c.l.b16 %v2445
    %v3474 = vunpack.c.l.b16 %v2446
    %v3475 = vunpack.c.l.b16 %v2447
    %v3476 = vunpack.c.l.b16 %v2448
    %v3477 = vunpack.c.l.b16 %v2449
    %v3478 = vunpack.c.l.b16 %v2450
    %v3479 = vunpack.c.l.b16 %v2451
    %v3480 = vunpack.c.l.b16 %v2452
    %v3481 = vunpack.c.l.b16 %v2453
    %v3482 = vunpack.c.l.b16 %v2454
    %v3483 = vunpack.c.l.b16 %v2455
    %v3484 = vunpack.c.l.b16 %v2456
    %v3485 = vunpack.c.l.b16 %v2457
    %v3486 = vunpack.c.l.b16 %v2458
    %v3487 = vunpack.c.l.b16 %v2459
    %v3488 = vunpack.c.l.b16 %v2460
    %v3489 = vunpack.c.l.b16 %v2461
    %v3490 = vunpack.c.l.b16 %v2462
    %v3491 = vunpack.c.l.b16 %v2463
    %v3492 = vunpack.c.l.b16 %v2464
    %v3493 = vunpack.c.l.b16 %v2465
    %v3494 = vunpack.c.l.b16 %v2466
    %v3495 = vunpack.c.l.b16 %v2467
    %v3496 = vunpack.c.l.b16 %v2468
    %v3497 = vunpack.c.l.b16 %v2469
    %v3498 = vunpack.c.l.b16 %v2470
    %v3499 = vunpack.c.l.b16 %v2471
    %v3500 = vunpack.c.l.b16 %v2472
    %v3501 = vunpack.c.l.b16 %v2473
    %v3502 = vunpack.c.l.b16 %v2474
    %v3503 = vunpack.c.l.b16 %v2475
    %v3504 = vunpack.c.l.b16 %v2476
    %v3505 = vunpack.c.l.b16 %v2477
    %v3506 = vunpack.c.l.b16 %v2478
    %v3507 = vunpack.c.l.b16 %v2479
    %v3508 = vunpack.c.l.b16 %v2480
    %v3509 = vunpack.c.l.b16 %v2481
    %v3510 = vunpack.c.l.b16 %v2482
    %v3511 = vunpack.c.l.b16 %v2483
    %v3512 = vunpack.c.l.b16 %v2484
    %v3513 = vunpack.c.l.b16 %v2485
    %v3514 = vunpack.c.l.b16 %v2486
    %v3515 = vunpack.c.l.b16 %v2487
    %v3516 = vunpack.c.l.b16 %v2488
    %v3517 = vunpack.c.l.b16 %v2489
    %v3518 = vunpack.c.l.b16 %v2490
    %v3519 = vunpack.c.l.b16 %v2491
    %v3520 = vunpack.c.l.b16 %v2492
    %v3521 = vunpack.c.l.b16 %v2493
    %v3522 = vunpack.c.l.b16 %v2494
    %v3523 = vunpack.c.l.b16 %v2495
    %v3524 = vunpack.c.l.b16 %v2496
    %v3525 = vunpack.c.l.b16 %v2497
    %v3526 = vunpack.c.l.b16 %v2498
    %v3527 = vunpack.c.l.b16 %v2499
    %v3528 = vunpack.c.l.b16 %v2500
    %v3529 = vunpack.c.l.b16 %v2501
    %v3530 = vunpack.c.l.b16 %v2502
    %v3531 = vunpack.c.l.b16 %v2503
    %v3532 = vunpack.c.l.b16 %v2504
    %v3533 = vunpack.c.l.b16 %v2505
    %v3534 = vunpack.c.l.b16 %v2506
    %v3535 = vpack.c.b16 %v3024, %v3023
    %v3536 = vpack.c.b16 %v3026, %v3025
    %v3537 = vpack.c.b16 %v3028, %v3027
    %v3538 = vpack.c.b16 %v3030, %v3029
    %v3539 = vpack.c.b16 %v3032, %v3031
    %v3540 = vpack.c.b16 %v3034, %v3033
    %v3541 = vpack.c.b16 %v3036, %v3035
    %v3542 = vpack.c.b16 %v3038, %v3037
    %v3543 = vpack.c.b16 %v3040, %v3039
    %v3544 = vpack.c.b16 %v3042, %v3041
    %v3545 = vpack.c.b16 %v3044, %v3043
    %v3546 = vpack.c.b16 %v3046, %v3045
    %v3547 = vpack.c.b16 %v3048, %v3047
    %v3548 = vpack.c.b16 %v3050, %v3049
    %v3549 = vpack.c.b16 %v3052, %v3051
    %v3550 = vpack.c.b16 %v3054, %v3053
    %v3551 = vpack.c.b16 %v3056, %v3055
    %v3552 = vpack.c.b16 %v3058, %v3057
    %v3553 = vpack.c.b16 %v3060, %v3059
    %v3554 = vpack.c.b16 %v3062, %v3061
    %v3555 = vpack.c.b16 %v3064, %v3063
    %v3556 = vpack.c.b16 %v3066, %v3065
    %v3557 = vpack.c.b16 %v3068, %v3067
    %v3558 = vpack.c.b16 %v3070, %v3069
    %v3559 = vpack.c.b16 %v3072, %v3071
    %v3560 = vpack.c.b16 %v3074, %v3073
    %v3561 = vpack.c.b16 %v3076, %v3075
    %v3562 = vpack.c.b16 %v3078, %v3077
    %v3563 = vpack.c.b16 %v3080, %v3079
    %v3564 = vpack.c.b16 %v3082, %v3081
    %v3565 = vpack.c.b16 %v3084, %v3083
    %v3566 = vpack.c.b16 %v3086, %v3085
    %v3567 = vpack.c.b16 %v3088, %v3087
    %v3568 = vpack.c.b16 %v3090, %v3089
    %v3569 = vpack.c.b16 %v3092, %v3091
    %v3570 = vpack.c.b16 %v3094, %v3093
    %v3571 = vpack.c.b16 %v3096, %v3095
    %v3572 = vpack.c.b16 %v3098, %v3097
    %v3573 = vpack.c.b16 %v3100, %v3099
    %v3574 = vpack.c.b16 %v3102, %v3101
    %v3575 = vpack.c.b16 %v3104, %v3103
    %v3576 = vpack.c.b16 %v3106, %v3105
    %v3577 = vpack.c.b16 %v3108, %v3107
    %v3578 = vpack.c.b16 %v3110, %v3109
    %v3579 = vpack.c.b16 %v3112, %v3111
    %v3580 = vpack.c.b16 %v3114, %v3113
    %v3581 = vpack.c.b16 %v3116, %v3115
    %v3582 = vpack.c.b16 %v3118, %v3117
    %v3583 = vpack.c.b16 %v3120, %v3119
    %v3584 = vpack.c.b16 %v3122, %v3121
    %v3585 = vpack.c.b16 %v3124, %v3123
    %v3586 = vpack.c.b16 %v3126, %v3125
    %v3587 = vpack.c.b16 %v3128, %v3127
    %v3588 = vpack.c.b16 %v3130, %v3129
    %v3589 = vpack.c.b16 %v3132, %v3131
    %v3590 = vpack.c.b16 %v3134, %v3133
    %v3591 = vpack.c.b16 %v3136, %v3135
    %v3592 = vpack.c.b16 %v3138, %v3137
    %v3593 = vpack.c.b16 %v3140, %v3139
    %v3594 = vpack.c.b16 %v3142, %v3141
    %v3595 = vpack.c.b16 %v3144, %v3143
    %v3596 = vpack.c.b16 %v3146, %v3145
    %v3597 = vpack.c.b16 %v3148, %v3147
    %v3598 = vpack.c.b16 %v3150, %v3149
    %v3599 = vpack.c.b16 %v3152, %v3151
    %v3600 = vpack.c.b16 %v3154, %v3153
    %v3601 = vpack.c.b16 %v3156, %v3155
    %v3602 = vpack.c.b16 %v3158, %v3157
    %v3603 = vpack.c.b16 %v3160, %v3159
    %v3604 = vpack.c.b16 %v3162, %v3161
    %v3605 = vpack.c.b16 %v3164, %v3163
    %v3606 = vpack.c.b16 %v3166, %v3165
    %v3607 = vpack.c.b16 %v3168, %v3167
    %v3608 = vpack.c.b16 %v3170, %v3169
    %v3609 = vpack.c.b16 %v3172, %v3171
    %v3610 = vpack.c.b16 %v3174, %v3173
    %v3611 = vpack.c.b16 %v3176, %v3175
    %v3612 = vpack.c.b16 %v3178, %v3177
    %v3613 = vpack.c.b16 %v3180, %v3179
    %v3614 = vpack.c.b16 %v3182, %v3181
    %v3615 = vpack.c.b16 %v3184, %v3183
    %v3616 = vpack.c.b16 %v3186, %v3185
    %v3617 = vpack.c.b16 %v3188, %v3187
    %v3618 = vpack.c.b16 %v3190, %v3189
    %v3619 = vpack.c.b16 %v3192, %v3191
    %v3620 = vpack.c.b16 %v3194, %v3193
    %v3621 = vpack.c.b16 %v3196, %v3195
    %v3622 = vpack.c.b16 %v3198, %v3197
    %v3623 = vpack.c.b16 %v3200, %v3199
    %v3624 = vpack.c.b16 %v3202, %v3201
    %v3625 = vpack.c.b16 %v3204, %v3203
    %v3626 = vpack.c.b16 %v3206, %v3205
    %v3627 = vpack.c.b16 %v3208, %v3207
    %v3628 = vpack.c.b16 %v3210, %v3209
    %v3629 = vpack.c.b16 %v3212, %v3211
    %v3630 = vpack.c.b16 %v3214, %v3213
    %v3631 = vpack.c.b16 %v3216, %v3215
    %v3632 = vpack.c.b16 %v3218, %v3217
    %v3633 = vpack.c.b16 %v3220, %v3219
    %v3634 = vpack.c.b16 %v3222, %v3221
    %v3635 = vpack.c.b16 %v3224, %v3223
    %v3636 = vpack.c.b16 %v3226, %v3225
    %v3637 = vpack.c.b16 %v3228, %v3227
    %v3638 = vpack.c.b16 %v3230, %v3229
    %v3639 = vpack.c.b16 %v3232, %v3231
    %v3640 = vpack.c.b16 %v3234, %v3233
    %v3641 = vpack.c.b16 %v3236, %v3235
    %v3642 = vpack.c.b16 %v3238, %v3237
    %v3643 = vpack.c.b16 %v3240, %v3239
    %v3644 = vpack.c.b16 %v3242, %v3241
    %v3645 = vpack.c.b16 %v3244, %v3243
    %v3646 = vpack.c.b16 %v3246, %v3245
    %v3647 = vpack.c.b16 %v3248, %v3247
    %v3648 = vpack.c.b16 %v3250, %v3249
    %v3649 = vpack.c.b16 %v3252, %v3251
    %v3650 = vpack.c.b16 %v3254, %v3253
    %v3651 = vpack.c.b16 %v3256, %v3255
    %v3652 = vpack.c.b16 %v3258, %v3257
    %v3653 = vpack.c.b16 %v3260, %v3259
    %v3654 = vpack.c.b16 %v3262, %v3261
    %v3655 = vpack.c.b16 %v3264, %v3263
    %v3656 = vpack.c.b16 %v3266, %v3265
    %v3657 = vpack.c.b16 %v3268, %v3267
    %v3658 = vpack.c.b16 %v3270, %v3269
    %v3659 = vpack.c.b16 %v3272, %v3271
    %v3660 = vpack.c.b16 %v3274, %v3273
    %v3661 = vpack.c.b16 %v3276, %v3275
    %v3662 = vpack.c.b16 %v3278, %v3277
    %v3663 = vpack.c.b16 %v3280, %v3279
    %v3664 = vpack.c.b16 %v3282, %v3281
    %v3665 = vpack.c.b16 %v3284, %v3283
    %v3666 = vpack.c.b16 %v3286, %v3285
    %v3667 = vpack.c.b16 %v3288, %v3287
    %v3668 = vpack.c.b16 %v3290, %v3289
    %v3669 = vpack.c.b16 %v3292, %v3291
    %v3670 = vpack.c.b16 %v3294, %v3293
    %v3671 = vpack.c.b16 %v3296, %v3295
    %v3672 = vpack.c.b16 %v3298, %v3297
    %v3673 = vpack.c.b16 %v3300, %v3299
    %v3674 = vpack.c.b16 %v3302, %v3301
    %v3675 = vpack.c.b16 %v3304, %v3303
    %v3676 = vpack.c.b16 %v3306, %v3305
    %v3677 = vpack.c.b16 %v3308, %v3307
    %v3678 = vpack.c.b16 %v3310, %v3309
    %v3679 = vpack.c.b16 %v3312, %v3311
    %v3680 = vpack.c.b16 %v3314, %v3313
    %v3681 = vpack.c.b16 %v3316, %v3315
    %v3682 = vpack.c.b16 %v3318, %v3317
    %v3683 = vpack.c.b16 %v3320, %v3319
    %v3684 = vpack.c.b16 %v3322, %v3321
    %v3685 = vpack.c.b16 %v3324, %v3323
    %v3686 = vpack.c.b16 %v3326, %v3325
    %v3687 = vpack.c.b16 %v3328, %v3327
    %v3688 = vpack.c.b16 %v3330, %v3329
    %v3689 = vpack.c.b16 %v3332, %v3331
    %v3690 = vpack.c.b16 %v3334, %v3333
    %v3691 = vpack.c.b16 %v3336, %v3335
    %v3692 = vpack.c.b16 %v3338, %v3337
    %v3693 = vpack.c.b16 %v3340, %v3339
    %v3694 = vpack.c.b16 %v3342, %v3341
    %v3695 = vpack.c.b16 %v3344, %v3343
    %v3696 = vpack.c.b16 %v3346, %v3345
    %v3697 = vpack.c.b16 %v3348, %v3347
    %v3698 = vpack.c.b16 %v3350, %v3349
    %v3699 = vpack.c.b16 %v3352, %v3351
    %v3700 = vpack.c.b16 %v3354, %v3353
    %v3701 = vpack.c.b16 %v3356, %v3355
    %v3702 = vpack.c.b16 %v3358, %v3357
    %v3703 = vpack.c.b16 %v3360, %v3359
    %v3704 = vpack.c.b16 %v3362, %v3361
    %v3705 = vpack.c.b16 %v3364, %v3363
    %v3706 = vpack.c.b16 %v3366, %v3365
    %v3707 = vpack.c.b16 %v3368, %v3367
    %v3708 = vpack.c.b16 %v3370, %v3369
    %v3709 = vpack.c.b16 %v3372, %v3371
    %v3710 = vpack.c.b16 %v3374, %v3373
    %v3711 = vpack.c.b16 %v3376, %v3375
    %v3712 = vpack.c.b16 %v3378, %v3377
    %v3713 = vpack.c.b16 %v3380, %v3379
    %v3714 = vpack.c.b16 %v3382, %v3381
    %v3715 = vpack.c.b16 %v3384, %v3383
    %v3716 = vpack.c.b16 %v3386, %v3385
    %v3717 = vpack.c.b16 %v3388, %v3387
    %v3718 = vpack.c.b16 %v3390, %v3389
    %v3719 = vpack.c.b16 %v3392, %v3391
    %v3720 = vpack.c.b16 %v3394, %v3393
    %v3721 = vpack.c.b16 %v3396, %v3395
    %v3722 = vpack.c.b16 %v3398, %v3397
    %v3723 = vpack.c.b16 %v3400, %v3399
    %v3724 = vpack.c.b16 %v3402, %v3401
    %v3725 = vpack.c.b16 %v3404, %v3403
    %v3726 = vpack.c.b16 %v3406, %v3405
    %v3727 = vpack.c.b16 %v3408, %v3407
    %v3728 = vpack.c.b16 %v3410, %v3409
    %v3729 = vpack.c.b16 %v3412, %v3411
    %v3730 = vpack.c.b16 %v3414, %v3413
    %v3731 = vpack.c.b16 %v3416, %v3415
    %v3732 = vpack.c.b16 %v3418, %v3417
    %v3733 = vpack.c.b16 %v3420, %v3419
    %v3734 = vpack.c.b16 %v3422, %v3421
    %v3735 = vpack.c.b16 %v3424, %v3423
    %v3736 = vpack.c.b16 %v3426, %v3425
    %v3737 = vpack.c.b16 %v3428, %v3427
    %v3738 = vpack.c.b16 %v3430, %v3429
    %v3739 = vpack.c.b16 %v3432, %v3431
    %v3740 = vpack.c.b16 %v3434, %v3433
    %v3741 = vpack.c.b16 %v3436, %v3435
    %v3742 = vpack.c.b16 %v3438, %v3437
    %v3743 = vpack.c.b16 %v3440, %v3439
    %v3744 = vpack.c.b16 %v3442, %v3441
    %v3745 = vpack.c.b16 %v3444, %v3443
    %v3746 = vpack.c.b16 %v3446, %v3445
    %v3747 = vpack.c.b16 %v3448, %v3447
    %v3748 = vpack.c.b16 %v3450, %v3449
    %v3749 = vpack.c.b16 %v3452, %v3451
    %v3750 = vpack.c.b16 %v3454, %v3453
    %v3751 = vpack.c.b16 %v3456, %v3455
    %v3752 = vpack.c.b16 %v3458, %v3457
    %v3753 = vpack.c.b16 %v3460, %v3459
    %v3754 = vpack.c.b16 %v3462, %v3461
    %v3755 = vpack.c.b16 %v3464, %v3463
    %v3756 = vpack.c.b16 %v3466, %v3465
    %v3757 = vpack.c.b16 %v3468, %v3467
    %v3758 = vpack.c.b16 %v3470, %v3469
    %v3759 = vpack.c.b16 %v3472, %v3471
    %v3760 = vpack.c.b16 %v3474, %v3473
    %v3761 = vpack.c.b16 %v3476, %v3475
    %v3762 = vpack.c.b16 %v3478, %v3477
    %v3763 = vpack.c.b16 %v3480, %v3479
    %v3764 = vpack.c.b16 %v3482, %v3481
    %v3765 = vpack.c.b16 %v3484, %v3483
    %v3766 = vpack.c.b16 %v3486, %v3485
    %v3767 = vpack.c.b16 %v3488, %v3487
    %v3768 = vpack.c.b16 %v3490, %v3489
    %v3769 = vpack.c.b16 %v3492, %v3491
    %v3770 = vpack.c.b16 %v3494, %v3493
    %v3771 = vpack.c.b16 %v3496, %v3495
    %v3772 = vpack.c.b16 %v3498, %v3497
    %v3773 = vpack.c.b16 %v3500, %v3499
    %v3774 = vpack.c.b16 %v3502, %v3501
    %v3775 = vpack.c.b16 %v3504, %v3503
    %v3776 = vpack.c.b16 %v3506, %v3505
    %v3777 = vpack.c.b16 %v3508, %v3507
    %v3778 = vpack.c.b16 %v3510, %v3509
    %v3779 = vpack.c.b16 %v3512, %v3511
    %v3780 = vpack.c.b16 %v3514, %v3513
    %v3781 = vpack.c.b16 %v3516, %v3515
    %v3782 = vpack.c.b16 %v3518, %v3517
    %v3783 = vpack.c.b16 %v3520, %v3519
    %v3784 = vpack.c.b16 %v3522, %v3521
    %v3785 = vpack.c.b16 %v3524, %v3523
    %v3786 = vpack.c.b16 %v3526, %v3525
    %v3787 = vpack.c.b16 %v3528, %v3527
    %v3788 = vpack.c.b16 %v3530, %v3529
    %v3789 = vpack.c.b16 %v3532, %v3531
    %v3790 = vpack.c.b16 %v3534, %v3533
    %4047 = vmatpush.bf16.msra.mxu0 %v3542
    %4048 = vmatpush.bf16.msra.mxu0 %v3541
    %4049 = vmatpush.bf16.msra.mxu0 %v3540
    %4050 = vmatpush.bf16.msra.mxu0 %v3539
    %4051 = vmatpush.bf16.msra.mxu0 %v3538
    %4052 = vmatpush.bf16.msra.mxu0 %v3537
    %4053 = vmatpush.bf16.msra.mxu0 %v3536
    %4054 = vmatpush.bf16.msra.mxu0 %v3535
    %4055 = vmatmul.bf16.gmra.mxu0 %v1963
    %v4056 = vpop.f32.mrf.mxu0
    %v4057 = vadd.f32 %v2509, %v4056
    %v4058 = vpop.f32.mrf.mxu0
    %4059 = vdwg.mxu0
    %4060 = vmatpush.bf16.msra.mxu0 %v3550
    %4061 = vmatpush.bf16.msra.mxu0 %v3549
    %4062 = vmatpush.bf16.msra.mxu0 %v3548
    %4063 = vmatpush.bf16.msra.mxu0 %v3547
    %4064 = vmatpush.bf16.msra.mxu0 %v3546
    %4065 = vmatpush.bf16.msra.mxu0 %v3545
    %4066 = vmatpush.bf16.msra.mxu0 %v3544
    %4067 = vmatpush.bf16.msra.mxu0 %v3543
    %4068 = vmatmul.bf16.gmra.mxu0 %v1964
    %v4069 = vpop.f32.mrf.mxu0
    %v4070 = vadd.f32 %v4057, %v4069
    %v4071 = vpop.f32.mrf.mxu0
    %4072 = vdwg.mxu0
    %4073 = vmatpush.bf16.msra.mxu0 %v3558
    %4074 = vmatpush.bf16.msra.mxu0 %v3557
    %4075 = vmatpush.bf16.msra.mxu0 %v3556
    %4076 = vmatpush.bf16.msra.mxu0 %v3555
    %4077 = vmatpush.bf16.msra.mxu0 %v3554
    %4078 = vmatpush.bf16.msra.mxu0 %v3553
    %4079 = vmatpush.bf16.msra.mxu0 %v3552
    %4080 = vmatpush.bf16.msra.mxu0 %v3551
    %4081 = vmatmul.bf16.gmra.mxu0 %v1965
    %v4082 = vpop.f32.mrf.mxu0
    %v4083 = vadd.f32 %v4070, %v4082
    %v4084 = vpop.f32.mrf.mxu0
    %4085 = vdwg.mxu0
    %4086 = vmatpush.bf16.msra.mxu0 %v3566
    %4087 = vmatpush.bf16.msra.mxu0 %v3565
    %4088 = vmatpush.bf16.msra.mxu0 %v3564
    %4089 = vmatpush.bf16.msra.mxu0 %v3563
    %4090 = vmatpush.bf16.msra.mxu0 %v3562
    %4091 = vmatpush.bf16.msra.mxu0 %v3561
    %4092 = vmatpush.bf16.msra.mxu0 %v3560
    %4093 = vmatpush.bf16.msra.mxu0 %v3559
    %4094 = vmatmul.bf16.gmra.mxu0 %v1966
    %v4095 = vpop.f32.mrf.mxu0
    %v4096 = vadd.f32 %v4083, %v4095
    %v4097 = vpop.f32.mrf.mxu0
    %4098 = vdwg.mxu0
    %4099 = vmatpush.bf16.msra.mxu0 %v3574
    %4100 = vmatpush.bf16.msra.mxu0 %v3573
    %4101 = vmatpush.bf16.msra.mxu0 %v3572
    %4102 = vmatpush.bf16.msra.mxu0 %v3571
    %4103 = vmatpush.bf16.msra.mxu0 %v3570
    %4104 = vmatpush.bf16.msra.mxu0 %v3569
    %4105 = vmatpush.bf16.msra.mxu0 %v3568
    %4106 = vmatpush.bf16.msra.mxu0 %v3567
    %4107 = vmatmul.bf16.gmra.mxu0 %v1967
    %v4108 = vpop.f32.mrf.mxu0
    %v4109 = vadd.f32 %v4096, %v4108
    %v4110 = vpop.f32.mrf.mxu0
    %4111 = vdwg.mxu0
    %4112 = vmatpush.bf16.msra.mxu0 %v3582
    %4113 = vmatpush.bf16.msra.mxu0 %v3581
    %4114 = vmatpush.bf16.msra.mxu0 %v3580
    %4115 = vmatpush.bf16.msra.mxu0 %v3579
    %4116 = vmatpush.bf16.msra.mxu0 %v3578
    %4117 = vmatpush.bf16.msra.mxu0 %v3577
    %4118 = vmatpush.bf16.msra.mxu0 %v3576
    %4119 = vmatpush.bf16.msra.mxu0 %v3575
    %4120 = vmatmul.bf16.gmra.mxu0 %v1968
    %v4121 = vpop.f32.mrf.mxu0
    %v4122 = vadd.f32 %v4109, %v4121
    %v4123 = vpop.f32.mrf.mxu0
    %4124 = vdwg.mxu0
    %4125 = vmatpush.bf16.msra.mxu0 %v3590
    %4126 = vmatpush.bf16.msra.mxu0 %v3589
    %4127 = vmatpush.bf16.msra.mxu0 %v3588
    %4128 = vmatpush.bf16.msra.mxu0 %v3587
    %4129 = vmatpush.bf16.msra.mxu0 %v3586
    %4130 = vmatpush.bf16.msra.mxu0 %v3585
    %4131 = vmatpush.bf16.msra.mxu0 %v3584
    %4132 = vmatpush.bf16.msra.mxu0 %v3583
    %4133 = vmatmul.bf16.gmra.mxu0 %v1969
    %v4134 = vpop.f32.mrf.mxu0
    %v4135 = vadd.f32 %v4122, %v4134
    %v4136 = vpop.f32.mrf.mxu0
    %4137 = vdwg.mxu0
    %4138 = vmatpush.bf16.msra.mxu0 %v3598
    %4139 = vmatpush.bf16.msra.mxu0 %v3597
    %4140 = vmatpush.bf16.msra.mxu0 %v3596
    %4141 = vmatpush.bf16.msra.mxu0 %v3595
    %4142 = vmatpush.bf16.msra.mxu0 %v3594
    %4143 = vmatpush.bf16.msra.mxu0 %v3593
    %4144 = vmatpush.bf16.msra.mxu0 %v3592
    %4145 = vmatpush.bf16.msra.mxu0 %v3591
    %4146 = vmatmul.bf16.gmra.mxu0 %v1970
    %v4147 = vpop.f32.mrf.mxu0
    %v4148 = vadd.f32 %v4135, %v4147
    %v4149 = vpop.f32.mrf.mxu0
    %4150 = vdwg.mxu0
    %4151 = vmatpush.bf16.msra.mxu0 %v3606
    %4152 = vmatpush.bf16.msra.mxu0 %v3605
    %4153 = vmatpush.bf16.msra.mxu0 %v3604
    %4154 = vmatpush.bf16.msra.mxu0 %v3603
    %4155 = vmatpush.bf16.msra.mxu0 %v3602
    %4156 = vmatpush.bf16.msra.mxu0 %v3601
    %4157 = vmatpush.bf16.msra.mxu0 %v3600
    %4158 = vmatpush.bf16.msra.mxu0 %v3599
    %4159 = vmatmul.bf16.gmra.mxu0 %v1971
    %v4160 = vpop.f32.mrf.mxu0
    %v4161 = vadd.f32 %v4148, %v4160
    %v4162 = vpop.f32.mrf.mxu0
    %4163 = vdwg.mxu0
    %4164 = vmatpush.bf16.msra.mxu0 %v3614
    %4165 = vmatpush.bf16.msra.mxu0 %v3613
    %4166 = vmatpush.bf16.msra.mxu0 %v3612
    %4167 = vmatpush.bf16.msra.mxu0 %v3611
    %4168 = vmatpush.bf16.msra.mxu0 %v3610
    %4169 = vmatpush.bf16.msra.mxu0 %v3609
    %4170 = vmatpush.bf16.msra.mxu0 %v3608
    %4171 = vmatpush.bf16.msra.mxu0 %v3607
    %4172 = vmatmul.bf16.gmra.mxu0 %v1972
    %v4173 = vpop.f32.mrf.mxu0
    %v4174 = vadd.f32 %v4161, %v4173
    %v4175 = vpop.f32.mrf.mxu0
    %4176 = vdwg.mxu0
    %4177 = vmatpush.bf16.msra.mxu0 %v3622
    %4178 = vmatpush.bf16.msra.mxu0 %v3621
    %4179 = vmatpush.bf16.msra.mxu0 %v3620
    %4180 = vmatpush.bf16.msra.mxu0 %v3619
    %4181 = vmatpush.bf16.msra.mxu0 %v3618
    %4182 = vmatpush.bf16.msra.mxu0 %v3617
    %4183 = vmatpush.bf16.msra.mxu0 %v3616
    %4184 = vmatpush.bf16.msra.mxu0 %v3615
    %4185 = vmatmul.bf16.gmra.mxu0 %v1973
    %v4186 = vpop.f32.mrf.mxu0
    %v4187 = vadd.f32 %v4174, %v4186
    %v4188 = vpop.f32.mrf.mxu0
    %4189 = vdwg.mxu0
    %4190 = vmatpush.bf16.msra.mxu0 %v3630
    %4191 = vmatpush.bf16.msra.mxu0 %v3629
    %4192 = vmatpush.bf16.msra.mxu0 %v3628
    %4193 = vmatpush.bf16.msra.mxu0 %v3627
    %4194 = vmatpush.bf16.msra.mxu0 %v3626
    %4195 = vmatpush.bf16.msra.mxu0 %v3625
    %4196 = vmatpush.bf16.msra.mxu0 %v3624
    %4197 = vmatpush.bf16.msra.mxu0 %v3623
    %4198 = vmatmul.bf16.gmra.mxu0 %v1974
    %v4199 = vpop.f32.mrf.mxu0
    %v4200 = vadd.f32 %v4187, %v4199
    %v4201 = vpop.f32.mrf.mxu0
    %4202 = vdwg.mxu0
    %4203 = vmatpush.bf16.msra.mxu0 %v3638
    %4204 = vmatpush.bf16.msra.mxu0 %v3637
    %4205 = vmatpush.bf16.msra.mxu0 %v3636
    %4206 = vmatpush.bf16.msra.mxu0 %v3635
    %4207 = vmatpush.bf16.msra.mxu0 %v3634
    %4208 = vmatpush.bf16.msra.mxu0 %v3633
    %4209 = vmatpush.bf16.msra.mxu0 %v3632
    %4210 = vmatpush.bf16.msra.mxu0 %v3631
    %4211 = vmatmul.bf16.gmra.mxu0 %v1975
    %v4212 = vpop.f32.mrf.mxu0
    %v4213 = vadd.f32 %v4200, %v4212
    %v4214 = vpop.f32.mrf.mxu0
    %4215 = vdwg.mxu0
    %4216 = vmatpush.bf16.msra.mxu0 %v3646
    %4217 = vmatpush.bf16.msra.mxu0 %v3645
    %4218 = vmatpush.bf16.msra.mxu0 %v3644
    %4219 = vmatpush.bf16.msra.mxu0 %v3643
    %4220 = vmatpush.bf16.msra.mxu0 %v3642
    %4221 = vmatpush.bf16.msra.mxu0 %v3641
    %4222 = vmatpush.bf16.msra.mxu0 %v3640
    %4223 = vmatpush.bf16.msra.mxu0 %v3639
    %4224 = vmatmul.bf16.gmra.mxu0 %v1976
    %v4225 = vpop.f32.mrf.mxu0
    %v4226 = vadd.f32 %v4213, %v4225
    %v4227 = vpop.f32.mrf.mxu0
    %4228 = vdwg.mxu0
    %4229 = vmatpush.bf16.msra.mxu0 %v3654
    %4230 = vmatpush.bf16.msra.mxu0 %v3653
    %4231 = vmatpush.bf16.msra.mxu0 %v3652
    %4232 = vmatpush.bf16.msra.mxu0 %v3651
    %4233 = vmatpush.bf16.msra.mxu0 %v3650
    %4234 = vmatpush.bf16.msra.mxu0 %v3649
    %4235 = vmatpush.bf16.msra.mxu0 %v3648
    %4236 = vmatpush.bf16.msra.mxu0 %v3647
    %4237 = vmatmul.bf16.gmra.mxu0 %v1977
    %v4238 = vpop.f32.mrf.mxu0
    %v4239 = vadd.f32 %v4226, %v4238
    %v4240 = vpop.f32.mrf.mxu0
    %4241 = vdwg.mxu0
    %4242 = vmatpush.bf16.msra.mxu0 %v3662
    %4243 = vmatpush.bf16.msra.mxu0 %v3661
    %4244 = vmatpush.bf16.msra.mxu0 %v3660
    %4245 = vmatpush.bf16.msra.mxu0 %v3659
    %4246 = vmatpush.bf16.msra.mxu0 %v3658
    %4247 = vmatpush.bf16.msra.mxu0 %v3657
    %4248 = vmatpush.bf16.msra.mxu0 %v3656
    %4249 = vmatpush.bf16.msra.mxu0 %v3655
    %4250 = vmatmul.bf16.gmra.mxu0 %v1978
    %v4251 = vpop.f32.mrf.mxu0
    %v4252 = vadd.f32 %v4239, %v4251
    %v4253 = vpop.f32.mrf.mxu0
    %4254 = vdwg.mxu0
    %4255 = vmatpush.bf16.msra.mxu0 %v3670
    %4256 = vmatpush.bf16.msra.mxu0 %v3669
    %4257 = vmatpush.bf16.msra.mxu0 %v3668
    %4258 = vmatpush.bf16.msra.mxu0 %v3667
    %4259 = vmatpush.bf16.msra.mxu0 %v3666
    %4260 = vmatpush.bf16.msra.mxu0 %v3665
    %4261 = vmatpush.bf16.msra.mxu0 %v3664
    %4262 = vmatpush.bf16.msra.mxu0 %v3663
    %4263 = vmatmul.bf16.gmra.mxu0 %v1979
    %v4264 = vpop.f32.mrf.mxu0
    %v4265 = vadd.f32 %v4252, %v4264
    %v4266 = vpop.f32.mrf.mxu0
    %4267 = vdwg.mxu0
    %4268 = vmatpush.bf16.msra.mxu0 %v3678
    %4269 = vmatpush.bf16.msra.mxu0 %v3677
    %4270 = vmatpush.bf16.msra.mxu0 %v3676
    %4271 = vmatpush.bf16.msra.mxu0 %v3675
    %4272 = vmatpush.bf16.msra.mxu0 %v3674
    %4273 = vmatpush.bf16.msra.mxu0 %v3673
    %4274 = vmatpush.bf16.msra.mxu0 %v3672
    %4275 = vmatpush.bf16.msra.mxu0 %v3671
    %4276 = vmatmul.bf16.gmra.mxu0 %v1980
    %v4277 = vpop.f32.mrf.mxu0
    %v4278 = vadd.f32 %v4265, %v4277
    %v4279 = vpop.f32.mrf.mxu0
    %4280 = vdwg.mxu0
    %4281 = vmatpush.bf16.msra.mxu0 %v3686
    %4282 = vmatpush.bf16.msra.mxu0 %v3685
    %4283 = vmatpush.bf16.msra.mxu0 %v3684
    %4284 = vmatpush.bf16.msra.mxu0 %v3683
    %4285 = vmatpush.bf16.msra.mxu0 %v3682
    %4286 = vmatpush.bf16.msra.mxu0 %v3681
    %4287 = vmatpush.bf16.msra.mxu0 %v3680
    %4288 = vmatpush.bf16.msra.mxu0 %v3679
    %4289 = vmatmul.bf16.gmra.mxu0 %v1981
    %v4290 = vpop.f32.mrf.mxu0
    %v4291 = vadd.f32 %v4278, %v4290
    %v4292 = vpop.f32.mrf.mxu0
    %4293 = vdwg.mxu0
    %4294 = vmatpush.bf16.msra.mxu0 %v3694
    %4295 = vmatpush.bf16.msra.mxu0 %v3693
    %4296 = vmatpush.bf16.msra.mxu0 %v3692
    %4297 = vmatpush.bf16.msra.mxu0 %v3691
    %4298 = vmatpush.bf16.msra.mxu0 %v3690
    %4299 = vmatpush.bf16.msra.mxu0 %v3689
    %4300 = vmatpush.bf16.msra.mxu0 %v3688
    %4301 = vmatpush.bf16.msra.mxu0 %v3687
    %4302 = vmatmul.bf16.gmra.mxu0 %v1982
    %v4303 = vpop.f32.mrf.mxu0
    %v4304 = vadd.f32 %v4291, %v4303
    %v4305 = vpop.f32.mrf.mxu0
    %4306 = vdwg.mxu0
    %4307 = vmatpush.bf16.msra.mxu0 %v3702
    %4308 = vmatpush.bf16.msra.mxu0 %v3701
    %4309 = vmatpush.bf16.msra.mxu0 %v3700
    %4310 = vmatpush.bf16.msra.mxu0 %v3699
    %4311 = vmatpush.bf16.msra.mxu0 %v3698
    %4312 = vmatpush.bf16.msra.mxu0 %v3697
    %4313 = vmatpush.bf16.msra.mxu0 %v3696
    %4314 = vmatpush.bf16.msra.mxu0 %v3695
    %4315 = vmatmul.bf16.gmra.mxu0 %v1983
    %v4316 = vpop.f32.mrf.mxu0
    %v4317 = vadd.f32 %v4304, %v4316
    %v4318 = vpop.f32.mrf.mxu0
    %4319 = vdwg.mxu0
    %4320 = vmatpush.bf16.msra.mxu0 %v3710
    %4321 = vmatpush.bf16.msra.mxu0 %v3709
    %4322 = vmatpush.bf16.msra.mxu0 %v3708
    %4323 = vmatpush.bf16.msra.mxu0 %v3707
    %4324 = vmatpush.bf16.msra.mxu0 %v3706
    %4325 = vmatpush.bf16.msra.mxu0 %v3705
    %4326 = vmatpush.bf16.msra.mxu0 %v3704
    %4327 = vmatpush.bf16.msra.mxu0 %v3703
    %4328 = vmatmul.bf16.gmra.mxu0 %v1984
    %v4329 = vpop.f32.mrf.mxu0
    %v4330 = vadd.f32 %v4317, %v4329
    %v4331 = vpop.f32.mrf.mxu0
    %4332 = vdwg.mxu0
    %4333 = vmatpush.bf16.msra.mxu0 %v3718
    %4334 = vmatpush.bf16.msra.mxu0 %v3717
    %4335 = vmatpush.bf16.msra.mxu0 %v3716
    %4336 = vmatpush.bf16.msra.mxu0 %v3715
    %4337 = vmatpush.bf16.msra.mxu0 %v3714
    %4338 = vmatpush.bf16.msra.mxu0 %v3713
    %4339 = vmatpush.bf16.msra.mxu0 %v3712
    %4340 = vmatpush.bf16.msra.mxu0 %v3711
    %4341 = vmatmul.bf16.gmra.mxu0 %v1985
    %v4342 = vpop.f32.mrf.mxu0
    %v4343 = vadd.f32 %v4330, %v4342
    %v4344 = vpop.f32.mrf.mxu0
    %4345 = vdwg.mxu0
    %4346 = vmatpush.bf16.msra.mxu0 %v3726
    %4347 = vmatpush.bf16.msra.mxu0 %v3725
    %4348 = vmatpush.bf16.msra.mxu0 %v3724
    %4349 = vmatpush.bf16.msra.mxu0 %v3723
    %4350 = vmatpush.bf16.msra.mxu0 %v3722
    %4351 = vmatpush.bf16.msra.mxu0 %v3721
    %4352 = vmatpush.bf16.msra.mxu0 %v3720
    %4353 = vmatpush.bf16.msra.mxu0 %v3719
    %4354 = vmatmul.bf16.gmra.mxu0 %v1986
    %v4355 = vpop.f32.mrf.mxu0
    %v4356 = vadd.f32 %v4343, %v4355
    %v4357 = vpop.f32.mrf.mxu0
    %4358 = vdwg.mxu0
    %4359 = vmatpush.bf16.msra.mxu0 %v3734
    %4360 = vmatpush.bf16.msra.mxu0 %v3733
    %4361 = vmatpush.bf16.msra.mxu0 %v3732
    %4362 = vmatpush.bf16.msra.mxu0 %v3731
    %4363 = vmatpush.bf16.msra.mxu0 %v3730
    %4364 = vmatpush.bf16.msra.mxu0 %v3729
    %4365 = vmatpush.bf16.msra.mxu0 %v3728
    %4366 = vmatpush.bf16.msra.mxu0 %v3727
    %4367 = vmatmul.bf16.gmra.mxu0 %v1987
    %v4368 = vpop.f32.mrf.mxu0
    %v4369 = vadd.f32 %v4356, %v4368
    %v4370 = vpop.f32.mrf.mxu0
    %4371 = vdwg.mxu0
    %4372 = vmatpush.bf16.msra.mxu0 %v3742
    %4373 = vmatpush.bf16.msra.mxu0 %v3741
    %4374 = vmatpush.bf16.msra.mxu0 %v3740
    %4375 = vmatpush.bf16.msra.mxu0 %v3739
    %4376 = vmatpush.bf16.msra.mxu0 %v3738
    %4377 = vmatpush.bf16.msra.mxu0 %v3737
    %4378 = vmatpush.bf16.msra.mxu0 %v3736
    %4379 = vmatpush.bf16.msra.mxu0 %v3735
    %4380 = vmatmul.bf16.gmra.mxu0 %v1988
    %v4381 = vpop.f32.mrf.mxu0
    %v4382 = vadd.f32 %v4369, %v4381
    %v4383 = vpop.f32.mrf.mxu0
    %4384 = vdwg.mxu0
    %4385 = vmatpush.bf16.msra.mxu0 %v3750
    %4386 = vmatpush.bf16.msra.mxu0 %v3749
    %4387 = vmatpush.bf16.msra.mxu0 %v3748
    %4388 = vmatpush.bf16.msra.mxu0 %v3747
    %4389 = vmatpush.bf16.msra.mxu0 %v3746
    %4390 = vmatpush.bf16.msra.mxu0 %v3745
    %4391 = vmatpush.bf16.msra.mxu0 %v3744
    %4392 = vmatpush.bf16.msra.mxu0 %v3743
    %4393 = vmatmul.bf16.gmra.mxu0 %v1989
    %v4394 = vpop.f32.mrf.mxu0
    %v4395 = vadd.f32 %v4382, %v4394
    %v4396 = vpop.f32.mrf.mxu0
    %4397 = vdwg.mxu0
    %4398 = vmatpush.bf16.msra.mxu0 %v3758
    %4399 = vmatpush.bf16.msra.mxu0 %v3757
    %4400 = vmatpush.bf16.msra.mxu0 %v3756
    %4401 = vmatpush.bf16.msra.mxu0 %v3755
    %4402 = vmatpush.bf16.msra.mxu0 %v3754
    %4403 = vmatpush.bf16.msra.mxu0 %v3753
    %4404 = vmatpush.bf16.msra.mxu0 %v3752
    %4405 = vmatpush.bf16.msra.mxu0 %v3751
    %4406 = vmatmul.bf16.gmra.mxu0 %v1990
    %v4407 = vpop.f32.mrf.mxu0
    %v4408 = vadd.f32 %v4395, %v4407
    %v4409 = vpop.f32.mrf.mxu0
    %4410 = vdwg.mxu0
    %4411 = vmatpush.bf16.msra.mxu0 %v3766
    %4412 = vmatpush.bf16.msra.mxu0 %v3765
    %4413 = vmatpush.bf16.msra.mxu0 %v3764
    %4414 = vmatpush.bf16.msra.mxu0 %v3763
    %4415 = vmatpush.bf16.msra.mxu0 %v3762
    %4416 = vmatpush.bf16.msra.mxu0 %v3761
    %4417 = vmatpush.bf16.msra.mxu0 %v3760
    %4418 = vmatpush.bf16.msra.mxu0 %v3759
    %4419 = vmatmul.bf16.gmra.mxu0 %v1991
    %v4420 = vpop.f32.mrf.mxu0
    %v4421 = vadd.f32 %v4408, %v4420
    %v4422 = vpop.f32.mrf.mxu0
    %4423 = vdwg.mxu0
    %4424 = vmatpush.bf16.msra.mxu0 %v3774
    %4425 = vmatpush.bf16.msra.mxu0 %v3773
    %4426 = vmatpush.bf16.msra.mxu0 %v3772
    %4427 = vmatpush.bf16.msra.mxu0 %v3771
    %4428 = vmatpush.bf16.msra.mxu0 %v3770
    %4429 = vmatpush.bf16.msra.mxu0 %v3769
    %4430 = vmatpush.bf16.msra.mxu0 %v3768
    %4431 = vmatpush.bf16.msra.mxu0 %v3767
    %4432 = vmatmul.bf16.gmra.mxu0 %v1992
    %v4433 = vpop.f32.mrf.mxu0
    %v4434 = vadd.f32 %v4421, %v4433
    %v4435 = vpop.f32.mrf.mxu0
    %4436 = vdwg.mxu0
    %4437 = vmatpush.bf16.msra.mxu0 %v3782
    %4438 = vmatpush.bf16.msra.mxu0 %v3781
    %4439 = vmatpush.bf16.msra.mxu0 %v3780
    %4440 = vmatpush.bf16.msra.mxu0 %v3779
    %4441 = vmatpush.bf16.msra.mxu0 %v3778
    %4442 = vmatpush.bf16.msra.mxu0 %v3777
    %4443 = vmatpush.bf16.msra.mxu0 %v3776
    %4444 = vmatpush.bf16.msra.mxu0 %v3775
    %4445 = vmatmul.bf16.gmra.mxu0 %v1993
    %v4446 = vpop.f32.mrf.mxu0
    %v4447 = vadd.f32 %v4434, %v4446
    %v4448 = vpop.f32.mrf.mxu0
    %4449 = vdwg.mxu0
    %4450 = vmatpush.bf16.msra.mxu0 %v3790
    %4451 = vmatpush.bf16.msra.mxu0 %v3789
    %4452 = vmatpush.bf16.msra.mxu0 %v3788
    %4453 = vmatpush.bf16.msra.mxu0 %v3787
    %4454 = vmatpush.bf16.msra.mxu0 %v3786
    %4455 = vmatpush.bf16.msra.mxu0 %v3785
    %4456 = vmatpush.bf16.msra.mxu0 %v3784
    %4457 = vmatpush.bf16.msra.mxu0 %v3783
    %4458 = vmatmul.bf16.gmra.mxu0 %v1994
    %v4459 = vpop.f32.mrf.mxu0
    %v4460 = vadd.f32 %v4447, %v4459
    %v4461 = vpop.f32.mrf.mxu0
    %4462 = vdwg.mxu0
    %4463 = vst [vmem:[#allocation2] sm:$0x3] %v4460
    // Predicated region
    $region34: #{convnet_forward.1} parent=1 // pred_check
      _
    $region35: #{convnet_forward.1} parent=1 // pred_check_branch
      %4465 = sbr.rel (0) target = $region37
    $region36: #{convnet_forward.1} parent=1 // pred_region
      %4467 = vsyncadd [#allocation3], 0
      %s4469 = sshll.u32 [#allocation2], 4
      %s4470 = int_to_ptr.vmem [resolvable:$true] %s4469
      %s4471 = sshll.u32 %s8, 4
      %s4472 = int_to_ptr.hbm [resolvable:$true] %s4471
      %4474 = dma.vmem_to_hbm [thread:$0]  %s4470, 32, %s4472, [#allocation3]
    $region37: #{convnet_forward.1} parent=1 // pred_fallthru
      _
    // Predicated region
    $region38: #{convnet_forward.1} parent=1 // pred_check
      _
    $region39: #{convnet_forward.1} parent=1 // pred_check_branch
      %4476 = sbr.rel (0) target = $region41
    $region40: #{convnet_forward.1} parent=1 // pred_region
      %4478 = dma.done [#allocation3], 32
    $region41: #{convnet_forward.1} parent=1 // pred_fallthru
      _
    %4479 = vsyncpa [#allocation3], 1

</llo_original>
